<compile_context>
chip_gen: v5e
topology: v5e:2x2
jax: 0.10.0
libtpu: 0.0.40
codegen_flags: <defaults>
</compile_context>

<pallas_src>
import jax
import jax.numpy as jnp
from jax.experimental import pallas as pl
from jax.experimental.pallas import tpu as pltpu

IN_FEATURES = 768
OUT_FEATURES = 768


def _cdiv(a, b):
    return -(-a // b)


def _round_up(a, b):
    return _cdiv(a, b) * b


def linear_kernel(x_ref, w_ref, b_ref, o_ref):
    """One (bm, N) output slab: y = x @ W_t + b, single MXU matmul + fused bias.

    x_ref: (bm, K)  activations
    w_ref: (K, N)   weight already in (in_features, out_features) orientation
    b_ref: (1, N)   bias
    o_ref: (bm, N)  output
    """
    y = jnp.dot(x_ref[...], w_ref[...], preferred_element_type=jnp.float32)
    o_ref[...] = (y + b_ref[...]).astype(o_ref.dtype)


def _pallas_linear(x2, w_t, b2, bm, single_buffer_resident):
    M, K = x2.shape
    N = w_t.shape[1]
    grid = (_cdiv(M, bm),)

    # Weight / bias block index is constant across the grid -> one buffer is
    # enough; double-buffering them is pure VMEM waste.
    resident_kwargs = (
        dict(pipeline_mode=pl.Buffered(1)) if single_buffer_resident else {}
    )

    itemsize = jnp.dtype(x2.dtype).itemsize
    cost = pl.CostEstimate(
        flops=2 * M * K * N,
        bytes_accessed=(M * K + K * N + N + M * N) * itemsize,
        transcendentals=0,
    )

    return pl.pallas_call(
        linear_kernel,
        out_shape=jax.ShapeDtypeStruct((M, N), x2.dtype),
        grid_spec=pltpu.PrefetchScalarGridSpec(
            num_scalar_prefetch=0,
            grid=grid,
            in_specs=[
                pl.BlockSpec((bm, K), lambda i: (i, 0)),                     # x row-slab
                pl.BlockSpec((K, N), lambda i: (0, 0), **resident_kwargs),   # whole weight
                pl.BlockSpec((1, N), lambda i: (0, 0), **resident_kwargs),   # whole bias
            ],
            out_specs=pl.BlockSpec((bm, N), lambda i: (i, 0)),
        ),
        compiler_params=pltpu.CompilerParams(
            dimension_semantics=("parallel",),
        ),
        cost_estimate=cost,
    )(x2, w_t, b2)


def single_linear(x, weight, bias, *, block_m=512):
    """nn.Linear(768, 768) semantics: y = x @ weight.T + bias.

    x:      (..., 768) float32
    weight: (768, 768) float32, PyTorch layout (out_features, in_features)
    bias:   (768,)     float32
    """
    K = weight.shape[1]
    N = weight.shape[0]
    assert K == IN_FEATURES and N == OUT_FEATURES
    assert x.shape[-1] == K

    lead_shape = x.shape[:-1]
    x2 = x.reshape(-1, K)
    M = x2.shape[0]

    # One-time wrapper-side transpose: feed the MXU a canonical (K, N) RHS.
    w_t = weight.T                      # (in_features, out_features)
    b2 = bias.reshape(1, N)

    # Block over M only.  Small M -> single full block (no (8,128) issue since
    # the block equals the full dim).  For M >= 512 guarantee >= 2 grid steps
    # so v7x's two TensorCores both get work on the "parallel" axis.
    if M <= block_m:
        bm = _round_up(_cdiv(M, 2), 128) if M >= 512 else M
    else:
        bm = block_m

    try:
        out = _pallas_linear(x2, w_t, b2, bm, single_buffer_resident=True)
    except Exception:
        # Fallback if this JAX build rejects pl.Buffered(1) on a BlockSpec.
        out = _pallas_linear(x2, w_t, b2, bm, single_buffer_resident=False)

    return out.reshape(lead_shape + (N,))


if __name__ == "__main__":
    key = jax.random.PRNGKey(0)
    kx, kw, kb = jax.random.split(key, 3)

    # Deterministic parameter init, same scale as nn.Linear's default
    # uniform(-1/sqrt(in_features), 1/sqrt(in_features)).
    bound = 1.0 / (IN_FEATURES ** 0.5)
    weight = jax.random.uniform(
        kw, (OUT_FEATURES, IN_FEATURES), dtype=jnp.float32,
        minval=-bound, maxval=bound,
    )
    bias = jax.random.uniform(
        kb, (OUT_FEATURES,), dtype=jnp.float32, minval=-bound, maxval=bound,
    )

    ok = True
    # Cover: tiny single-block M, split-for-dual-TC M (==512), ragged-tail M.
    for M in (8, 512, 640):
        x = jax.random.normal(kx, (M, IN_FEATURES), dtype=jnp.float32)
        y = jax.block_until_ready(single_linear(x, weight, bias))
        y_ref = x @ weight.T + bias
        ok &= (y.shape == (M, OUT_FEATURES))
        ok &= bool(jnp.allclose(y, y_ref, atol=1e-4, rtol=1e-4))

    assert ok
    print("KERNEL_OK")
</pallas_src>

<mosaic_0001>
module attributes {stable_mosaic.version = 11 : i64} {
  func.func @linear_kernel(%arg0: i32, %arg1: memref<8x768xf32, #tpu.memory_space<vmem>>, %arg2: memref<768x768xf32, #tpu.memory_space<vmem>>, %arg3: memref<1x768xf32, #tpu.memory_space<vmem>>, %arg4: memref<8x768xf32, #tpu.memory_space<vmem>>) attributes {dimension_semantics = [#tpu.dimension_semantics<parallel>], iteration_bounds = array<i64: 1>, scalar_prefetch = 0 : i64, scratch_operands = 0 : i64, tpu.core_type = #tpu.core_type<tc>, window_params = [{transform_indices = @transform_0, window_bounds = array<i64: 8, 768>}, {pipeline_mode = #tpu.pipeline_mode<synchronous>, transform_indices = @transform_1, window_bounds = array<i64: 768, 768>}, {pipeline_mode = #tpu.pipeline_mode<synchronous>, transform_indices = @transform_2, window_bounds = array<i64: 1, 768>}, {transform_indices = @transform_3, window_bounds = array<i64: 8, 768>}]} {
    %c0 = arith.constant 0 : index
    %c0_0 = arith.constant 0 : index
    %0 = vector.load %arg1[%c0, %c0_0] : memref<8x768xf32, #tpu.memory_space<vmem>>, vector<8x768xf32>
    %c0_1 = arith.constant 0 : index
    %c0_2 = arith.constant 0 : index
    %1 = vector.load %arg2[%c0_1, %c0_2] : memref<768x768xf32, #tpu.memory_space<vmem>>, vector<768x768xf32>
    %cst = arith.constant dense<0.000000e+00> : vector<8x768xf32>
    %2 = tpu.matmul %0, %1, %cst {dimension_numbers = #tpu.dot_dimension_numbers<[1], [0], [0], [1], [0, 0, 1, 1], [], []>} : vector<8x768xf32>, vector<768x768xf32>, vector<8x768xf32> -> vector<8x768xf32>
    %c0_3 = arith.constant 0 : index
    %c0_4 = arith.constant 0 : index
    %3 = vector.load %arg3[%c0_3, %c0_4] : memref<1x768xf32, #tpu.memory_space<vmem>>, vector<1x768xf32>
    %4 = vector.broadcast %3 : vector<1x768xf32> to vector<8x768xf32>
    %5 = arith.addf %2, %4 : vector<8x768xf32>
    %c0_5 = arith.constant 0 : index
    %c0_6 = arith.constant 0 : index
    %6 = vector.load %arg4[%c0_5, %c0_6] : memref<8x768xf32, #tpu.memory_space<vmem>>, vector<8x768xf32>
    tpu.vector_store %arg4[%c0_5, %c0_6], %5 {strides = array<i32>} : memref<8x768xf32, #tpu.memory_space<vmem>>, vector<8x768xf32>,
    return
  }
  func.func @transform_0(%arg0: i32) -> (i32, i32) {
    %c0_i32 = arith.constant 0 : i32
    %c0_i32_0 = arith.constant 0 : i32
    return %arg0, %c0_i32 : i32, i32
  }
  func.func @transform_1(%arg0: i32) -> (i32, i32) {
    %c0_i32 = arith.constant 0 : i32
    %c0_i32_0 = arith.constant 0 : i32
    %c0_i32_1 = arith.constant 0 : i32
    return %c0_i32, %c0_i32_0 : i32, i32
  }
  func.func @transform_2(%arg0: i32) -> (i32, i32) {
    %c0_i32 = arith.constant 0 : i32
    %c0_i32_0 = arith.constant 0 : i32
    %c0_i32_1 = arith.constant 0 : i32
    return %c0_i32, %c0_i32_0 : i32, i32
  }
  func.func @transform_3(%arg0: i32) -> (i32, i32) {
    %c0_i32 = arith.constant 0 : i32
    %c0_i32_0 = arith.constant 0 : i32
    return %arg0, %c0_i32 : i32, i32
  }
}

module attributes {stable_mosaic.version = 11 : i64} {
  func.func @linear_kernel(%arg0: i32, %arg1: memref<8x768xf32, #tpu.memory_space<vmem>>, %arg2: memref<768x768xf32, #tpu.memory_space<vmem>>, %arg3: memref<1x768xf32, #tpu.memory_space<vmem>>, %arg4: memref<8x768xf32, #tpu.memory_space<vmem>>) attributes {dimension_semantics = [#tpu.dimension_semantics<parallel>], iteration_bounds = array<i64: 1>, scalar_prefetch = 0 : i64, scratch_operands = 0 : i64, tpu.core_type = #tpu.core_type<tc>, window_params = [{transform_indices = @transform_0, window_bounds = array<i64: 8, 768>}, {pipeline_mode = #tpu.pipeline_mode<synchronous>, transform_indices = @transform_1, window_bounds = array<i64: 768, 768>}, {pipeline_mode = #tpu.pipeline_mode<synchronous>, transform_indices = @transform_2, window_bounds = array<i64: 1, 768>}, {transform_indices = @transform_3, window_bounds = array<i64: 8, 768>}]} {
    %c0 = arith.constant 0 : index
    %c0_0 = arith.constant 0 : index
    %0 = vector.load %arg1[%c0, %c0_0] : memref<8x768xf32, #tpu.memory_space<vmem>>, vector<8x768xf32>
    %c0_1 = arith.constant 0 : index
    %c0_2 = arith.constant 0 : index
    %1 = vector.load %arg2[%c0_1, %c0_2] : memref<768x768xf32, #tpu.memory_space<vmem>>, vector<768x768xf32>
    %cst = arith.constant dense<0.000000e+00> : vector<8x768xf32>
    %2 = tpu.matmul %0, %1, %cst {dimension_numbers = #tpu.dot_dimension_numbers<[1], [0], [0], [1], [0, 0, 1, 1], [], []>} : vector<8x768xf32>, vector<768x768xf32>, vector<8x768xf32> -> vector<8x768xf32>
    %c0_3 = arith.constant 0 : index
    %c0_4 = arith.constant 0 : index
    %3 = vector.load %arg3[%c0_3, %c0_4] : memref<1x768xf32, #tpu.memory_space<vmem>>, vector<1x768xf32>
    %4 = vector.broadcast %3 : vector<1x768xf32> to vector<8x768xf32>
    %5 = arith.addf %2, %4 : vector<8x768xf32>
    %c0_5 = arith.constant 0 : index
    %c0_6 = arith.constant 0 : index
    %6 = vector.load %arg4[%c0_5, %c0_6] : memref<8x768xf32, #tpu.memory_space<vmem>>, vector<8x768xf32>
    tpu.vector_store %arg4[%c0_5, %c0_6], %5 {strides = array<i32>} : memref<8x768xf32, #tpu.memory_space<vmem>>, vector<8x768xf32>,
    return
  }
  func.func @transform_0(%arg0: i32) -> (i32, i32) {
    %c0_i32 = arith.constant 0 : i32
    %c0_i32_0 = arith.constant 0 : i32
    return %arg0, %c0_i32 : i32, i32
  }
  func.func @transform_1(%arg0: i32) -> (i32, i32) {
    %c0_i32 = arith.constant 0 : i32
    %c0_i32_0 = arith.constant 0 : i32
    %c0_i32_1 = arith.constant 0 : i32
    return %c0_i32, %c0_i32_0 : i32, i32
  }
  func.func @transform_2(%arg0: i32) -> (i32, i32) {
    %c0_i32 = arith.constant 0 : i32
    %c0_i32_0 = arith.constant 0 : i32
    %c0_i32_1 = arith.constant 0 : i32
    return %c0_i32, %c0_i32_0 : i32, i32
  }
  func.func @transform_3(%arg0: i32) -> (i32, i32) {
    %c0_i32 = arith.constant 0 : i32
    %c0_i32_0 = arith.constant 0 : i32
    return %arg0, %c0_i32 : i32, i32
  }
}

</mosaic_0001>

<llo_original>
// kernel: tpu_custom_call.1
$region0: #{tpu_custom_call.1}
  #allocation0 [shape = 'u32[]', space=smem, size = 0x4, offset = 0x4, fixed_abs, tag = 'smem constant byte address 0x4 - core index']
  #allocation1 [shape = 'u32[72,128]{1,0:T(1,128)}', space=vmem, size = 0x9000, scoped, tag = 'internal scratch']
  %s0 = inlined_call_operand.hbm [shape: f32[8,768], index: 0, kind: input, shape index: {}]
  %s1 = inlined_call_operand.hbm [shape: f32[768,768], index: 1, kind: input, shape index: {}]
  %s2 = inlined_call_operand.hbm [shape: f32[1,768], index: 2, kind: input, shape index: {}]
  %s3 = inlined_call_operand.hbm [shape: f32[8,768], index: 3, kind: output, shape index: {}]
  %s4 = sld [smem:[#allocation0]]
  $region34: #{tpu_custom_call.1} parent=0
    _
  %s6 = ssub.s32 1, %s4
  %s7 = scalar_select 0, %s6, %s4
  $region1: #{tpu_custom_call.1} parent=0
    #allocation2 [shape = 'u8[24576]{0}', space=vmem, size = 0x6000, scoped, tag = 'input window, operand 0, single buffered']
    #allocation3 [shape = 's32[1]{0}', space=sflag, size = 0x4, scoped, tag = 'scoped memory for tpu_custom_call.1']
    #allocation4 [shape = 's32[1]{0}', space=sflag, size = 0x4, scoped, tag = 'scoped memory for tpu_custom_call.1']
    #allocation5 [shape = 'u8[2359296]{0}', space=vmem, size = 0x240000, scoped, tag = 'input window, operand 1, single buffered']
    #allocation6 [shape = 's32[1]{0}', space=sflag, size = 0x4, scoped, tag = 'scoped memory for tpu_custom_call.1']
    #allocation7 [shape = 'u8[3072]{0}', space=vmem, size = 0xc00, scoped, tag = 'input window, operand 2, single buffered']
    #allocation8 [shape = 'u8[24576]{0}', space=vmem, size = 0x6000, scoped, tag = 'output window, operand 0, single buffered']
    %8 = vsyncpa [#allocation3], 0
    %9 = vsyncpa [#allocation6], 0
    %10 = vsyncpa [#allocation4], 0
    // Predicated region
    $region2: #{tpu_custom_call.1} parent=1 // pred_check
      _
    $region3: #{tpu_custom_call.1} parent=1 // pred_check_branch
      %12 = sbr.rel (0) target = $region5
    $region4: #{tpu_custom_call.1} parent=1 // pred_region
      %14 = vsyncadd [#allocation3], 0
      %s16 = sshll.u32 %s0, 4
      %s17 = int_to_ptr.hbm [resolvable:$true] %s16
      %s18 = sshll.u32 [#allocation2], 4
      %s19 = int_to_ptr.vmem [resolvable:$true] %s18
      %21 = dma.hbm_to_vmem [thread:$0]  %s17, 768, %s19, [#allocation3]
    $region5: #{tpu_custom_call.1} parent=1 // pred_fallthru
      _
    // Predicated region
    $region6: #{tpu_custom_call.1} parent=1 // pred_check
      _
    $region7: #{tpu_custom_call.1} parent=1 // pred_check_branch
      %23 = sbr.rel (0) target = $region9
    $region8: #{tpu_custom_call.1} parent=1 // pred_region
      %25 = vsyncadd [#allocation6], 0
      %s26 = sshll.u32 %s1, 4
      %s27 = int_to_ptr.hbm [resolvable:$true] %s26
      %s28 = sshll.u32 [#allocation5], 4
      %s29 = int_to_ptr.vmem [resolvable:$true] %s28
      %34 = dma.hbm_to_vmem [thread:$0]  %s27, 73728, %s29, [#allocation6], 768, 768, 48
    $region9: #{tpu_custom_call.1} parent=1 // pred_fallthru
      _
    // Predicated region
    $region10: #{tpu_custom_call.1} parent=1 // pred_check
      _
    $region11: #{tpu_custom_call.1} parent=1 // pred_check_branch
      %36 = sbr.rel (0) target = $region13
    $region12: #{tpu_custom_call.1} parent=1 // pred_region
      %38 = vsyncadd [#allocation6], 0
      %s40 = sshll.u32 %s2, 4
      %s41 = int_to_ptr.hbm [resolvable:$true] %s40
      %s42 = sshll.u32 [#allocation7], 4
      %s43 = int_to_ptr.vmem [resolvable:$true] %s42
      %45 = dma.hbm_to_vmem [thread:$0]  %s41, 96, %s43, [#allocation6]
    $region13: #{tpu_custom_call.1} parent=1 // pred_fallthru
      _
    // Predicated region
    $region14: #{tpu_custom_call.1} parent=1 // pred_check
      _
    $region15: #{tpu_custom_call.1} parent=1 // pred_check_branch
      %47 = sbr.rel (0) target = $region17
    $region16: #{tpu_custom_call.1} parent=1 // pred_region
      %49 = dma.done [#allocation3], 768
    $region17: #{tpu_custom_call.1} parent=1 // pred_fallthru
      _
    // Predicated region
    $region18: #{tpu_custom_call.1} parent=1 // pred_check
      _
    $region19: #{tpu_custom_call.1} parent=1 // pred_check_branch
      %51 = sbr.rel (0) target = $region21
    $region20: #{tpu_custom_call.1} parent=1 // pred_region
      %53 = dma.done [#allocation6], 73728
    $region21: #{tpu_custom_call.1} parent=1 // pred_fallthru
      _
    // Predicated region
    $region22: #{tpu_custom_call.1} parent=1 // pred_check
      _
    $region23: #{tpu_custom_call.1} parent=1 // pred_check_branch
      %55 = sbr.rel (0) target = $region25
    $region24: #{tpu_custom_call.1} parent=1 // pred_region
      %57 = dma.done [#allocation6], 96
    $region25: #{tpu_custom_call.1} parent=1 // pred_fallthru
      _
    %v58 = vld [vmem:[#allocation2] sm:$0xff]
    %v59 = vld [vmem:[#allocation2 + $0x8] sm:$0xff]
    %v60 = vld [vmem:[#allocation2 + $0x10] sm:$0xff]
    %v61 = vld [vmem:[#allocation2 + $0x18] sm:$0xff]
    %v62 = vld [vmem:[#allocation2 + $0x20] sm:$0xff]
    %v63 = vld [vmem:[#allocation2 + $0x28] sm:$0xff]
    %v64 = vld [vmem:[#allocation5] sm:$0xff]
    %v65 = vld [vmem:[#allocation5 + $0x8] sm:$0xff]
    %v66 = vld [vmem:[#allocation5 + $0x10] sm:$0xff]
    %v67 = vld [vmem:[#allocation5 + $0x18] sm:$0xff]
    %v68 = vld [vmem:[#allocation5 + $0x20] sm:$0xff]
    %v69 = vld [vmem:[#allocation5 + $0x28] sm:$0xff]
    %v70 = vld [vmem:[#allocation5 + $0x30] sm:$0xff]
    %v71 = vld [vmem:[#allocation5 + $0x38] sm:$0xff]
    %v72 = vld [vmem:[#allocation5 + $0x40] sm:$0xff]
    %v73 = vld [vmem:[#allocation5 + $0x48] sm:$0xff]
    %v74 = vld [vmem:[#allocation5 + $0x50] sm:$0xff]
    %v75 = vld [vmem:[#allocation5 + $0x58] sm:$0xff]
    %v76 = vld [vmem:[#allocation5 + $0x60] sm:$0xff]
    %v77 = vld [vmem:[#allocation5 + $0x68] sm:$0xff]
    %v78 = vld [vmem:[#allocation5 + $0x70] sm:$0xff]
    %v79 = vld [vmem:[#allocation5 + $0x78] sm:$0xff]
    %v80 = vld [vmem:[#allocation5 + $0x80] sm:$0xff]
    %v81 = vld [vmem:[#allocation5 + $0x88] sm:$0xff]
    %v82 = vld [vmem:[#allocation5 + $0x90] sm:$0xff]
    %v83 = vld [vmem:[#allocation5 + $0x98] sm:$0xff]
    %v84 = vld [vmem:[#allocation5 + $0xa0] sm:$0xff]
    %v85 = vld [vmem:[#allocation5 + $0xa8] sm:$0xff]
    %v86 = vld [vmem:[#allocation5 + $0xb0] sm:$0xff]
    %v87 = vld [vmem:[#allocation5 + $0xb8] sm:$0xff]
    %v88 = vld [vmem:[#allocation5 + $0xc0] sm:$0xff]
    %v89 = vld [vmem:[#allocation5 + $0xc8] sm:$0xff]
    %v90 = vld [vmem:[#allocation5 + $0xd0] sm:$0xff]
    %v91 = vld [vmem:[#allocation5 + $0xd8] sm:$0xff]
    %v92 = vld [vmem:[#allocation5 + $0xe0] sm:$0xff]
    %v93 = vld [vmem:[#allocation5 + $0xe8] sm:$0xff]
    %v94 = vld [vmem:[#allocation5 + $0xf0] sm:$0xff]
    %v95 = vld [vmem:[#allocation5 + $0xf8] sm:$0xff]
    %v96 = vld [vmem:[#allocation5 + $0x100] sm:$0xff]
    %v97 = vld [vmem:[#allocation5 + $0x108] sm:$0xff]
    %v98 = vld [vmem:[#allocation5 + $0x110] sm:$0xff]
    %v99 = vld [vmem:[#allocation5 + $0x118] sm:$0xff]
    %v100 = vld [vmem:[#allocation5 + $0x120] sm:$0xff]
    %v101 = vld [vmem:[#allocation5 + $0x128] sm:$0xff]
    %v102 = vld [vmem:[#allocation5 + $0x130] sm:$0xff]
    %v103 = vld [vmem:[#allocation5 + $0x138] sm:$0xff]
    %v104 = vld [vmem:[#allocation5 + $0x140] sm:$0xff]
    %v105 = vld [vmem:[#allocation5 + $0x148] sm:$0xff]
    %v106 = vld [vmem:[#allocation5 + $0x150] sm:$0xff]
    %v107 = vld [vmem:[#allocation5 + $0x158] sm:$0xff]
    %v108 = vld [vmem:[#allocation5 + $0x160] sm:$0xff]
    %v109 = vld [vmem:[#allocation5 + $0x168] sm:$0xff]
    %v110 = vld [vmem:[#allocation5 + $0x170] sm:$0xff]
    %v111 = vld [vmem:[#allocation5 + $0x178] sm:$0xff]
    %v112 = vld [vmem:[#allocation5 + $0x180] sm:$0xff]
    %v113 = vld [vmem:[#allocation5 + $0x188] sm:$0xff]
    %v114 = vld [vmem:[#allocation5 + $0x190] sm:$0xff]
    %v115 = vld [vmem:[#allocation5 + $0x198] sm:$0xff]
    %v116 = vld [vmem:[#allocation5 + $0x1a0] sm:$0xff]
    %v117 = vld [vmem:[#allocation5 + $0x1a8] sm:$0xff]
    %v118 = vld [vmem:[#allocation5 + $0x1b0] sm:$0xff]
    %v119 = vld [vmem:[#allocation5 + $0x1b8] sm:$0xff]
    %v120 = vld [vmem:[#allocation5 + $0x1c0] sm:$0xff]
    %v121 = vld [vmem:[#allocation5 + $0x1c8] sm:$0xff]
    %v122 = vld [vmem:[#allocation5 + $0x1d0] sm:$0xff]
    %v123 = vld [vmem:[#allocation5 + $0x1d8] sm:$0xff]
    %v124 = vld [vmem:[#allocation5 + $0x1e0] sm:$0xff]
    %v125 = vld [vmem:[#allocation5 + $0x1e8] sm:$0xff]
    %v126 = vld [vmem:[#allocation5 + $0x1f0] sm:$0xff]
    %v127 = vld [vmem:[#allocation5 + $0x1f8] sm:$0xff]
    %v128 = vld [vmem:[#allocation5 + $0x200] sm:$0xff]
    %v129 = vld [vmem:[#allocation5 + $0x208] sm:$0xff]
    %v130 = vld [vmem:[#allocation5 + $0x210] sm:$0xff]
    %v131 = vld [vmem:[#allocation5 + $0x218] sm:$0xff]
    %v132 = vld [vmem:[#allocation5 + $0x220] sm:$0xff]
    %v133 = vld [vmem:[#allocation5 + $0x228] sm:$0xff]
    %v134 = vld [vmem:[#allocation5 + $0x230] sm:$0xff]
    %v135 = vld [vmem:[#allocation5 + $0x238] sm:$0xff]
    %v136 = vld [vmem:[#allocation5 + $0x240] sm:$0xff]
    %v137 = vld [vmem:[#allocation5 + $0x248] sm:$0xff]
    %v138 = vld [vmem:[#allocation5 + $0x250] sm:$0xff]
    %v139 = vld [vmem:[#allocation5 + $0x258] sm:$0xff]
    %v140 = vld [vmem:[#allocation5 + $0x260] sm:$0xff]
    %v141 = vld [vmem:[#allocation5 + $0x268] sm:$0xff]
    %v142 = vld [vmem:[#allocation5 + $0x270] sm:$0xff]
    %v143 = vld [vmem:[#allocation5 + $0x278] sm:$0xff]
    %v144 = vld [vmem:[#allocation5 + $0x280] sm:$0xff]
    %v145 = vld [vmem:[#allocation5 + $0x288] sm:$0xff]
    %v146 = vld [vmem:[#allocation5 + $0x290] sm:$0xff]
    %v147 = vld [vmem:[#allocation5 + $0x298] sm:$0xff]
    %v148 = vld [vmem:[#allocation5 + $0x2a0] sm:$0xff]
    %v149 = vld [vmem:[#allocation5 + $0x2a8] sm:$0xff]
    %v150 = vld [vmem:[#allocation5 + $0x2b0] sm:$0xff]
    %v151 = vld [vmem:[#allocation5 + $0x2b8] sm:$0xff]
    %v152 = vld [vmem:[#allocation5 + $0x2c0] sm:$0xff]
    %v153 = vld [vmem:[#allocation5 + $0x2c8] sm:$0xff]
    %v154 = vld [vmem:[#allocation5 + $0x2d0] sm:$0xff]
    %v155 = vld [vmem:[#allocation5 + $0x2d8] sm:$0xff]
    %v156 = vld [vmem:[#allocation5 + $0x2e0] sm:$0xff]
    %v157 = vld [vmem:[#allocation5 + $0x2e8] sm:$0xff]
    %v158 = vld [vmem:[#allocation5 + $0x2f0] sm:$0xff]
    %v159 = vld [vmem:[#allocation5 + $0x2f8] sm:$0xff]
    %v160 = vld [vmem:[#allocation5 + $0x300] sm:$0xff]
    %v161 = vld [vmem:[#allocation5 + $0x308] sm:$0xff]
    %v162 = vld [vmem:[#allocation5 + $0x310] sm:$0xff]
    %v163 = vld [vmem:[#allocation5 + $0x318] sm:$0xff]
    %v164 = vld [vmem:[#allocation5 + $0x320] sm:$0xff]
    %v165 = vld [vmem:[#allocation5 + $0x328] sm:$0xff]
    %v166 = vld [vmem:[#allocation5 + $0x330] sm:$0xff]
    %v167 = vld [vmem:[#allocation5 + $0x338] sm:$0xff]
    %v168 = vld [vmem:[#allocation5 + $0x340] sm:$0xff]
    %v169 = vld [vmem:[#allocation5 + $0x348] sm:$0xff]
    %v170 = vld [vmem:[#allocation5 + $0x350] sm:$0xff]
    %v171 = vld [vmem:[#allocation5 + $0x358] sm:$0xff]
    %v172 = vld [vmem:[#allocation5 + $0x360] sm:$0xff]
    %v173 = vld [vmem:[#allocation5 + $0x368] sm:$0xff]
    %v174 = vld [vmem:[#allocation5 + $0x370] sm:$0xff]
    %v175 = vld [vmem:[#allocation5 + $0x378] sm:$0xff]
    %v176 = vld [vmem:[#allocation5 + $0x380] sm:$0xff]
    %v177 = vld [vmem:[#allocation5 + $0x388] sm:$0xff]
    %v178 = vld [vmem:[#allocation5 + $0x390] sm:$0xff]
    %v179 = vld [vmem:[#allocation5 + $0x398] sm:$0xff]
    %v180 = vld [vmem:[#allocation5 + $0x3a0] sm:$0xff]
    %v181 = vld [vmem:[#allocation5 + $0x3a8] sm:$0xff]
    %v182 = vld [vmem:[#allocation5 + $0x3b0] sm:$0xff]
    %v183 = vld [vmem:[#allocation5 + $0x3b8] sm:$0xff]
    %v184 = vld [vmem:[#allocation5 + $0x3c0] sm:$0xff]
    %v185 = vld [vmem:[#allocation5 + $0x3c8] sm:$0xff]
    %v186 = vld [vmem:[#allocation5 + $0x3d0] sm:$0xff]
    %v187 = vld [vmem:[#allocation5 + $0x3d8] sm:$0xff]
    %v188 = vld [vmem:[#allocation5 + $0x3e0] sm:$0xff]
    %v189 = vld [vmem:[#allocation5 + $0x3e8] sm:$0xff]
    %v190 = vld [vmem:[#allocation5 + $0x3f0] sm:$0xff]
    %v191 = vld [vmem:[#allocation5 + $0x3f8] sm:$0xff]
    %v192 = vld [vmem:[#allocation5 + $0x400] sm:$0xff]
    %v193 = vld [vmem:[#allocation5 + $0x408] sm:$0xff]
    %v194 = vld [vmem:[#allocation5 + $0x410] sm:$0xff]
    %v195 = vld [vmem:[#allocation5 + $0x418] sm:$0xff]
    %v196 = vld [vmem:[#allocation5 + $0x420] sm:$0xff]
    %v197 = vld [vmem:[#allocation5 + $0x428] sm:$0xff]
    %v198 = vld [vmem:[#allocation5 + $0x430] sm:$0xff]
    %v199 = vld [vmem:[#allocation5 + $0x438] sm:$0xff]
    %v200 = vld [vmem:[#allocation5 + $0x440] sm:$0xff]
    %v201 = vld [vmem:[#allocation5 + $0x448] sm:$0xff]
    %v202 = vld [vmem:[#allocation5 + $0x450] sm:$0xff]
    %v203 = vld [vmem:[#allocation5 + $0x458] sm:$0xff]
    %v204 = vld [vmem:[#allocation5 + $0x460] sm:$0xff]
    %v205 = vld [vmem:[#allocation5 + $0x468] sm:$0xff]
    %v206 = vld [vmem:[#allocation5 + $0x470] sm:$0xff]
    %v207 = vld [vmem:[#allocation5 + $0x478] sm:$0xff]
    %v208 = vld [vmem:[#allocation5 + $0x480] sm:$0xff]
    %v209 = vld [vmem:[#allocation5 + $0x488] sm:$0xff]
    %v210 = vld [vmem:[#allocation5 + $0x490] sm:$0xff]
    %v211 = vld [vmem:[#allocation5 + $0x498] sm:$0xff]
    %v212 = vld [vmem:[#allocation5 + $0x4a0] sm:$0xff]
    %v213 = vld [vmem:[#allocation5 + $0x4a8] sm:$0xff]
    %v214 = vld [vmem:[#allocation5 + $0x4b0] sm:$0xff]
    %v215 = vld [vmem:[#allocation5 + $0x4b8] sm:$0xff]
    %v216 = vld [vmem:[#allocation5 + $0x4c0] sm:$0xff]
    %v217 = vld [vmem:[#allocation5 + $0x4c8] sm:$0xff]
    %v218 = vld [vmem:[#allocation5 + $0x4d0] sm:$0xff]
    %v219 = vld [vmem:[#allocation5 + $0x4d8] sm:$0xff]
    %v220 = vld [vmem:[#allocation5 + $0x4e0] sm:$0xff]
    %v221 = vld [vmem:[#allocation5 + $0x4e8] sm:$0xff]
    %v222 = vld [vmem:[#allocation5 + $0x4f0] sm:$0xff]
    %v223 = vld [vmem:[#allocation5 + $0x4f8] sm:$0xff]
    %v224 = vld [vmem:[#allocation5 + $0x500] sm:$0xff]
    %v225 = vld [vmem:[#allocation5 + $0x508] sm:$0xff]
    %v226 = vld [vmem:[#allocation5 + $0x510] sm:$0xff]
    %v227 = vld [vmem:[#allocation5 + $0x518] sm:$0xff]
    %v228 = vld [vmem:[#allocation5 + $0x520] sm:$0xff]
    %v229 = vld [vmem:[#allocation5 + $0x528] sm:$0xff]
    %v230 = vld [vmem:[#allocation5 + $0x530] sm:$0xff]
    %v231 = vld [vmem:[#allocation5 + $0x538] sm:$0xff]
    %v232 = vld [vmem:[#allocation5 + $0x540] sm:$0xff]
    %v233 = vld [vmem:[#allocation5 + $0x548] sm:$0xff]
    %v234 = vld [vmem:[#allocation5 + $0x550] sm:$0xff]
    %v235 = vld [vmem:[#allocation5 + $0x558] sm:$0xff]
    %v236 = vld [vmem:[#allocation5 + $0x560] sm:$0xff]
    %v237 = vld [vmem:[#allocation5 + $0x568] sm:$0xff]
    %v238 = vld [vmem:[#allocation5 + $0x570] sm:$0xff]
    %v239 = vld [vmem:[#allocation5 + $0x578] sm:$0xff]
    %v240 = vld [vmem:[#allocation5 + $0x580] sm:$0xff]
    %v241 = vld [vmem:[#allocation5 + $0x588] sm:$0xff]
    %v242 = vld [vmem:[#allocation5 + $0x590] sm:$0xff]
    %v243 = vld [vmem:[#allocation5 + $0x598] sm:$0xff]
    %v244 = vld [vmem:[#allocation5 + $0x5a0] sm:$0xff]
    %v245 = vld [vmem:[#allocation5 + $0x5a8] sm:$0xff]
    %v246 = vld [vmem:[#allocation5 + $0x5b0] sm:$0xff]
    %v247 = vld [vmem:[#allocation5 + $0x5b8] sm:$0xff]
    %v248 = vld [vmem:[#allocation5 + $0x5c0] sm:$0xff]
    %v249 = vld [vmem:[#allocation5 + $0x5c8] sm:$0xff]
    %v250 = vld [vmem:[#allocation5 + $0x5d0] sm:$0xff]
    %v251 = vld [vmem:[#allocation5 + $0x5d8] sm:$0xff]
    %v252 = vld [vmem:[#allocation5 + $0x5e0] sm:$0xff]
    %v253 = vld [vmem:[#allocation5 + $0x5e8] sm:$0xff]
    %v254 = vld [vmem:[#allocation5 + $0x5f0] sm:$0xff]
    %v255 = vld [vmem:[#allocation5 + $0x5f8] sm:$0xff]
    %v256 = vld [vmem:[#allocation5 + $0x600] sm:$0xff]
    %v257 = vld [vmem:[#allocation5 + $0x608] sm:$0xff]
    %v258 = vld [vmem:[#allocation5 + $0x610] sm:$0xff]
    %v259 = vld [vmem:[#allocation5 + $0x618] sm:$0xff]
    %v260 = vld [vmem:[#allocation5 + $0x620] sm:$0xff]
    %v261 = vld [vmem:[#allocation5 + $0x628] sm:$0xff]
    %v262 = vld [vmem:[#allocation5 + $0x630] sm:$0xff]
    %v263 = vld [vmem:[#allocation5 + $0x638] sm:$0xff]
    %v264 = vld [vmem:[#allocation5 + $0x640] sm:$0xff]
    %v265 = vld [vmem:[#allocation5 + $0x648] sm:$0xff]
    %v266 = vld [vmem:[#allocation5 + $0x650] sm:$0xff]
    %v267 = vld [vmem:[#allocation5 + $0x658] sm:$0xff]
    %v268 = vld [vmem:[#allocation5 + $0x660] sm:$0xff]
    %v269 = vld [vmem:[#allocation5 + $0x668] sm:$0xff]
    %v270 = vld [vmem:[#allocation5 + $0x670] sm:$0xff]
    %v271 = vld [vmem:[#allocation5 + $0x678] sm:$0xff]
    %v272 = vld [vmem:[#allocation5 + $0x680] sm:$0xff]
    %v273 = vld [vmem:[#allocation5 + $0x688] sm:$0xff]
    %v274 = vld [vmem:[#allocation5 + $0x690] sm:$0xff]
    %v275 = vld [vmem:[#allocation5 + $0x698] sm:$0xff]
    %v276 = vld [vmem:[#allocation5 + $0x6a0] sm:$0xff]
    %v277 = vld [vmem:[#allocation5 + $0x6a8] sm:$0xff]
    %v278 = vld [vmem:[#allocation5 + $0x6b0] sm:$0xff]
    %v279 = vld [vmem:[#allocation5 + $0x6b8] sm:$0xff]
    %v280 = vld [vmem:[#allocation5 + $0x6c0] sm:$0xff]
    %v281 = vld [vmem:[#allocation5 + $0x6c8] sm:$0xff]
    %v282 = vld [vmem:[#allocation5 + $0x6d0] sm:$0xff]
    %v283 = vld [vmem:[#allocation5 + $0x6d8] sm:$0xff]
    %v284 = vld [vmem:[#allocation5 + $0x6e0] sm:$0xff]
    %v285 = vld [vmem:[#allocation5 + $0x6e8] sm:$0xff]
    %v286 = vld [vmem:[#allocation5 + $0x6f0] sm:$0xff]
    %v287 = vld [vmem:[#allocation5 + $0x6f8] sm:$0xff]
    %v288 = vld [vmem:[#allocation5 + $0x700] sm:$0xff]
    %v289 = vld [vmem:[#allocation5 + $0x708] sm:$0xff]
    %v290 = vld [vmem:[#allocation5 + $0x710] sm:$0xff]
    %v291 = vld [vmem:[#allocation5 + $0x718] sm:$0xff]
    %v292 = vld [vmem:[#allocation5 + $0x720] sm:$0xff]
    %v293 = vld [vmem:[#allocation5 + $0x728] sm:$0xff]
    %v294 = vld [vmem:[#allocation5 + $0x730] sm:$0xff]
    %v295 = vld [vmem:[#allocation5 + $0x738] sm:$0xff]
    %v296 = vld [vmem:[#allocation5 + $0x740] sm:$0xff]
    %v297 = vld [vmem:[#allocation5 + $0x748] sm:$0xff]
    %v298 = vld [vmem:[#allocation5 + $0x750] sm:$0xff]
    %v299 = vld [vmem:[#allocation5 + $0x758] sm:$0xff]
    %v300 = vld [vmem:[#allocation5 + $0x760] sm:$0xff]
    %v301 = vld [vmem:[#allocation5 + $0x768] sm:$0xff]
    %v302 = vld [vmem:[#allocation5 + $0x770] sm:$0xff]
    %v303 = vld [vmem:[#allocation5 + $0x778] sm:$0xff]
    %v304 = vld [vmem:[#allocation5 + $0x780] sm:$0xff]
    %v305 = vld [vmem:[#allocation5 + $0x788] sm:$0xff]
    %v306 = vld [vmem:[#allocation5 + $0x790] sm:$0xff]
    %v307 = vld [vmem:[#allocation5 + $0x798] sm:$0xff]
    %v308 = vld [vmem:[#allocation5 + $0x7a0] sm:$0xff]
    %v309 = vld [vmem:[#allocation5 + $0x7a8] sm:$0xff]
    %v310 = vld [vmem:[#allocation5 + $0x7b0] sm:$0xff]
    %v311 = vld [vmem:[#allocation5 + $0x7b8] sm:$0xff]
    %v312 = vld [vmem:[#allocation5 + $0x7c0] sm:$0xff]
    %v313 = vld [vmem:[#allocation5 + $0x7c8] sm:$0xff]
    %v314 = vld [vmem:[#allocation5 + $0x7d0] sm:$0xff]
    %v315 = vld [vmem:[#allocation5 + $0x7d8] sm:$0xff]
    %v316 = vld [vmem:[#allocation5 + $0x7e0] sm:$0xff]
    %v317 = vld [vmem:[#allocation5 + $0x7e8] sm:$0xff]
    %v318 = vld [vmem:[#allocation5 + $0x7f0] sm:$0xff]
    %v319 = vld [vmem:[#allocation5 + $0x7f8] sm:$0xff]
    %v320 = vld [vmem:[#allocation5 + $0x800] sm:$0xff]
    %v321 = vld [vmem:[#allocation5 + $0x808] sm:$0xff]
    %v322 = vld [vmem:[#allocation5 + $0x810] sm:$0xff]
    %v323 = vld [vmem:[#allocation5 + $0x818] sm:$0xff]
    %v324 = vld [vmem:[#allocation5 + $0x820] sm:$0xff]
    %v325 = vld [vmem:[#allocation5 + $0x828] sm:$0xff]
    %v326 = vld [vmem:[#allocation5 + $0x830] sm:$0xff]
    %v327 = vld [vmem:[#allocation5 + $0x838] sm:$0xff]
    %v328 = vld [vmem:[#allocation5 + $0x840] sm:$0xff]
    %v329 = vld [vmem:[#allocation5 + $0x848] sm:$0xff]
    %v330 = vld [vmem:[#allocation5 + $0x850] sm:$0xff]
    %v331 = vld [vmem:[#allocation5 + $0x858] sm:$0xff]
    %v332 = vld [vmem:[#allocation5 + $0x860] sm:$0xff]
    %v333 = vld [vmem:[#allocation5 + $0x868] sm:$0xff]
    %v334 = vld [vmem:[#allocation5 + $0x870] sm:$0xff]
    %v335 = vld [vmem:[#allocation5 + $0x878] sm:$0xff]
    %v336 = vld [vmem:[#allocation5 + $0x880] sm:$0xff]
    %v337 = vld [vmem:[#allocation5 + $0x888] sm:$0xff]
    %v338 = vld [vmem:[#allocation5 + $0x890] sm:$0xff]
    %v339 = vld [vmem:[#allocation5 + $0x898] sm:$0xff]
    %v340 = vld [vmem:[#allocation5 + $0x8a0] sm:$0xff]
    %v341 = vld [vmem:[#allocation5 + $0x8a8] sm:$0xff]
    %v342 = vld [vmem:[#allocation5 + $0x8b0] sm:$0xff]
    %v343 = vld [vmem:[#allocation5 + $0x8b8] sm:$0xff]
    %v344 = vld [vmem:[#allocation5 + $0x8c0] sm:$0xff]
    %v345 = vld [vmem:[#allocation5 + $0x8c8] sm:$0xff]
    %v346 = vld [vmem:[#allocation5 + $0x8d0] sm:$0xff]
    %v347 = vld [vmem:[#allocation5 + $0x8d8] sm:$0xff]
    %v348 = vld [vmem:[#allocation5 + $0x8e0] sm:$0xff]
    %v349 = vld [vmem:[#allocation5 + $0x8e8] sm:$0xff]
    %v350 = vld [vmem:[#allocation5 + $0x8f0] sm:$0xff]
    %v351 = vld [vmem:[#allocation5 + $0x8f8] sm:$0xff]
    %v352 = vld [vmem:[#allocation5 + $0x900] sm:$0xff]
    %v353 = vld [vmem:[#allocation5 + $0x908] sm:$0xff]
    %v354 = vld [vmem:[#allocation5 + $0x910] sm:$0xff]
    %v355 = vld [vmem:[#allocation5 + $0x918] sm:$0xff]
    %v356 = vld [vmem:[#allocation5 + $0x920] sm:$0xff]
    %v357 = vld [vmem:[#allocation5 + $0x928] sm:$0xff]
    %v358 = vld [vmem:[#allocation5 + $0x930] sm:$0xff]
    %v359 = vld [vmem:[#allocation5 + $0x938] sm:$0xff]
    %v360 = vld [vmem:[#allocation5 + $0x940] sm:$0xff]
    %v361 = vld [vmem:[#allocation5 + $0x948] sm:$0xff]
    %v362 = vld [vmem:[#allocation5 + $0x950] sm:$0xff]
    %v363 = vld [vmem:[#allocation5 + $0x958] sm:$0xff]
    %v364 = vld [vmem:[#allocation5 + $0x960] sm:$0xff]
    %v365 = vld [vmem:[#allocation5 + $0x968] sm:$0xff]
    %v366 = vld [vmem:[#allocation5 + $0x970] sm:$0xff]
    %v367 = vld [vmem:[#allocation5 + $0x978] sm:$0xff]
    %v368 = vld [vmem:[#allocation5 + $0x980] sm:$0xff]
    %v369 = vld [vmem:[#allocation5 + $0x988] sm:$0xff]
    %v370 = vld [vmem:[#allocation5 + $0x990] sm:$0xff]
    %v371 = vld [vmem:[#allocation5 + $0x998] sm:$0xff]
    %v372 = vld [vmem:[#allocation5 + $0x9a0] sm:$0xff]
    %v373 = vld [vmem:[#allocation5 + $0x9a8] sm:$0xff]
    %v374 = vld [vmem:[#allocation5 + $0x9b0] sm:$0xff]
    %v375 = vld [vmem:[#allocation5 + $0x9b8] sm:$0xff]
    %v376 = vld [vmem:[#allocation5 + $0x9c0] sm:$0xff]
    %v377 = vld [vmem:[#allocation5 + $0x9c8] sm:$0xff]
    %v378 = vld [vmem:[#allocation5 + $0x9d0] sm:$0xff]
    %v379 = vld [vmem:[#allocation5 + $0x9d8] sm:$0xff]
    %v380 = vld [vmem:[#allocation5 + $0x9e0] sm:$0xff]
    %v381 = vld [vmem:[#allocation5 + $0x9e8] sm:$0xff]
    %v382 = vld [vmem:[#allocation5 + $0x9f0] sm:$0xff]
    %v383 = vld [vmem:[#allocation5 + $0x9f8] sm:$0xff]
    %v384 = vld [vmem:[#allocation5 + $0xa00] sm:$0xff]
    %v385 = vld [vmem:[#allocation5 + $0xa08] sm:$0xff]
    %v386 = vld [vmem:[#allocation5 + $0xa10] sm:$0xff]
    %v387 = vld [vmem:[#allocation5 + $0xa18] sm:$0xff]
    %v388 = vld [vmem:[#allocation5 + $0xa20] sm:$0xff]
    %v389 = vld [vmem:[#allocation5 + $0xa28] sm:$0xff]
    %v390 = vld [vmem:[#allocation5 + $0xa30] sm:$0xff]
    %v391 = vld [vmem:[#allocation5 + $0xa38] sm:$0xff]
    %v392 = vld [vmem:[#allocation5 + $0xa40] sm:$0xff]
    %v393 = vld [vmem:[#allocation5 + $0xa48] sm:$0xff]
    %v394 = vld [vmem:[#allocation5 + $0xa50] sm:$0xff]
    %v395 = vld [vmem:[#allocation5 + $0xa58] sm:$0xff]
    %v396 = vld [vmem:[#allocation5 + $0xa60] sm:$0xff]
    %v397 = vld [vmem:[#allocation5 + $0xa68] sm:$0xff]
    %v398 = vld [vmem:[#allocation5 + $0xa70] sm:$0xff]
    %v399 = vld [vmem:[#allocation5 + $0xa78] sm:$0xff]
    %v400 = vld [vmem:[#allocation5 + $0xa80] sm:$0xff]
    %v401 = vld [vmem:[#allocation5 + $0xa88] sm:$0xff]
    %v402 = vld [vmem:[#allocation5 + $0xa90] sm:$0xff]
    %v403 = vld [vmem:[#allocation5 + $0xa98] sm:$0xff]
    %v404 = vld [vmem:[#allocation5 + $0xaa0] sm:$0xff]
    %v405 = vld [vmem:[#allocation5 + $0xaa8] sm:$0xff]
    %v406 = vld [vmem:[#allocation5 + $0xab0] sm:$0xff]
    %v407 = vld [vmem:[#allocation5 + $0xab8] sm:$0xff]
    %v408 = vld [vmem:[#allocation5 + $0xac0] sm:$0xff]
    %v409 = vld [vmem:[#allocation5 + $0xac8] sm:$0xff]
    %v410 = vld [vmem:[#allocation5 + $0xad0] sm:$0xff]
    %v411 = vld [vmem:[#allocation5 + $0xad8] sm:$0xff]
    %v412 = vld [vmem:[#allocation5 + $0xae0] sm:$0xff]
    %v413 = vld [vmem:[#allocation5 + $0xae8] sm:$0xff]
    %v414 = vld [vmem:[#allocation5 + $0xaf0] sm:$0xff]
    %v415 = vld [vmem:[#allocation5 + $0xaf8] sm:$0xff]
    %v416 = vld [vmem:[#allocation5 + $0xb00] sm:$0xff]
    %v417 = vld [vmem:[#allocation5 + $0xb08] sm:$0xff]
    %v418 = vld [vmem:[#allocation5 + $0xb10] sm:$0xff]
    %v419 = vld [vmem:[#allocation5 + $0xb18] sm:$0xff]
    %v420 = vld [vmem:[#allocation5 + $0xb20] sm:$0xff]
    %v421 = vld [vmem:[#allocation5 + $0xb28] sm:$0xff]
    %v422 = vld [vmem:[#allocation5 + $0xb30] sm:$0xff]
    %v423 = vld [vmem:[#allocation5 + $0xb38] sm:$0xff]
    %v424 = vld [vmem:[#allocation5 + $0xb40] sm:$0xff]
    %v425 = vld [vmem:[#allocation5 + $0xb48] sm:$0xff]
    %v426 = vld [vmem:[#allocation5 + $0xb50] sm:$0xff]
    %v427 = vld [vmem:[#allocation5 + $0xb58] sm:$0xff]
    %v428 = vld [vmem:[#allocation5 + $0xb60] sm:$0xff]
    %v429 = vld [vmem:[#allocation5 + $0xb68] sm:$0xff]
    %v430 = vld [vmem:[#allocation5 + $0xb70] sm:$0xff]
    %v431 = vld [vmem:[#allocation5 + $0xb78] sm:$0xff]
    %v432 = vld [vmem:[#allocation5 + $0xb80] sm:$0xff]
    %v433 = vld [vmem:[#allocation5 + $0xb88] sm:$0xff]
    %v434 = vld [vmem:[#allocation5 + $0xb90] sm:$0xff]
    %v435 = vld [vmem:[#allocation5 + $0xb98] sm:$0xff]
    %v436 = vld [vmem:[#allocation5 + $0xba0] sm:$0xff]
    %v437 = vld [vmem:[#allocation5 + $0xba8] sm:$0xff]
    %v438 = vld [vmem:[#allocation5 + $0xbb0] sm:$0xff]
    %v439 = vld [vmem:[#allocation5 + $0xbb8] sm:$0xff]
    %v440 = vld [vmem:[#allocation5 + $0xbc0] sm:$0xff]
    %v441 = vld [vmem:[#allocation5 + $0xbc8] sm:$0xff]
    %v442 = vld [vmem:[#allocation5 + $0xbd0] sm:$0xff]
    %v443 = vld [vmem:[#allocation5 + $0xbd8] sm:$0xff]
    %v444 = vld [vmem:[#allocation5 + $0xbe0] sm:$0xff]
    %v445 = vld [vmem:[#allocation5 + $0xbe8] sm:$0xff]
    %v446 = vld [vmem:[#allocation5 + $0xbf0] sm:$0xff]
    %v447 = vld [vmem:[#allocation5 + $0xbf8] sm:$0xff]
    %v448 = vld [vmem:[#allocation5 + $0xc00] sm:$0xff]
    %v449 = vld [vmem:[#allocation5 + $0xc08] sm:$0xff]
    %v450 = vld [vmem:[#allocation5 + $0xc10] sm:$0xff]
    %v451 = vld [vmem:[#allocation5 + $0xc18] sm:$0xff]
    %v452 = vld [vmem:[#allocation5 + $0xc20] sm:$0xff]
    %v453 = vld [vmem:[#allocation5 + $0xc28] sm:$0xff]
    %v454 = vld [vmem:[#allocation5 + $0xc30] sm:$0xff]
    %v455 = vld [vmem:[#allocation5 + $0xc38] sm:$0xff]
    %v456 = vld [vmem:[#allocation5 + $0xc40] sm:$0xff]
    %v457 = vld [vmem:[#allocation5 + $0xc48] sm:$0xff]
    %v458 = vld [vmem:[#allocation5 + $0xc50] sm:$0xff]
    %v459 = vld [vmem:[#allocation5 + $0xc58] sm:$0xff]
    %v460 = vld [vmem:[#allocation5 + $0xc60] sm:$0xff]
    %v461 = vld [vmem:[#allocation5 + $0xc68] sm:$0xff]
    %v462 = vld [vmem:[#allocation5 + $0xc70] sm:$0xff]
    %v463 = vld [vmem:[#allocation5 + $0xc78] sm:$0xff]
    %v464 = vld [vmem:[#allocation5 + $0xc80] sm:$0xff]
    %v465 = vld [vmem:[#allocation5 + $0xc88] sm:$0xff]
    %v466 = vld [vmem:[#allocation5 + $0xc90] sm:$0xff]
    %v467 = vld [vmem:[#allocation5 + $0xc98] sm:$0xff]
    %v468 = vld [vmem:[#allocation5 + $0xca0] sm:$0xff]
    %v469 = vld [vmem:[#allocation5 + $0xca8] sm:$0xff]
    %v470 = vld [vmem:[#allocation5 + $0xcb0] sm:$0xff]
    %v471 = vld [vmem:[#allocation5 + $0xcb8] sm:$0xff]
    %v472 = vld [vmem:[#allocation5 + $0xcc0] sm:$0xff]
    %v473 = vld [vmem:[#allocation5 + $0xcc8] sm:$0xff]
    %v474 = vld [vmem:[#allocation5 + $0xcd0] sm:$0xff]
    %v475 = vld [vmem:[#allocation5 + $0xcd8] sm:$0xff]
    %v476 = vld [vmem:[#allocation5 + $0xce0] sm:$0xff]
    %v477 = vld [vmem:[#allocation5 + $0xce8] sm:$0xff]
    %v478 = vld [vmem:[#allocation5 + $0xcf0] sm:$0xff]
    %v479 = vld [vmem:[#allocation5 + $0xcf8] sm:$0xff]
    %v480 = vld [vmem:[#allocation5 + $0xd00] sm:$0xff]
    %v481 = vld [vmem:[#allocation5 + $0xd08] sm:$0xff]
    %v482 = vld [vmem:[#allocation5 + $0xd10] sm:$0xff]
    %v483 = vld [vmem:[#allocation5 + $0xd18] sm:$0xff]
    %v484 = vld [vmem:[#allocation5 + $0xd20] sm:$0xff]
    %v485 = vld [vmem:[#allocation5 + $0xd28] sm:$0xff]
    %v486 = vld [vmem:[#allocation5 + $0xd30] sm:$0xff]
    %v487 = vld [vmem:[#allocation5 + $0xd38] sm:$0xff]
    %v488 = vld [vmem:[#allocation5 + $0xd40] sm:$0xff]
    %v489 = vld [vmem:[#allocation5 + $0xd48] sm:$0xff]
    %v490 = vld [vmem:[#allocation5 + $0xd50] sm:$0xff]
    %v491 = vld [vmem:[#allocation5 + $0xd58] sm:$0xff]
    %v492 = vld [vmem:[#allocation5 + $0xd60] sm:$0xff]
    %v493 = vld [vmem:[#allocation5 + $0xd68] sm:$0xff]
    %v494 = vld [vmem:[#allocation5 + $0xd70] sm:$0xff]
    %v495 = vld [vmem:[#allocation5 + $0xd78] sm:$0xff]
    %v496 = vld [vmem:[#allocation5 + $0xd80] sm:$0xff]
    %v497 = vld [vmem:[#allocation5 + $0xd88] sm:$0xff]
    %v498 = vld [vmem:[#allocation5 + $0xd90] sm:$0xff]
    %v499 = vld [vmem:[#allocation5 + $0xd98] sm:$0xff]
    %v500 = vld [vmem:[#allocation5 + $0xda0] sm:$0xff]
    %v501 = vld [vmem:[#allocation5 + $0xda8] sm:$0xff]
    %v502 = vld [vmem:[#allocation5 + $0xdb0] sm:$0xff]
    %v503 = vld [vmem:[#allocation5 + $0xdb8] sm:$0xff]
    %v504 = vld [vmem:[#allocation5 + $0xdc0] sm:$0xff]
    %v505 = vld [vmem:[#allocation5 + $0xdc8] sm:$0xff]
    %v506 = vld [vmem:[#allocation5 + $0xdd0] sm:$0xff]
    %v507 = vld [vmem:[#allocation5 + $0xdd8] sm:$0xff]
    %v508 = vld [vmem:[#allocation5 + $0xde0] sm:$0xff]
    %v509 = vld [vmem:[#allocation5 + $0xde8] sm:$0xff]
    %v510 = vld [vmem:[#allocation5 + $0xdf0] sm:$0xff]
    %v511 = vld [vmem:[#allocation5 + $0xdf8] sm:$0xff]
    %v512 = vld [vmem:[#allocation5 + $0xe00] sm:$0xff]
    %v513 = vld [vmem:[#allocation5 + $0xe08] sm:$0xff]
    %v514 = vld [vmem:[#allocation5 + $0xe10] sm:$0xff]
    %v515 = vld [vmem:[#allocation5 + $0xe18] sm:$0xff]
    %v516 = vld [vmem:[#allocation5 + $0xe20] sm:$0xff]
    %v517 = vld [vmem:[#allocation5 + $0xe28] sm:$0xff]
    %v518 = vld [vmem:[#allocation5 + $0xe30] sm:$0xff]
    %v519 = vld [vmem:[#allocation5 + $0xe38] sm:$0xff]
    %v520 = vld [vmem:[#allocation5 + $0xe40] sm:$0xff]
    %v521 = vld [vmem:[#allocation5 + $0xe48] sm:$0xff]
    %v522 = vld [vmem:[#allocation5 + $0xe50] sm:$0xff]
    %v523 = vld [vmem:[#allocation5 + $0xe58] sm:$0xff]
    %v524 = vld [vmem:[#allocation5 + $0xe60] sm:$0xff]
    %v525 = vld [vmem:[#allocation5 + $0xe68] sm:$0xff]
    %v526 = vld [vmem:[#allocation5 + $0xe70] sm:$0xff]
    %v527 = vld [vmem:[#allocation5 + $0xe78] sm:$0xff]
    %v528 = vld [vmem:[#allocation5 + $0xe80] sm:$0xff]
    %v529 = vld [vmem:[#allocation5 + $0xe88] sm:$0xff]
    %v530 = vld [vmem:[#allocation5 + $0xe90] sm:$0xff]
    %v531 = vld [vmem:[#allocation5 + $0xe98] sm:$0xff]
    %v532 = vld [vmem:[#allocation5 + $0xea0] sm:$0xff]
    %v533 = vld [vmem:[#allocation5 + $0xea8] sm:$0xff]
    %v534 = vld [vmem:[#allocation5 + $0xeb0] sm:$0xff]
    %v535 = vld [vmem:[#allocation5 + $0xeb8] sm:$0xff]
    %v536 = vld [vmem:[#allocation5 + $0xec0] sm:$0xff]
    %v537 = vld [vmem:[#allocation5 + $0xec8] sm:$0xff]
    %v538 = vld [vmem:[#allocation5 + $0xed0] sm:$0xff]
    %v539 = vld [vmem:[#allocation5 + $0xed8] sm:$0xff]
    %v540 = vld [vmem:[#allocation5 + $0xee0] sm:$0xff]
    %v541 = vld [vmem:[#allocation5 + $0xee8] sm:$0xff]
    %v542 = vld [vmem:[#allocation5 + $0xef0] sm:$0xff]
    %v543 = vld [vmem:[#allocation5 + $0xef8] sm:$0xff]
    %v544 = vld [vmem:[#allocation5 + $0xf00] sm:$0xff]
    %v545 = vld [vmem:[#allocation5 + $0xf08] sm:$0xff]
    %v546 = vld [vmem:[#allocation5 + $0xf10] sm:$0xff]
    %v547 = vld [vmem:[#allocation5 + $0xf18] sm:$0xff]
    %v548 = vld [vmem:[#allocation5 + $0xf20] sm:$0xff]
    %v549 = vld [vmem:[#allocation5 + $0xf28] sm:$0xff]
    %v550 = vld [vmem:[#allocation5 + $0xf30] sm:$0xff]
    %v551 = vld [vmem:[#allocation5 + $0xf38] sm:$0xff]
    %v552 = vld [vmem:[#allocation5 + $0xf40] sm:$0xff]
    %v553 = vld [vmem:[#allocation5 + $0xf48] sm:$0xff]
    %v554 = vld [vmem:[#allocation5 + $0xf50] sm:$0xff]
    %v555 = vld [vmem:[#allocation5 + $0xf58] sm:$0xff]
    %v556 = vld [vmem:[#allocation5 + $0xf60] sm:$0xff]
    %v557 = vld [vmem:[#allocation5 + $0xf68] sm:$0xff]
    %v558 = vld [vmem:[#allocation5 + $0xf70] sm:$0xff]
    %v559 = vld [vmem:[#allocation5 + $0xf78] sm:$0xff]
    %v560 = vld [vmem:[#allocation5 + $0xf80] sm:$0xff]
    %v561 = vld [vmem:[#allocation5 + $0xf88] sm:$0xff]
    %v562 = vld [vmem:[#allocation5 + $0xf90] sm:$0xff]
    %v563 = vld [vmem:[#allocation5 + $0xf98] sm:$0xff]
    %v564 = vld [vmem:[#allocation5 + $0xfa0] sm:$0xff]
    %v565 = vld [vmem:[#allocation5 + $0xfa8] sm:$0xff]
    %v566 = vld [vmem:[#allocation5 + $0xfb0] sm:$0xff]
    %v567 = vld [vmem:[#allocation5 + $0xfb8] sm:$0xff]
    %v568 = vld [vmem:[#allocation5 + $0xfc0] sm:$0xff]
    %v569 = vld [vmem:[#allocation5 + $0xfc8] sm:$0xff]
    %v570 = vld [vmem:[#allocation5 + $0xfd0] sm:$0xff]
    %v571 = vld [vmem:[#allocation5 + $0xfd8] sm:$0xff]
    %v572 = vld [vmem:[#allocation5 + $0xfe0] sm:$0xff]
    %v573 = vld [vmem:[#allocation5 + $0xfe8] sm:$0xff]
    %v574 = vld [vmem:[#allocation5 + $0xff0] sm:$0xff]
    %v575 = vld [vmem:[#allocation5 + $0xff8] sm:$0xff]
    %v576 = vld [vmem:[#allocation5 + $0x1000] sm:$0xff]
    %v577 = vld [vmem:[#allocation5 + $0x1008] sm:$0xff]
    %v578 = vld [vmem:[#allocation5 + $0x1010] sm:$0xff]
    %v579 = vld [vmem:[#allocation5 + $0x1018] sm:$0xff]
    %v580 = vld [vmem:[#allocation5 + $0x1020] sm:$0xff]
    %v581 = vld [vmem:[#allocation5 + $0x1028] sm:$0xff]
    %v582 = vld [vmem:[#allocation5 + $0x1030] sm:$0xff]
    %v583 = vld [vmem:[#allocation5 + $0x1038] sm:$0xff]
    %v584 = vld [vmem:[#allocation5 + $0x1040] sm:$0xff]
    %v585 = vld [vmem:[#allocation5 + $0x1048] sm:$0xff]
    %v586 = vld [vmem:[#allocation5 + $0x1050] sm:$0xff]
    %v587 = vld [vmem:[#allocation5 + $0x1058] sm:$0xff]
    %v588 = vld [vmem:[#allocation5 + $0x1060] sm:$0xff]
    %v589 = vld [vmem:[#allocation5 + $0x1068] sm:$0xff]
    %v590 = vld [vmem:[#allocation5 + $0x1070] sm:$0xff]
    %v591 = vld [vmem:[#allocation5 + $0x1078] sm:$0xff]
    %v592 = vld [vmem:[#allocation5 + $0x1080] sm:$0xff]
    %v593 = vld [vmem:[#allocation5 + $0x1088] sm:$0xff]
    %v594 = vld [vmem:[#allocation5 + $0x1090] sm:$0xff]
    %v595 = vld [vmem:[#allocation5 + $0x1098] sm:$0xff]
    %v596 = vld [vmem:[#allocation5 + $0x10a0] sm:$0xff]
    %v597 = vld [vmem:[#allocation5 + $0x10a8] sm:$0xff]
    %v598 = vld [vmem:[#allocation5 + $0x10b0] sm:$0xff]
    %v599 = vld [vmem:[#allocation5 + $0x10b8] sm:$0xff]
    %v600 = vld [vmem:[#allocation5 + $0x10c0] sm:$0xff]
    %v601 = vld [vmem:[#allocation5 + $0x10c8] sm:$0xff]
    %v602 = vld [vmem:[#allocation5 + $0x10d0] sm:$0xff]
    %v603 = vld [vmem:[#allocation5 + $0x10d8] sm:$0xff]
    %v604 = vld [vmem:[#allocation5 + $0x10e0] sm:$0xff]
    %v605 = vld [vmem:[#allocation5 + $0x10e8] sm:$0xff]
    %v606 = vld [vmem:[#allocation5 + $0x10f0] sm:$0xff]
    %v607 = vld [vmem:[#allocation5 + $0x10f8] sm:$0xff]
    %v608 = vld [vmem:[#allocation5 + $0x1100] sm:$0xff]
    %v609 = vld [vmem:[#allocation5 + $0x1108] sm:$0xff]
    %v610 = vld [vmem:[#allocation5 + $0x1110] sm:$0xff]
    %v611 = vld [vmem:[#allocation5 + $0x1118] sm:$0xff]
    %v612 = vld [vmem:[#allocation5 + $0x1120] sm:$0xff]
    %v613 = vld [vmem:[#allocation5 + $0x1128] sm:$0xff]
    %v614 = vld [vmem:[#allocation5 + $0x1130] sm:$0xff]
    %v615 = vld [vmem:[#allocation5 + $0x1138] sm:$0xff]
    %v616 = vld [vmem:[#allocation5 + $0x1140] sm:$0xff]
    %v617 = vld [vmem:[#allocation5 + $0x1148] sm:$0xff]
    %v618 = vld [vmem:[#allocation5 + $0x1150] sm:$0xff]
    %v619 = vld [vmem:[#allocation5 + $0x1158] sm:$0xff]
    %v620 = vld [vmem:[#allocation5 + $0x1160] sm:$0xff]
    %v621 = vld [vmem:[#allocation5 + $0x1168] sm:$0xff]
    %v622 = vld [vmem:[#allocation5 + $0x1170] sm:$0xff]
    %v623 = vld [vmem:[#allocation5 + $0x1178] sm:$0xff]
    %v624 = vld [vmem:[#allocation5 + $0x1180] sm:$0xff]
    %v625 = vld [vmem:[#allocation5 + $0x1188] sm:$0xff]
    %v626 = vld [vmem:[#allocation5 + $0x1190] sm:$0xff]
    %v627 = vld [vmem:[#allocation5 + $0x1198] sm:$0xff]
    %v628 = vld [vmem:[#allocation5 + $0x11a0] sm:$0xff]
    %v629 = vld [vmem:[#allocation5 + $0x11a8] sm:$0xff]
    %v630 = vld [vmem:[#allocation5 + $0x11b0] sm:$0xff]
    %v631 = vld [vmem:[#allocation5 + $0x11b8] sm:$0xff]
    %v632 = vld [vmem:[#allocation5 + $0x11c0] sm:$0xff]
    %v633 = vld [vmem:[#allocation5 + $0x11c8] sm:$0xff]
    %v634 = vld [vmem:[#allocation5 + $0x11d0] sm:$0xff]
    %v635 = vld [vmem:[#allocation5 + $0x11d8] sm:$0xff]
    %v636 = vld [vmem:[#allocation5 + $0x11e0] sm:$0xff]
    %v637 = vld [vmem:[#allocation5 + $0x11e8] sm:$0xff]
    %v638 = vld [vmem:[#allocation5 + $0x11f0] sm:$0xff]
    %v639 = vld [vmem:[#allocation5 + $0x11f8] sm:$0xff]
    %v640 = vld [vmem:[#allocation7] sm:$0x3f]
    %v642 = vperm.slane %v640, 0
    %v643 = vperm.slane %v640, 1
    %v644 = vperm.slane %v640, 2
    %v645 = vperm.slane %v640, 3
    %v646 = vperm.slane %v640, 4
    %v647 = vperm.slane %v640, 5
    %654 = vmatpush.msra.mxu0 %v154
    %655 = vmatpush.msra.mxu0 %v148
    %656 = vmatpush.msra.mxu0 %v142
    %657 = vmatpush.msra.mxu0 %v136
    %658 = vmatpush.msra.mxu0 %v130
    %659 = vmatpush.msra.mxu0 %v124
    %660 = vmatpush.msra.mxu0 %v118
    %661 = vmatpush.msra.mxu0 %v112
    %662 = vmatpush.msra.mxu0 %v106
    %663 = vmatpush.msra.mxu0 %v100
    %664 = vmatpush.msra.mxu0 %v94
    %665 = vmatpush.msra.mxu0 %v88
    %666 = vmatpush.msra.mxu0 %v82
    %667 = vmatpush.msra.mxu0 %v76
    %668 = vmatpush.msra.mxu0 %v70
    %669 = vmatpush.msra.mxu0 %v64
    %670 = vmatmul.f32.gmra.mxu0 %v58
    %v671 = vpop.f32.mrf.mxu0
    %v672 = vadd.f32 %v642, %v671
    %673 = vdwg.mxu0
    %674 = vmatpush.msra.mxu0 %v250
    %675 = vmatpush.msra.mxu0 %v244
    %676 = vmatpush.msra.mxu0 %v238
    %677 = vmatpush.msra.mxu0 %v232
    %678 = vmatpush.msra.mxu0 %v226
    %679 = vmatpush.msra.mxu0 %v220
    %680 = vmatpush.msra.mxu0 %v214
    %681 = vmatpush.msra.mxu0 %v208
    %682 = vmatpush.msra.mxu0 %v202
    %683 = vmatpush.msra.mxu0 %v196
    %684 = vmatpush.msra.mxu0 %v190
    %685 = vmatpush.msra.mxu0 %v184
    %686 = vmatpush.msra.mxu0 %v178
    %687 = vmatpush.msra.mxu0 %v172
    %688 = vmatpush.msra.mxu0 %v166
    %689 = vmatpush.msra.mxu0 %v160
    %690 = vmatmul.f32.gmra.mxu0 %v59
    %v691 = vpop.f32.mrf.mxu0
    %v692 = vadd.f32 %v672, %v691
    %693 = vdwg.mxu0
    %694 = vmatpush.msra.mxu0 %v346
    %695 = vmatpush.msra.mxu0 %v340
    %696 = vmatpush.msra.mxu0 %v334
    %697 = vmatpush.msra.mxu0 %v328
    %698 = vmatpush.msra.mxu0 %v322
    %699 = vmatpush.msra.mxu0 %v316
    %700 = vmatpush.msra.mxu0 %v310
    %701 = vmatpush.msra.mxu0 %v304
    %702 = vmatpush.msra.mxu0 %v298
    %703 = vmatpush.msra.mxu0 %v292
    %704 = vmatpush.msra.mxu0 %v286
    %705 = vmatpush.msra.mxu0 %v280
    %706 = vmatpush.msra.mxu0 %v274
    %707 = vmatpush.msra.mxu0 %v268
    %708 = vmatpush.msra.mxu0 %v262
    %709 = vmatpush.msra.mxu0 %v256
    %710 = vmatmul.f32.gmra.mxu0 %v60
    %v711 = vpop.f32.mrf.mxu0
    %v712 = vadd.f32 %v692, %v711
    %713 = vdwg.mxu0
    %714 = vmatpush.msra.mxu0 %v442
    %715 = vmatpush.msra.mxu0 %v436
    %716 = vmatpush.msra.mxu0 %v430
    %717 = vmatpush.msra.mxu0 %v424
    %718 = vmatpush.msra.mxu0 %v418
    %719 = vmatpush.msra.mxu0 %v412
    %720 = vmatpush.msra.mxu0 %v406
    %721 = vmatpush.msra.mxu0 %v400
    %722 = vmatpush.msra.mxu0 %v394
    %723 = vmatpush.msra.mxu0 %v388
    %724 = vmatpush.msra.mxu0 %v382
    %725 = vmatpush.msra.mxu0 %v376
    %726 = vmatpush.msra.mxu0 %v370
    %727 = vmatpush.msra.mxu0 %v364
    %728 = vmatpush.msra.mxu0 %v358
    %729 = vmatpush.msra.mxu0 %v352
    %730 = vmatmul.f32.gmra.mxu0 %v61
    %v731 = vpop.f32.mrf.mxu0
    %v732 = vadd.f32 %v712, %v731
    %733 = vdwg.mxu0
    %734 = vmatpush.msra.mxu0 %v538
    %735 = vmatpush.msra.mxu0 %v532
    %736 = vmatpush.msra.mxu0 %v526
    %737 = vmatpush.msra.mxu0 %v520
    %738 = vmatpush.msra.mxu0 %v514
    %739 = vmatpush.msra.mxu0 %v508
    %740 = vmatpush.msra.mxu0 %v502
    %741 = vmatpush.msra.mxu0 %v496
    %742 = vmatpush.msra.mxu0 %v490
    %743 = vmatpush.msra.mxu0 %v484
    %744 = vmatpush.msra.mxu0 %v478
    %745 = vmatpush.msra.mxu0 %v472
    %746 = vmatpush.msra.mxu0 %v466
    %747 = vmatpush.msra.mxu0 %v460
    %748 = vmatpush.msra.mxu0 %v454
    %749 = vmatpush.msra.mxu0 %v448
    %750 = vmatmul.f32.gmra.mxu0 %v62
    %v751 = vpop.f32.mrf.mxu0
    %v752 = vadd.f32 %v732, %v751
    %753 = vdwg.mxu0
    %754 = vmatpush.msra.mxu0 %v634
    %755 = vmatpush.msra.mxu0 %v628
    %756 = vmatpush.msra.mxu0 %v622
    %757 = vmatpush.msra.mxu0 %v616
    %758 = vmatpush.msra.mxu0 %v610
    %759 = vmatpush.msra.mxu0 %v604
    %760 = vmatpush.msra.mxu0 %v598
    %761 = vmatpush.msra.mxu0 %v592
    %762 = vmatpush.msra.mxu0 %v586
    %763 = vmatpush.msra.mxu0 %v580
    %764 = vmatpush.msra.mxu0 %v574
    %765 = vmatpush.msra.mxu0 %v568
    %766 = vmatpush.msra.mxu0 %v562
    %767 = vmatpush.msra.mxu0 %v556
    %768 = vmatpush.msra.mxu0 %v550
    %769 = vmatpush.msra.mxu0 %v544
    %770 = vmatmul.f32.gmra.mxu0 %v63
    %v771 = vpop.f32.mrf.mxu0
    %v772 = vadd.f32 %v752, %v771
    %773 = vdwg.mxu0
    %774 = vmatpush.msra.mxu0 %v155
    %775 = vmatpush.msra.mxu0 %v149
    %776 = vmatpush.msra.mxu0 %v143
    %777 = vmatpush.msra.mxu0 %v137
    %778 = vmatpush.msra.mxu0 %v131
    %779 = vmatpush.msra.mxu0 %v125
    %780 = vmatpush.msra.mxu0 %v119
    %781 = vmatpush.msra.mxu0 %v113
    %782 = vmatpush.msra.mxu0 %v107
    %783 = vmatpush.msra.mxu0 %v101
    %784 = vmatpush.msra.mxu0 %v95
    %785 = vmatpush.msra.mxu0 %v89
    %786 = vmatpush.msra.mxu0 %v83
    %787 = vmatpush.msra.mxu0 %v77
    %788 = vmatpush.msra.mxu0 %v71
    %789 = vmatpush.msra.mxu0 %v65
    %790 = vmatmul.f32.gmra.mxu0 %v58
    %v791 = vpop.f32.mrf.mxu0
    %v792 = vadd.f32 %v643, %v791
    %793 = vdwg.mxu0
    %794 = vmatpush.msra.mxu0 %v251
    %795 = vmatpush.msra.mxu0 %v245
    %796 = vmatpush.msra.mxu0 %v239
    %797 = vmatpush.msra.mxu0 %v233
    %798 = vmatpush.msra.mxu0 %v227
    %799 = vmatpush.msra.mxu0 %v221
    %800 = vmatpush.msra.mxu0 %v215
    %801 = vmatpush.msra.mxu0 %v209
    %802 = vmatpush.msra.mxu0 %v203
    %803 = vmatpush.msra.mxu0 %v197
    %804 = vmatpush.msra.mxu0 %v191
    %805 = vmatpush.msra.mxu0 %v185
    %806 = vmatpush.msra.mxu0 %v179
    %807 = vmatpush.msra.mxu0 %v173
    %808 = vmatpush.msra.mxu0 %v167
    %809 = vmatpush.msra.mxu0 %v161
    %810 = vmatmul.f32.gmra.mxu0 %v59
    %v811 = vpop.f32.mrf.mxu0
    %v812 = vadd.f32 %v792, %v811
    %813 = vdwg.mxu0
    %814 = vmatpush.msra.mxu0 %v347
    %815 = vmatpush.msra.mxu0 %v341
    %816 = vmatpush.msra.mxu0 %v335
    %817 = vmatpush.msra.mxu0 %v329
    %818 = vmatpush.msra.mxu0 %v323
    %819 = vmatpush.msra.mxu0 %v317
    %820 = vmatpush.msra.mxu0 %v311
    %821 = vmatpush.msra.mxu0 %v305
    %822 = vmatpush.msra.mxu0 %v299
    %823 = vmatpush.msra.mxu0 %v293
    %824 = vmatpush.msra.mxu0 %v287
    %825 = vmatpush.msra.mxu0 %v281
    %826 = vmatpush.msra.mxu0 %v275
    %827 = vmatpush.msra.mxu0 %v269
    %828 = vmatpush.msra.mxu0 %v263
    %829 = vmatpush.msra.mxu0 %v257
    %830 = vmatmul.f32.gmra.mxu0 %v60
    %v831 = vpop.f32.mrf.mxu0
    %v832 = vadd.f32 %v812, %v831
    %833 = vdwg.mxu0
    %834 = vmatpush.msra.mxu0 %v443
    %835 = vmatpush.msra.mxu0 %v437
    %836 = vmatpush.msra.mxu0 %v431
    %837 = vmatpush.msra.mxu0 %v425
    %838 = vmatpush.msra.mxu0 %v419
    %839 = vmatpush.msra.mxu0 %v413
    %840 = vmatpush.msra.mxu0 %v407
    %841 = vmatpush.msra.mxu0 %v401
    %842 = vmatpush.msra.mxu0 %v395
    %843 = vmatpush.msra.mxu0 %v389
    %844 = vmatpush.msra.mxu0 %v383
    %845 = vmatpush.msra.mxu0 %v377
    %846 = vmatpush.msra.mxu0 %v371
    %847 = vmatpush.msra.mxu0 %v365
    %848 = vmatpush.msra.mxu0 %v359
    %849 = vmatpush.msra.mxu0 %v353
    %850 = vmatmul.f32.gmra.mxu0 %v61
    %v851 = vpop.f32.mrf.mxu0
    %v852 = vadd.f32 %v832, %v851
    %853 = vdwg.mxu0
    %854 = vmatpush.msra.mxu0 %v539
    %855 = vmatpush.msra.mxu0 %v533
    %856 = vmatpush.msra.mxu0 %v527
    %857 = vmatpush.msra.mxu0 %v521
    %858 = vmatpush.msra.mxu0 %v515
    %859 = vmatpush.msra.mxu0 %v509
    %860 = vmatpush.msra.mxu0 %v503
    %861 = vmatpush.msra.mxu0 %v497
    %862 = vmatpush.msra.mxu0 %v491
    %863 = vmatpush.msra.mxu0 %v485
    %864 = vmatpush.msra.mxu0 %v479
    %865 = vmatpush.msra.mxu0 %v473
    %866 = vmatpush.msra.mxu0 %v467
    %867 = vmatpush.msra.mxu0 %v461
    %868 = vmatpush.msra.mxu0 %v455
    %869 = vmatpush.msra.mxu0 %v449
    %870 = vmatmul.f32.gmra.mxu0 %v62
    %v871 = vpop.f32.mrf.mxu0
    %v872 = vadd.f32 %v852, %v871
    %873 = vdwg.mxu0
    %874 = vmatpush.msra.mxu0 %v635
    %875 = vmatpush.msra.mxu0 %v629
    %876 = vmatpush.msra.mxu0 %v623
    %877 = vmatpush.msra.mxu0 %v617
    %878 = vmatpush.msra.mxu0 %v611
    %879 = vmatpush.msra.mxu0 %v605
    %880 = vmatpush.msra.mxu0 %v599
    %881 = vmatpush.msra.mxu0 %v593
    %882 = vmatpush.msra.mxu0 %v587
    %883 = vmatpush.msra.mxu0 %v581
    %884 = vmatpush.msra.mxu0 %v575
    %885 = vmatpush.msra.mxu0 %v569
    %886 = vmatpush.msra.mxu0 %v563
    %887 = vmatpush.msra.mxu0 %v557
    %888 = vmatpush.msra.mxu0 %v551
    %889 = vmatpush.msra.mxu0 %v545
    %890 = vmatmul.f32.gmra.mxu0 %v63
    %v891 = vpop.f32.mrf.mxu0
    %v892 = vadd.f32 %v872, %v891
    %893 = vdwg.mxu0
    %894 = vmatpush.msra.mxu0 %v156
    %895 = vmatpush.msra.mxu0 %v150
    %896 = vmatpush.msra.mxu0 %v144
    %897 = vmatpush.msra.mxu0 %v138
    %898 = vmatpush.msra.mxu0 %v132
    %899 = vmatpush.msra.mxu0 %v126
    %900 = vmatpush.msra.mxu0 %v120
    %901 = vmatpush.msra.mxu0 %v114
    %902 = vmatpush.msra.mxu0 %v108
    %903 = vmatpush.msra.mxu0 %v102
    %904 = vmatpush.msra.mxu0 %v96
    %905 = vmatpush.msra.mxu0 %v90
    %906 = vmatpush.msra.mxu0 %v84
    %907 = vmatpush.msra.mxu0 %v78
    %908 = vmatpush.msra.mxu0 %v72
    %909 = vmatpush.msra.mxu0 %v66
    %910 = vmatmul.f32.gmra.mxu0 %v58
    %v911 = vpop.f32.mrf.mxu0
    %v912 = vadd.f32 %v644, %v911
    %913 = vdwg.mxu0
    %914 = vmatpush.msra.mxu0 %v252
    %915 = vmatpush.msra.mxu0 %v246
    %916 = vmatpush.msra.mxu0 %v240
    %917 = vmatpush.msra.mxu0 %v234
    %918 = vmatpush.msra.mxu0 %v228
    %919 = vmatpush.msra.mxu0 %v222
    %920 = vmatpush.msra.mxu0 %v216
    %921 = vmatpush.msra.mxu0 %v210
    %922 = vmatpush.msra.mxu0 %v204
    %923 = vmatpush.msra.mxu0 %v198
    %924 = vmatpush.msra.mxu0 %v192
    %925 = vmatpush.msra.mxu0 %v186
    %926 = vmatpush.msra.mxu0 %v180
    %927 = vmatpush.msra.mxu0 %v174
    %928 = vmatpush.msra.mxu0 %v168
    %929 = vmatpush.msra.mxu0 %v162
    %930 = vmatmul.f32.gmra.mxu0 %v59
    %v931 = vpop.f32.mrf.mxu0
    %v932 = vadd.f32 %v912, %v931
    %933 = vdwg.mxu0
    %934 = vmatpush.msra.mxu0 %v348
    %935 = vmatpush.msra.mxu0 %v342
    %936 = vmatpush.msra.mxu0 %v336
    %937 = vmatpush.msra.mxu0 %v330
    %938 = vmatpush.msra.mxu0 %v324
    %939 = vmatpush.msra.mxu0 %v318
    %940 = vmatpush.msra.mxu0 %v312
    %941 = vmatpush.msra.mxu0 %v306
    %942 = vmatpush.msra.mxu0 %v300
    %943 = vmatpush.msra.mxu0 %v294
    %944 = vmatpush.msra.mxu0 %v288
    %945 = vmatpush.msra.mxu0 %v282
    %946 = vmatpush.msra.mxu0 %v276
    %947 = vmatpush.msra.mxu0 %v270
    %948 = vmatpush.msra.mxu0 %v264
    %949 = vmatpush.msra.mxu0 %v258
    %950 = vmatmul.f32.gmra.mxu0 %v60
    %v951 = vpop.f32.mrf.mxu0
    %v952 = vadd.f32 %v932, %v951
    %953 = vdwg.mxu0
    %954 = vmatpush.msra.mxu0 %v444
    %955 = vmatpush.msra.mxu0 %v438
    %956 = vmatpush.msra.mxu0 %v432
    %957 = vmatpush.msra.mxu0 %v426
    %958 = vmatpush.msra.mxu0 %v420
    %959 = vmatpush.msra.mxu0 %v414
    %960 = vmatpush.msra.mxu0 %v408
    %961 = vmatpush.msra.mxu0 %v402
    %962 = vmatpush.msra.mxu0 %v396
    %963 = vmatpush.msra.mxu0 %v390
    %964 = vmatpush.msra.mxu0 %v384
    %965 = vmatpush.msra.mxu0 %v378
    %966 = vmatpush.msra.mxu0 %v372
    %967 = vmatpush.msra.mxu0 %v366
    %968 = vmatpush.msra.mxu0 %v360
    %969 = vmatpush.msra.mxu0 %v354
    %970 = vmatmul.f32.gmra.mxu0 %v61
    %v971 = vpop.f32.mrf.mxu0
    %v972 = vadd.f32 %v952, %v971
    %973 = vdwg.mxu0
    %974 = vmatpush.msra.mxu0 %v540
    %975 = vmatpush.msra.mxu0 %v534
    %976 = vmatpush.msra.mxu0 %v528
    %977 = vmatpush.msra.mxu0 %v522
    %978 = vmatpush.msra.mxu0 %v516
    %979 = vmatpush.msra.mxu0 %v510
    %980 = vmatpush.msra.mxu0 %v504
    %981 = vmatpush.msra.mxu0 %v498
    %982 = vmatpush.msra.mxu0 %v492
    %983 = vmatpush.msra.mxu0 %v486
    %984 = vmatpush.msra.mxu0 %v480
    %985 = vmatpush.msra.mxu0 %v474
    %986 = vmatpush.msra.mxu0 %v468
    %987 = vmatpush.msra.mxu0 %v462
    %988 = vmatpush.msra.mxu0 %v456
    %989 = vmatpush.msra.mxu0 %v450
    %990 = vmatmul.f32.gmra.mxu0 %v62
    %v991 = vpop.f32.mrf.mxu0
    %v992 = vadd.f32 %v972, %v991
    %993 = vdwg.mxu0
    %994 = vmatpush.msra.mxu0 %v636
    %995 = vmatpush.msra.mxu0 %v630
    %996 = vmatpush.msra.mxu0 %v624
    %997 = vmatpush.msra.mxu0 %v618
    %998 = vmatpush.msra.mxu0 %v612
    %999 = vmatpush.msra.mxu0 %v606
    %1000 = vmatpush.msra.mxu0 %v600
    %1001 = vmatpush.msra.mxu0 %v594
    %1002 = vmatpush.msra.mxu0 %v588
    %1003 = vmatpush.msra.mxu0 %v582
    %1004 = vmatpush.msra.mxu0 %v576
    %1005 = vmatpush.msra.mxu0 %v570
    %1006 = vmatpush.msra.mxu0 %v564
    %1007 = vmatpush.msra.mxu0 %v558
    %1008 = vmatpush.msra.mxu0 %v552
    %1009 = vmatpush.msra.mxu0 %v546
    %1010 = vmatmul.f32.gmra.mxu0 %v63
    %v1011 = vpop.f32.mrf.mxu0
    %v1012 = vadd.f32 %v992, %v1011
    %1013 = vdwg.mxu0
    %1014 = vmatpush.msra.mxu0 %v157
    %1015 = vmatpush.msra.mxu0 %v151
    %1016 = vmatpush.msra.mxu0 %v145
    %1017 = vmatpush.msra.mxu0 %v139
    %1018 = vmatpush.msra.mxu0 %v133
    %1019 = vmatpush.msra.mxu0 %v127
    %1020 = vmatpush.msra.mxu0 %v121
    %1021 = vmatpush.msra.mxu0 %v115
    %1022 = vmatpush.msra.mxu0 %v109
    %1023 = vmatpush.msra.mxu0 %v103
    %1024 = vmatpush.msra.mxu0 %v97
    %1025 = vmatpush.msra.mxu0 %v91
    %1026 = vmatpush.msra.mxu0 %v85
    %1027 = vmatpush.msra.mxu0 %v79
    %1028 = vmatpush.msra.mxu0 %v73
    %1029 = vmatpush.msra.mxu0 %v67
    %1030 = vmatmul.f32.gmra.mxu0 %v58
    %v1031 = vpop.f32.mrf.mxu0
    %v1032 = vadd.f32 %v645, %v1031
    %1033 = vdwg.mxu0
    %1034 = vmatpush.msra.mxu0 %v253
    %1035 = vmatpush.msra.mxu0 %v247
    %1036 = vmatpush.msra.mxu0 %v241
    %1037 = vmatpush.msra.mxu0 %v235
    %1038 = vmatpush.msra.mxu0 %v229
    %1039 = vmatpush.msra.mxu0 %v223
    %1040 = vmatpush.msra.mxu0 %v217
    %1041 = vmatpush.msra.mxu0 %v211
    %1042 = vmatpush.msra.mxu0 %v205
    %1043 = vmatpush.msra.mxu0 %v199
    %1044 = vmatpush.msra.mxu0 %v193
    %1045 = vmatpush.msra.mxu0 %v187
    %1046 = vmatpush.msra.mxu0 %v181
    %1047 = vmatpush.msra.mxu0 %v175
    %1048 = vmatpush.msra.mxu0 %v169
    %1049 = vmatpush.msra.mxu0 %v163
    %1050 = vmatmul.f32.gmra.mxu0 %v59
    %v1051 = vpop.f32.mrf.mxu0
    %v1052 = vadd.f32 %v1032, %v1051
    %1053 = vdwg.mxu0
    %1054 = vmatpush.msra.mxu0 %v349
    %1055 = vmatpush.msra.mxu0 %v343
    %1056 = vmatpush.msra.mxu0 %v337
    %1057 = vmatpush.msra.mxu0 %v331
    %1058 = vmatpush.msra.mxu0 %v325
    %1059 = vmatpush.msra.mxu0 %v319
    %1060 = vmatpush.msra.mxu0 %v313
    %1061 = vmatpush.msra.mxu0 %v307
    %1062 = vmatpush.msra.mxu0 %v301
    %1063 = vmatpush.msra.mxu0 %v295
    %1064 = vmatpush.msra.mxu0 %v289
    %1065 = vmatpush.msra.mxu0 %v283
    %1066 = vmatpush.msra.mxu0 %v277
    %1067 = vmatpush.msra.mxu0 %v271
    %1068 = vmatpush.msra.mxu0 %v265
    %1069 = vmatpush.msra.mxu0 %v259
    %1070 = vmatmul.f32.gmra.mxu0 %v60
    %v1071 = vpop.f32.mrf.mxu0
    %v1072 = vadd.f32 %v1052, %v1071
    %1073 = vdwg.mxu0
    %1074 = vmatpush.msra.mxu0 %v445
    %1075 = vmatpush.msra.mxu0 %v439
    %1076 = vmatpush.msra.mxu0 %v433
    %1077 = vmatpush.msra.mxu0 %v427
    %1078 = vmatpush.msra.mxu0 %v421
    %1079 = vmatpush.msra.mxu0 %v415
    %1080 = vmatpush.msra.mxu0 %v409
    %1081 = vmatpush.msra.mxu0 %v403
    %1082 = vmatpush.msra.mxu0 %v397
    %1083 = vmatpush.msra.mxu0 %v391
    %1084 = vmatpush.msra.mxu0 %v385
    %1085 = vmatpush.msra.mxu0 %v379
    %1086 = vmatpush.msra.mxu0 %v373
    %1087 = vmatpush.msra.mxu0 %v367
    %1088 = vmatpush.msra.mxu0 %v361
    %1089 = vmatpush.msra.mxu0 %v355
    %1090 = vmatmul.f32.gmra.mxu0 %v61
    %v1091 = vpop.f32.mrf.mxu0
    %v1092 = vadd.f32 %v1072, %v1091
    %1093 = vdwg.mxu0
    %1094 = vmatpush.msra.mxu0 %v541
    %1095 = vmatpush.msra.mxu0 %v535
    %1096 = vmatpush.msra.mxu0 %v529
    %1097 = vmatpush.msra.mxu0 %v523
    %1098 = vmatpush.msra.mxu0 %v517
    %1099 = vmatpush.msra.mxu0 %v511
    %1100 = vmatpush.msra.mxu0 %v505
    %1101 = vmatpush.msra.mxu0 %v499
    %1102 = vmatpush.msra.mxu0 %v493
    %1103 = vmatpush.msra.mxu0 %v487
    %1104 = vmatpush.msra.mxu0 %v481
    %1105 = vmatpush.msra.mxu0 %v475
    %1106 = vmatpush.msra.mxu0 %v469
    %1107 = vmatpush.msra.mxu0 %v463
    %1108 = vmatpush.msra.mxu0 %v457
    %1109 = vmatpush.msra.mxu0 %v451
    %1110 = vmatmul.f32.gmra.mxu0 %v62
    %v1111 = vpop.f32.mrf.mxu0
    %v1112 = vadd.f32 %v1092, %v1111
    %1113 = vdwg.mxu0
    %1114 = vmatpush.msra.mxu0 %v637
    %1115 = vmatpush.msra.mxu0 %v631
    %1116 = vmatpush.msra.mxu0 %v625
    %1117 = vmatpush.msra.mxu0 %v619
    %1118 = vmatpush.msra.mxu0 %v613
    %1119 = vmatpush.msra.mxu0 %v607
    %1120 = vmatpush.msra.mxu0 %v601
    %1121 = vmatpush.msra.mxu0 %v595
    %1122 = vmatpush.msra.mxu0 %v589
    %1123 = vmatpush.msra.mxu0 %v583
    %1124 = vmatpush.msra.mxu0 %v577
    %1125 = vmatpush.msra.mxu0 %v571
    %1126 = vmatpush.msra.mxu0 %v565
    %1127 = vmatpush.msra.mxu0 %v559
    %1128 = vmatpush.msra.mxu0 %v553
    %1129 = vmatpush.msra.mxu0 %v547
    %1130 = vmatmul.f32.gmra.mxu0 %v63
    %v1131 = vpop.f32.mrf.mxu0
    %v1132 = vadd.f32 %v1112, %v1131
    %1133 = vdwg.mxu0
    %1134 = vmatpush.msra.mxu0 %v158
    %1135 = vmatpush.msra.mxu0 %v152
    %1136 = vmatpush.msra.mxu0 %v146
    %1137 = vmatpush.msra.mxu0 %v140
    %1138 = vmatpush.msra.mxu0 %v134
    %1139 = vmatpush.msra.mxu0 %v128
    %1140 = vmatpush.msra.mxu0 %v122
    %1141 = vmatpush.msra.mxu0 %v116
    %1142 = vmatpush.msra.mxu0 %v110
    %1143 = vmatpush.msra.mxu0 %v104
    %1144 = vmatpush.msra.mxu0 %v98
    %1145 = vmatpush.msra.mxu0 %v92
    %1146 = vmatpush.msra.mxu0 %v86
    %1147 = vmatpush.msra.mxu0 %v80
    %1148 = vmatpush.msra.mxu0 %v74
    %1149 = vmatpush.msra.mxu0 %v68
    %1150 = vmatmul.f32.gmra.mxu0 %v58
    %v1151 = vpop.f32.mrf.mxu0
    %v1152 = vadd.f32 %v646, %v1151
    %1153 = vdwg.mxu0
    %1154 = vmatpush.msra.mxu0 %v254
    %1155 = vmatpush.msra.mxu0 %v248
    %1156 = vmatpush.msra.mxu0 %v242
    %1157 = vmatpush.msra.mxu0 %v236
    %1158 = vmatpush.msra.mxu0 %v230
    %1159 = vmatpush.msra.mxu0 %v224
    %1160 = vmatpush.msra.mxu0 %v218
    %1161 = vmatpush.msra.mxu0 %v212
    %1162 = vmatpush.msra.mxu0 %v206
    %1163 = vmatpush.msra.mxu0 %v200
    %1164 = vmatpush.msra.mxu0 %v194
    %1165 = vmatpush.msra.mxu0 %v188
    %1166 = vmatpush.msra.mxu0 %v182
    %1167 = vmatpush.msra.mxu0 %v176
    %1168 = vmatpush.msra.mxu0 %v170
    %1169 = vmatpush.msra.mxu0 %v164
    %1170 = vmatmul.f32.gmra.mxu0 %v59
    %v1171 = vpop.f32.mrf.mxu0
    %v1172 = vadd.f32 %v1152, %v1171
    %1173 = vdwg.mxu0
    %1174 = vmatpush.msra.mxu0 %v350
    %1175 = vmatpush.msra.mxu0 %v344
    %1176 = vmatpush.msra.mxu0 %v338
    %1177 = vmatpush.msra.mxu0 %v332
    %1178 = vmatpush.msra.mxu0 %v326
    %1179 = vmatpush.msra.mxu0 %v320
    %1180 = vmatpush.msra.mxu0 %v314
    %1181 = vmatpush.msra.mxu0 %v308
    %1182 = vmatpush.msra.mxu0 %v302
    %1183 = vmatpush.msra.mxu0 %v296
    %1184 = vmatpush.msra.mxu0 %v290
    %1185 = vmatpush.msra.mxu0 %v284
    %1186 = vmatpush.msra.mxu0 %v278
    %1187 = vmatpush.msra.mxu0 %v272
    %1188 = vmatpush.msra.mxu0 %v266
    %1189 = vmatpush.msra.mxu0 %v260
    %1190 = vmatmul.f32.gmra.mxu0 %v60
    %v1191 = vpop.f32.mrf.mxu0
    %v1192 = vadd.f32 %v1172, %v1191
    %1193 = vdwg.mxu0
    %1194 = vmatpush.msra.mxu0 %v446
    %1195 = vmatpush.msra.mxu0 %v440
    %1196 = vmatpush.msra.mxu0 %v434
    %1197 = vmatpush.msra.mxu0 %v428
    %1198 = vmatpush.msra.mxu0 %v422
    %1199 = vmatpush.msra.mxu0 %v416
    %1200 = vmatpush.msra.mxu0 %v410
    %1201 = vmatpush.msra.mxu0 %v404
    %1202 = vmatpush.msra.mxu0 %v398
    %1203 = vmatpush.msra.mxu0 %v392
    %1204 = vmatpush.msra.mxu0 %v386
    %1205 = vmatpush.msra.mxu0 %v380
    %1206 = vmatpush.msra.mxu0 %v374
    %1207 = vmatpush.msra.mxu0 %v368
    %1208 = vmatpush.msra.mxu0 %v362
    %1209 = vmatpush.msra.mxu0 %v356
    %1210 = vmatmul.f32.gmra.mxu0 %v61
    %v1211 = vpop.f32.mrf.mxu0
    %v1212 = vadd.f32 %v1192, %v1211
    %1213 = vdwg.mxu0
    %1214 = vmatpush.msra.mxu0 %v542
    %1215 = vmatpush.msra.mxu0 %v536
    %1216 = vmatpush.msra.mxu0 %v530
    %1217 = vmatpush.msra.mxu0 %v524
    %1218 = vmatpush.msra.mxu0 %v518
    %1219 = vmatpush.msra.mxu0 %v512
    %1220 = vmatpush.msra.mxu0 %v506
    %1221 = vmatpush.msra.mxu0 %v500
    %1222 = vmatpush.msra.mxu0 %v494
    %1223 = vmatpush.msra.mxu0 %v488
    %1224 = vmatpush.msra.mxu0 %v482
    %1225 = vmatpush.msra.mxu0 %v476
    %1226 = vmatpush.msra.mxu0 %v470
    %1227 = vmatpush.msra.mxu0 %v464
    %1228 = vmatpush.msra.mxu0 %v458
    %1229 = vmatpush.msra.mxu0 %v452
    %1230 = vmatmul.f32.gmra.mxu0 %v62
    %v1231 = vpop.f32.mrf.mxu0
    %v1232 = vadd.f32 %v1212, %v1231
    %1233 = vdwg.mxu0
    %1234 = vmatpush.msra.mxu0 %v638
    %1235 = vmatpush.msra.mxu0 %v632
    %1236 = vmatpush.msra.mxu0 %v626
    %1237 = vmatpush.msra.mxu0 %v620
    %1238 = vmatpush.msra.mxu0 %v614
    %1239 = vmatpush.msra.mxu0 %v608
    %1240 = vmatpush.msra.mxu0 %v602
    %1241 = vmatpush.msra.mxu0 %v596
    %1242 = vmatpush.msra.mxu0 %v590
    %1243 = vmatpush.msra.mxu0 %v584
    %1244 = vmatpush.msra.mxu0 %v578
    %1245 = vmatpush.msra.mxu0 %v572
    %1246 = vmatpush.msra.mxu0 %v566
    %1247 = vmatpush.msra.mxu0 %v560
    %1248 = vmatpush.msra.mxu0 %v554
    %1249 = vmatpush.msra.mxu0 %v548
    %1250 = vmatmul.f32.gmra.mxu0 %v63
    %v1251 = vpop.f32.mrf.mxu0
    %v1252 = vadd.f32 %v1232, %v1251
    %1253 = vdwg.mxu0
    %1254 = vmatpush.msra.mxu0 %v159
    %1255 = vmatpush.msra.mxu0 %v153
    %1256 = vmatpush.msra.mxu0 %v147
    %1257 = vmatpush.msra.mxu0 %v141
    %1258 = vmatpush.msra.mxu0 %v135
    %1259 = vmatpush.msra.mxu0 %v129
    %1260 = vmatpush.msra.mxu0 %v123
    %1261 = vmatpush.msra.mxu0 %v117
    %1262 = vmatpush.msra.mxu0 %v111
    %1263 = vmatpush.msra.mxu0 %v105
    %1264 = vmatpush.msra.mxu0 %v99
    %1265 = vmatpush.msra.mxu0 %v93
    %1266 = vmatpush.msra.mxu0 %v87
    %1267 = vmatpush.msra.mxu0 %v81
    %1268 = vmatpush.msra.mxu0 %v75
    %1269 = vmatpush.msra.mxu0 %v69
    %1270 = vmatmul.f32.gmra.mxu0 %v58
    %v1271 = vpop.f32.mrf.mxu0
    %v1272 = vadd.f32 %v647, %v1271
    %1273 = vdwg.mxu0
    %1274 = vmatpush.msra.mxu0 %v255
    %1275 = vmatpush.msra.mxu0 %v249
    %1276 = vmatpush.msra.mxu0 %v243
    %1277 = vmatpush.msra.mxu0 %v237
    %1278 = vmatpush.msra.mxu0 %v231
    %1279 = vmatpush.msra.mxu0 %v225
    %1280 = vmatpush.msra.mxu0 %v219
    %1281 = vmatpush.msra.mxu0 %v213
    %1282 = vmatpush.msra.mxu0 %v207
    %1283 = vmatpush.msra.mxu0 %v201
    %1284 = vmatpush.msra.mxu0 %v195
    %1285 = vmatpush.msra.mxu0 %v189
    %1286 = vmatpush.msra.mxu0 %v183
    %1287 = vmatpush.msra.mxu0 %v177
    %1288 = vmatpush.msra.mxu0 %v171
    %1289 = vmatpush.msra.mxu0 %v165
    %1290 = vmatmul.f32.gmra.mxu0 %v59
    %v1291 = vpop.f32.mrf.mxu0
    %v1292 = vadd.f32 %v1272, %v1291
    %1293 = vdwg.mxu0
    %1294 = vmatpush.msra.mxu0 %v351
    %1295 = vmatpush.msra.mxu0 %v345
    %1296 = vmatpush.msra.mxu0 %v339
    %1297 = vmatpush.msra.mxu0 %v333
    %1298 = vmatpush.msra.mxu0 %v327
    %1299 = vmatpush.msra.mxu0 %v321
    %1300 = vmatpush.msra.mxu0 %v315
    %1301 = vmatpush.msra.mxu0 %v309
    %1302 = vmatpush.msra.mxu0 %v303
    %1303 = vmatpush.msra.mxu0 %v297
    %1304 = vmatpush.msra.mxu0 %v291
    %1305 = vmatpush.msra.mxu0 %v285
    %1306 = vmatpush.msra.mxu0 %v279
    %1307 = vmatpush.msra.mxu0 %v273
    %1308 = vmatpush.msra.mxu0 %v267
    %1309 = vmatpush.msra.mxu0 %v261
    %1310 = vmatmul.f32.gmra.mxu0 %v60
    %v1311 = vpop.f32.mrf.mxu0
    %v1312 = vadd.f32 %v1292, %v1311
    %1313 = vdwg.mxu0
    %1314 = vmatpush.msra.mxu0 %v447
    %1315 = vmatpush.msra.mxu0 %v441
    %1316 = vmatpush.msra.mxu0 %v435
    %1317 = vmatpush.msra.mxu0 %v429
    %1318 = vmatpush.msra.mxu0 %v423
    %1319 = vmatpush.msra.mxu0 %v417
    %1320 = vmatpush.msra.mxu0 %v411
    %1321 = vmatpush.msra.mxu0 %v405
    %1322 = vmatpush.msra.mxu0 %v399
    %1323 = vmatpush.msra.mxu0 %v393
    %1324 = vmatpush.msra.mxu0 %v387
    %1325 = vmatpush.msra.mxu0 %v381
    %1326 = vmatpush.msra.mxu0 %v375
    %1327 = vmatpush.msra.mxu0 %v369
    %1328 = vmatpush.msra.mxu0 %v363
    %1329 = vmatpush.msra.mxu0 %v357
    %1330 = vmatmul.f32.gmra.mxu0 %v61
    %v1331 = vpop.f32.mrf.mxu0
    %v1332 = vadd.f32 %v1312, %v1331
    %1333 = vdwg.mxu0
    %1334 = vmatpush.msra.mxu0 %v543
    %1335 = vmatpush.msra.mxu0 %v537
    %1336 = vmatpush.msra.mxu0 %v531
    %1337 = vmatpush.msra.mxu0 %v525
    %1338 = vmatpush.msra.mxu0 %v519
    %1339 = vmatpush.msra.mxu0 %v513
    %1340 = vmatpush.msra.mxu0 %v507
    %1341 = vmatpush.msra.mxu0 %v501
    %1342 = vmatpush.msra.mxu0 %v495
    %1343 = vmatpush.msra.mxu0 %v489
    %1344 = vmatpush.msra.mxu0 %v483
    %1345 = vmatpush.msra.mxu0 %v477
    %1346 = vmatpush.msra.mxu0 %v471
    %1347 = vmatpush.msra.mxu0 %v465
    %1348 = vmatpush.msra.mxu0 %v459
    %1349 = vmatpush.msra.mxu0 %v453
    %1350 = vmatmul.f32.gmra.mxu0 %v62
    %v1351 = vpop.f32.mrf.mxu0
    %v1352 = vadd.f32 %v1332, %v1351
    %1353 = vdwg.mxu0
    %1354 = vmatpush.msra.mxu0 %v639
    %1355 = vmatpush.msra.mxu0 %v633
    %1356 = vmatpush.msra.mxu0 %v627
    %1357 = vmatpush.msra.mxu0 %v621
    %1358 = vmatpush.msra.mxu0 %v615
    %1359 = vmatpush.msra.mxu0 %v609
    %1360 = vmatpush.msra.mxu0 %v603
    %1361 = vmatpush.msra.mxu0 %v597
    %1362 = vmatpush.msra.mxu0 %v591
    %1363 = vmatpush.msra.mxu0 %v585
    %1364 = vmatpush.msra.mxu0 %v579
    %1365 = vmatpush.msra.mxu0 %v573
    %1366 = vmatpush.msra.mxu0 %v567
    %1367 = vmatpush.msra.mxu0 %v561
    %1368 = vmatpush.msra.mxu0 %v555
    %1369 = vmatpush.msra.mxu0 %v549
    %1370 = vmatmul.f32.gmra.mxu0 %v63
    %v1371 = vpop.f32.mrf.mxu0
    %v1372 = vadd.f32 %v1352, %v1371
    %1373 = vdwg.mxu0
    %1374 = vst [vmem:[#allocation8] sm:$0xff] %v772
    %1375 = vst [vmem:[#allocation8 + $0x8] sm:$0xff] %v892
    %1376 = vst [vmem:[#allocation8 + $0x10] sm:$0xff] %v1012
    %1377 = vst [vmem:[#allocation8 + $0x18] sm:$0xff] %v1132
    %1378 = vst [vmem:[#allocation8 + $0x20] sm:$0xff] %v1252
    %1379 = vst [vmem:[#allocation8 + $0x28] sm:$0xff] %v1372
    // Predicated region
    $region26: #{tpu_custom_call.1} parent=1 // pred_check
      _
    $region27: #{tpu_custom_call.1} parent=1 // pred_check_branch
      %1381 = sbr.rel (0) target = $region29
    $region28: #{tpu_custom_call.1} parent=1 // pred_region
      %1383 = vsyncadd [#allocation4], 0
      %s1385 = sshll.u32 [#allocation8], 4
      %s1386 = int_to_ptr.vmem [resolvable:$true] %s1385
      %s1387 = sshll.u32 %s3, 4
      %s1388 = int_to_ptr.hbm [resolvable:$true] %s1387
      %1390 = dma.vmem_to_hbm [thread:$0]  %s1386, 768, %s1388, [#allocation4]
    $region29: #{tpu_custom_call.1} parent=1 // pred_fallthru
      _
    // Predicated region
    $region30: #{tpu_custom_call.1} parent=1 // pred_check
      _
    $region31: #{tpu_custom_call.1} parent=1 // pred_check_branch
      %1392 = sbr.rel (0) target = $region33
    $region32: #{tpu_custom_call.1} parent=1 // pred_region
      %1394 = dma.done [#allocation4], 768
    $region33: #{tpu_custom_call.1} parent=1 // pred_fallthru
      _
    %1395 = vsyncpa [#allocation3], 1
    %1396 = vsyncpa [#allocation6], 1
    %1397 = vsyncpa [#allocation4], 1

// kernel: tpu_custom_call.1
$region0: #{tpu_custom_call.1}
  #allocation0 [shape = 'u32[]', space=smem, size = 0x4, offset = 0x4, fixed_abs, tag = 'smem constant byte address 0x4 - core index']
  #allocation1 [shape = 'u32[72,128]{1,0:T(1,128)}', space=vmem, size = 0x9000, scoped, tag = 'internal scratch']
  %s0 = inlined_call_operand.hbm [shape: f32[8,768], index: 0, kind: input, shape index: {}]
  %s1 = inlined_call_operand.hbm [shape: f32[768,768], index: 1, kind: input, shape index: {}]
  %s2 = inlined_call_operand.hbm [shape: f32[1,768], index: 2, kind: input, shape index: {}]
  %s3 = inlined_call_operand.hbm [shape: f32[8,768], index: 3, kind: output, shape index: {}]
  %s4 = sld [smem:[#allocation0]]
  $region34: #{tpu_custom_call.1} parent=0
    _
  %s6 = ssub.s32 1, %s4
  %s7 = scalar_select 0, %s6, %s4
  $region1: #{tpu_custom_call.1} parent=0
    #allocation2 [shape = 'u8[24576]{0}', space=vmem, size = 0x6000, scoped, tag = 'input window, operand 0, single buffered']
    #allocation3 [shape = 's32[1]{0}', space=sflag, size = 0x4, scoped, tag = 'scoped memory for tpu_custom_call.1']
    #allocation4 [shape = 's32[1]{0}', space=sflag, size = 0x4, scoped, tag = 'scoped memory for tpu_custom_call.1']
    #allocation5 [shape = 'u8[2359296]{0}', space=vmem, size = 0x240000, scoped, tag = 'input window, operand 1, single buffered']
    #allocation6 [shape = 's32[1]{0}', space=sflag, size = 0x4, scoped, tag = 'scoped memory for tpu_custom_call.1']
    #allocation7 [shape = 'u8[3072]{0}', space=vmem, size = 0xc00, scoped, tag = 'input window, operand 2, single buffered']
    #allocation8 [shape = 'u8[24576]{0}', space=vmem, size = 0x6000, scoped, tag = 'output window, operand 0, single buffered']
    %8 = vsyncpa [#allocation3], 0
    %9 = vsyncpa [#allocation6], 0
    %10 = vsyncpa [#allocation4], 0
    // Predicated region
    $region2: #{tpu_custom_call.1} parent=1 // pred_check
      _
    $region3: #{tpu_custom_call.1} parent=1 // pred_check_branch
      %12 = sbr.rel (0) target = $region5
    $region4: #{tpu_custom_call.1} parent=1 // pred_region
      %14 = vsyncadd [#allocation3], 0
      %s16 = sshll.u32 %s0, 4
      %s17 = int_to_ptr.hbm [resolvable:$true] %s16
      %s18 = sshll.u32 [#allocation2], 4
      %s19 = int_to_ptr.vmem [resolvable:$true] %s18
      %21 = dma.hbm_to_vmem [thread:$0]  %s17, 768, %s19, [#allocation3]
    $region5: #{tpu_custom_call.1} parent=1 // pred_fallthru
      _
    // Predicated region
    $region6: #{tpu_custom_call.1} parent=1 // pred_check
      _
    $region7: #{tpu_custom_call.1} parent=1 // pred_check_branch
      %23 = sbr.rel (0) target = $region9
    $region8: #{tpu_custom_call.1} parent=1 // pred_region
      %25 = vsyncadd [#allocation6], 0
      %s26 = sshll.u32 %s1, 4
      %s27 = int_to_ptr.hbm [resolvable:$true] %s26
      %s28 = sshll.u32 [#allocation5], 4
      %s29 = int_to_ptr.vmem [resolvable:$true] %s28
      %34 = dma.hbm_to_vmem [thread:$0]  %s27, 73728, %s29, [#allocation6], 768, 768, 48
    $region9: #{tpu_custom_call.1} parent=1 // pred_fallthru
      _
    // Predicated region
    $region10: #{tpu_custom_call.1} parent=1 // pred_check
      _
    $region11: #{tpu_custom_call.1} parent=1 // pred_check_branch
      %36 = sbr.rel (0) target = $region13
    $region12: #{tpu_custom_call.1} parent=1 // pred_region
      %38 = vsyncadd [#allocation6], 0
      %s40 = sshll.u32 %s2, 4
      %s41 = int_to_ptr.hbm [resolvable:$true] %s40
      %s42 = sshll.u32 [#allocation7], 4
      %s43 = int_to_ptr.vmem [resolvable:$true] %s42
      %45 = dma.hbm_to_vmem [thread:$0]  %s41, 96, %s43, [#allocation6]
    $region13: #{tpu_custom_call.1} parent=1 // pred_fallthru
      _
    // Predicated region
    $region14: #{tpu_custom_call.1} parent=1 // pred_check
      _
    $region15: #{tpu_custom_call.1} parent=1 // pred_check_branch
      %47 = sbr.rel (0) target = $region17
    $region16: #{tpu_custom_call.1} parent=1 // pred_region
      %49 = dma.done [#allocation3], 768
    $region17: #{tpu_custom_call.1} parent=1 // pred_fallthru
      _
    // Predicated region
    $region18: #{tpu_custom_call.1} parent=1 // pred_check
      _
    $region19: #{tpu_custom_call.1} parent=1 // pred_check_branch
      %51 = sbr.rel (0) target = $region21
    $region20: #{tpu_custom_call.1} parent=1 // pred_region
      %53 = dma.done [#allocation6], 73728
    $region21: #{tpu_custom_call.1} parent=1 // pred_fallthru
      _
    // Predicated region
    $region22: #{tpu_custom_call.1} parent=1 // pred_check
      _
    $region23: #{tpu_custom_call.1} parent=1 // pred_check_branch
      %55 = sbr.rel (0) target = $region25
    $region24: #{tpu_custom_call.1} parent=1 // pred_region
      %57 = dma.done [#allocation6], 96
    $region25: #{tpu_custom_call.1} parent=1 // pred_fallthru
      _
    %v58 = vld [vmem:[#allocation2] sm:$0xff]
    %v59 = vld [vmem:[#allocation2 + $0x8] sm:$0xff]
    %v60 = vld [vmem:[#allocation2 + $0x10] sm:$0xff]
    %v61 = vld [vmem:[#allocation2 + $0x18] sm:$0xff]
    %v62 = vld [vmem:[#allocation2 + $0x20] sm:$0xff]
    %v63 = vld [vmem:[#allocation2 + $0x28] sm:$0xff]
    %v64 = vld [vmem:[#allocation5] sm:$0xff]
    %v65 = vld [vmem:[#allocation5 + $0x8] sm:$0xff]
    %v66 = vld [vmem:[#allocation5 + $0x10] sm:$0xff]
    %v67 = vld [vmem:[#allocation5 + $0x18] sm:$0xff]
    %v68 = vld [vmem:[#allocation5 + $0x20] sm:$0xff]
    %v69 = vld [vmem:[#allocation5 + $0x28] sm:$0xff]
    %v70 = vld [vmem:[#allocation5 + $0x30] sm:$0xff]
    %v71 = vld [vmem:[#allocation5 + $0x38] sm:$0xff]
    %v72 = vld [vmem:[#allocation5 + $0x40] sm:$0xff]
    %v73 = vld [vmem:[#allocation5 + $0x48] sm:$0xff]
    %v74 = vld [vmem:[#allocation5 + $0x50] sm:$0xff]
    %v75 = vld [vmem:[#allocation5 + $0x58] sm:$0xff]
    %v76 = vld [vmem:[#allocation5 + $0x60] sm:$0xff]
    %v77 = vld [vmem:[#allocation5 + $0x68] sm:$0xff]
    %v78 = vld [vmem:[#allocation5 + $0x70] sm:$0xff]
    %v79 = vld [vmem:[#allocation5 + $0x78] sm:$0xff]
    %v80 = vld [vmem:[#allocation5 + $0x80] sm:$0xff]
    %v81 = vld [vmem:[#allocation5 + $0x88] sm:$0xff]
    %v82 = vld [vmem:[#allocation5 + $0x90] sm:$0xff]
    %v83 = vld [vmem:[#allocation5 + $0x98] sm:$0xff]
    %v84 = vld [vmem:[#allocation5 + $0xa0] sm:$0xff]
    %v85 = vld [vmem:[#allocation5 + $0xa8] sm:$0xff]
    %v86 = vld [vmem:[#allocation5 + $0xb0] sm:$0xff]
    %v87 = vld [vmem:[#allocation5 + $0xb8] sm:$0xff]
    %v88 = vld [vmem:[#allocation5 + $0xc0] sm:$0xff]
    %v89 = vld [vmem:[#allocation5 + $0xc8] sm:$0xff]
    %v90 = vld [vmem:[#allocation5 + $0xd0] sm:$0xff]
    %v91 = vld [vmem:[#allocation5 + $0xd8] sm:$0xff]
    %v92 = vld [vmem:[#allocation5 + $0xe0] sm:$0xff]
    %v93 = vld [vmem:[#allocation5 + $0xe8] sm:$0xff]
    %v94 = vld [vmem:[#allocation5 + $0xf0] sm:$0xff]
    %v95 = vld [vmem:[#allocation5 + $0xf8] sm:$0xff]
    %v96 = vld [vmem:[#allocation5 + $0x100] sm:$0xff]
    %v97 = vld [vmem:[#allocation5 + $0x108] sm:$0xff]
    %v98 = vld [vmem:[#allocation5 + $0x110] sm:$0xff]
    %v99 = vld [vmem:[#allocation5 + $0x118] sm:$0xff]
    %v100 = vld [vmem:[#allocation5 + $0x120] sm:$0xff]
    %v101 = vld [vmem:[#allocation5 + $0x128] sm:$0xff]
    %v102 = vld [vmem:[#allocation5 + $0x130] sm:$0xff]
    %v103 = vld [vmem:[#allocation5 + $0x138] sm:$0xff]
    %v104 = vld [vmem:[#allocation5 + $0x140] sm:$0xff]
    %v105 = vld [vmem:[#allocation5 + $0x148] sm:$0xff]
    %v106 = vld [vmem:[#allocation5 + $0x150] sm:$0xff]
    %v107 = vld [vmem:[#allocation5 + $0x158] sm:$0xff]
    %v108 = vld [vmem:[#allocation5 + $0x160] sm:$0xff]
    %v109 = vld [vmem:[#allocation5 + $0x168] sm:$0xff]
    %v110 = vld [vmem:[#allocation5 + $0x170] sm:$0xff]
    %v111 = vld [vmem:[#allocation5 + $0x178] sm:$0xff]
    %v112 = vld [vmem:[#allocation5 + $0x180] sm:$0xff]
    %v113 = vld [vmem:[#allocation5 + $0x188] sm:$0xff]
    %v114 = vld [vmem:[#allocation5 + $0x190] sm:$0xff]
    %v115 = vld [vmem:[#allocation5 + $0x198] sm:$0xff]
    %v116 = vld [vmem:[#allocation5 + $0x1a0] sm:$0xff]
    %v117 = vld [vmem:[#allocation5 + $0x1a8] sm:$0xff]
    %v118 = vld [vmem:[#allocation5 + $0x1b0] sm:$0xff]
    %v119 = vld [vmem:[#allocation5 + $0x1b8] sm:$0xff]
    %v120 = vld [vmem:[#allocation5 + $0x1c0] sm:$0xff]
    %v121 = vld [vmem:[#allocation5 + $0x1c8] sm:$0xff]
    %v122 = vld [vmem:[#allocation5 + $0x1d0] sm:$0xff]
    %v123 = vld [vmem:[#allocation5 + $0x1d8] sm:$0xff]
    %v124 = vld [vmem:[#allocation5 + $0x1e0] sm:$0xff]
    %v125 = vld [vmem:[#allocation5 + $0x1e8] sm:$0xff]
    %v126 = vld [vmem:[#allocation5 + $0x1f0] sm:$0xff]
    %v127 = vld [vmem:[#allocation5 + $0x1f8] sm:$0xff]
    %v128 = vld [vmem:[#allocation5 + $0x200] sm:$0xff]
    %v129 = vld [vmem:[#allocation5 + $0x208] sm:$0xff]
    %v130 = vld [vmem:[#allocation5 + $0x210] sm:$0xff]
    %v131 = vld [vmem:[#allocation5 + $0x218] sm:$0xff]
    %v132 = vld [vmem:[#allocation5 + $0x220] sm:$0xff]
    %v133 = vld [vmem:[#allocation5 + $0x228] sm:$0xff]
    %v134 = vld [vmem:[#allocation5 + $0x230] sm:$0xff]
    %v135 = vld [vmem:[#allocation5 + $0x238] sm:$0xff]
    %v136 = vld [vmem:[#allocation5 + $0x240] sm:$0xff]
    %v137 = vld [vmem:[#allocation5 + $0x248] sm:$0xff]
    %v138 = vld [vmem:[#allocation5 + $0x250] sm:$0xff]
    %v139 = vld [vmem:[#allocation5 + $0x258] sm:$0xff]
    %v140 = vld [vmem:[#allocation5 + $0x260] sm:$0xff]
    %v141 = vld [vmem:[#allocation5 + $0x268] sm:$0xff]
    %v142 = vld [vmem:[#allocation5 + $0x270] sm:$0xff]
    %v143 = vld [vmem:[#allocation5 + $0x278] sm:$0xff]
    %v144 = vld [vmem:[#allocation5 + $0x280] sm:$0xff]
    %v145 = vld [vmem:[#allocation5 + $0x288] sm:$0xff]
    %v146 = vld [vmem:[#allocation5 + $0x290] sm:$0xff]
    %v147 = vld [vmem:[#allocation5 + $0x298] sm:$0xff]
    %v148 = vld [vmem:[#allocation5 + $0x2a0] sm:$0xff]
    %v149 = vld [vmem:[#allocation5 + $0x2a8] sm:$0xff]
    %v150 = vld [vmem:[#allocation5 + $0x2b0] sm:$0xff]
    %v151 = vld [vmem:[#allocation5 + $0x2b8] sm:$0xff]
    %v152 = vld [vmem:[#allocation5 + $0x2c0] sm:$0xff]
    %v153 = vld [vmem:[#allocation5 + $0x2c8] sm:$0xff]
    %v154 = vld [vmem:[#allocation5 + $0x2d0] sm:$0xff]
    %v155 = vld [vmem:[#allocation5 + $0x2d8] sm:$0xff]
    %v156 = vld [vmem:[#allocation5 + $0x2e0] sm:$0xff]
    %v157 = vld [vmem:[#allocation5 + $0x2e8] sm:$0xff]
    %v158 = vld [vmem:[#allocation5 + $0x2f0] sm:$0xff]
    %v159 = vld [vmem:[#allocation5 + $0x2f8] sm:$0xff]
    %v160 = vld [vmem:[#allocation5 + $0x300] sm:$0xff]
    %v161 = vld [vmem:[#allocation5 + $0x308] sm:$0xff]
    %v162 = vld [vmem:[#allocation5 + $0x310] sm:$0xff]
    %v163 = vld [vmem:[#allocation5 + $0x318] sm:$0xff]
    %v164 = vld [vmem:[#allocation5 + $0x320] sm:$0xff]
    %v165 = vld [vmem:[#allocation5 + $0x328] sm:$0xff]
    %v166 = vld [vmem:[#allocation5 + $0x330] sm:$0xff]
    %v167 = vld [vmem:[#allocation5 + $0x338] sm:$0xff]
    %v168 = vld [vmem:[#allocation5 + $0x340] sm:$0xff]
    %v169 = vld [vmem:[#allocation5 + $0x348] sm:$0xff]
    %v170 = vld [vmem:[#allocation5 + $0x350] sm:$0xff]
    %v171 = vld [vmem:[#allocation5 + $0x358] sm:$0xff]
    %v172 = vld [vmem:[#allocation5 + $0x360] sm:$0xff]
    %v173 = vld [vmem:[#allocation5 + $0x368] sm:$0xff]
    %v174 = vld [vmem:[#allocation5 + $0x370] sm:$0xff]
    %v175 = vld [vmem:[#allocation5 + $0x378] sm:$0xff]
    %v176 = vld [vmem:[#allocation5 + $0x380] sm:$0xff]
    %v177 = vld [vmem:[#allocation5 + $0x388] sm:$0xff]
    %v178 = vld [vmem:[#allocation5 + $0x390] sm:$0xff]
    %v179 = vld [vmem:[#allocation5 + $0x398] sm:$0xff]
    %v180 = vld [vmem:[#allocation5 + $0x3a0] sm:$0xff]
    %v181 = vld [vmem:[#allocation5 + $0x3a8] sm:$0xff]
    %v182 = vld [vmem:[#allocation5 + $0x3b0] sm:$0xff]
    %v183 = vld [vmem:[#allocation5 + $0x3b8] sm:$0xff]
    %v184 = vld [vmem:[#allocation5 + $0x3c0] sm:$0xff]
    %v185 = vld [vmem:[#allocation5 + $0x3c8] sm:$0xff]
    %v186 = vld [vmem:[#allocation5 + $0x3d0] sm:$0xff]
    %v187 = vld [vmem:[#allocation5 + $0x3d8] sm:$0xff]
    %v188 = vld [vmem:[#allocation5 + $0x3e0] sm:$0xff]
    %v189 = vld [vmem:[#allocation5 + $0x3e8] sm:$0xff]
    %v190 = vld [vmem:[#allocation5 + $0x3f0] sm:$0xff]
    %v191 = vld [vmem:[#allocation5 + $0x3f8] sm:$0xff]
    %v192 = vld [vmem:[#allocation5 + $0x400] sm:$0xff]
    %v193 = vld [vmem:[#allocation5 + $0x408] sm:$0xff]
    %v194 = vld [vmem:[#allocation5 + $0x410] sm:$0xff]
    %v195 = vld [vmem:[#allocation5 + $0x418] sm:$0xff]
    %v196 = vld [vmem:[#allocation5 + $0x420] sm:$0xff]
    %v197 = vld [vmem:[#allocation5 + $0x428] sm:$0xff]
    %v198 = vld [vmem:[#allocation5 + $0x430] sm:$0xff]
    %v199 = vld [vmem:[#allocation5 + $0x438] sm:$0xff]
    %v200 = vld [vmem:[#allocation5 + $0x440] sm:$0xff]
    %v201 = vld [vmem:[#allocation5 + $0x448] sm:$0xff]
    %v202 = vld [vmem:[#allocation5 + $0x450] sm:$0xff]
    %v203 = vld [vmem:[#allocation5 + $0x458] sm:$0xff]
    %v204 = vld [vmem:[#allocation5 + $0x460] sm:$0xff]
    %v205 = vld [vmem:[#allocation5 + $0x468] sm:$0xff]
    %v206 = vld [vmem:[#allocation5 + $0x470] sm:$0xff]
    %v207 = vld [vmem:[#allocation5 + $0x478] sm:$0xff]
    %v208 = vld [vmem:[#allocation5 + $0x480] sm:$0xff]
    %v209 = vld [vmem:[#allocation5 + $0x488] sm:$0xff]
    %v210 = vld [vmem:[#allocation5 + $0x490] sm:$0xff]
    %v211 = vld [vmem:[#allocation5 + $0x498] sm:$0xff]
    %v212 = vld [vmem:[#allocation5 + $0x4a0] sm:$0xff]
    %v213 = vld [vmem:[#allocation5 + $0x4a8] sm:$0xff]
    %v214 = vld [vmem:[#allocation5 + $0x4b0] sm:$0xff]
    %v215 = vld [vmem:[#allocation5 + $0x4b8] sm:$0xff]
    %v216 = vld [vmem:[#allocation5 + $0x4c0] sm:$0xff]
    %v217 = vld [vmem:[#allocation5 + $0x4c8] sm:$0xff]
    %v218 = vld [vmem:[#allocation5 + $0x4d0] sm:$0xff]
    %v219 = vld [vmem:[#allocation5 + $0x4d8] sm:$0xff]
    %v220 = vld [vmem:[#allocation5 + $0x4e0] sm:$0xff]
    %v221 = vld [vmem:[#allocation5 + $0x4e8] sm:$0xff]
    %v222 = vld [vmem:[#allocation5 + $0x4f0] sm:$0xff]
    %v223 = vld [vmem:[#allocation5 + $0x4f8] sm:$0xff]
    %v224 = vld [vmem:[#allocation5 + $0x500] sm:$0xff]
    %v225 = vld [vmem:[#allocation5 + $0x508] sm:$0xff]
    %v226 = vld [vmem:[#allocation5 + $0x510] sm:$0xff]
    %v227 = vld [vmem:[#allocation5 + $0x518] sm:$0xff]
    %v228 = vld [vmem:[#allocation5 + $0x520] sm:$0xff]
    %v229 = vld [vmem:[#allocation5 + $0x528] sm:$0xff]
    %v230 = vld [vmem:[#allocation5 + $0x530] sm:$0xff]
    %v231 = vld [vmem:[#allocation5 + $0x538] sm:$0xff]
    %v232 = vld [vmem:[#allocation5 + $0x540] sm:$0xff]
    %v233 = vld [vmem:[#allocation5 + $0x548] sm:$0xff]
    %v234 = vld [vmem:[#allocation5 + $0x550] sm:$0xff]
    %v235 = vld [vmem:[#allocation5 + $0x558] sm:$0xff]
    %v236 = vld [vmem:[#allocation5 + $0x560] sm:$0xff]
    %v237 = vld [vmem:[#allocation5 + $0x568] sm:$0xff]
    %v238 = vld [vmem:[#allocation5 + $0x570] sm:$0xff]
    %v239 = vld [vmem:[#allocation5 + $0x578] sm:$0xff]
    %v240 = vld [vmem:[#allocation5 + $0x580] sm:$0xff]
    %v241 = vld [vmem:[#allocation5 + $0x588] sm:$0xff]
    %v242 = vld [vmem:[#allocation5 + $0x590] sm:$0xff]
    %v243 = vld [vmem:[#allocation5 + $0x598] sm:$0xff]
    %v244 = vld [vmem:[#allocation5 + $0x5a0] sm:$0xff]
    %v245 = vld [vmem:[#allocation5 + $0x5a8] sm:$0xff]
    %v246 = vld [vmem:[#allocation5 + $0x5b0] sm:$0xff]
    %v247 = vld [vmem:[#allocation5 + $0x5b8] sm:$0xff]
    %v248 = vld [vmem:[#allocation5 + $0x5c0] sm:$0xff]
    %v249 = vld [vmem:[#allocation5 + $0x5c8] sm:$0xff]
    %v250 = vld [vmem:[#allocation5 + $0x5d0] sm:$0xff]
    %v251 = vld [vmem:[#allocation5 + $0x5d8] sm:$0xff]
    %v252 = vld [vmem:[#allocation5 + $0x5e0] sm:$0xff]
    %v253 = vld [vmem:[#allocation5 + $0x5e8] sm:$0xff]
    %v254 = vld [vmem:[#allocation5 + $0x5f0] sm:$0xff]
    %v255 = vld [vmem:[#allocation5 + $0x5f8] sm:$0xff]
    %v256 = vld [vmem:[#allocation5 + $0x600] sm:$0xff]
    %v257 = vld [vmem:[#allocation5 + $0x608] sm:$0xff]
    %v258 = vld [vmem:[#allocation5 + $0x610] sm:$0xff]
    %v259 = vld [vmem:[#allocation5 + $0x618] sm:$0xff]
    %v260 = vld [vmem:[#allocation5 + $0x620] sm:$0xff]
    %v261 = vld [vmem:[#allocation5 + $0x628] sm:$0xff]
    %v262 = vld [vmem:[#allocation5 + $0x630] sm:$0xff]
    %v263 = vld [vmem:[#allocation5 + $0x638] sm:$0xff]
    %v264 = vld [vmem:[#allocation5 + $0x640] sm:$0xff]
    %v265 = vld [vmem:[#allocation5 + $0x648] sm:$0xff]
    %v266 = vld [vmem:[#allocation5 + $0x650] sm:$0xff]
    %v267 = vld [vmem:[#allocation5 + $0x658] sm:$0xff]
    %v268 = vld [vmem:[#allocation5 + $0x660] sm:$0xff]
    %v269 = vld [vmem:[#allocation5 + $0x668] sm:$0xff]
    %v270 = vld [vmem:[#allocation5 + $0x670] sm:$0xff]
    %v271 = vld [vmem:[#allocation5 + $0x678] sm:$0xff]
    %v272 = vld [vmem:[#allocation5 + $0x680] sm:$0xff]
    %v273 = vld [vmem:[#allocation5 + $0x688] sm:$0xff]
    %v274 = vld [vmem:[#allocation5 + $0x690] sm:$0xff]
    %v275 = vld [vmem:[#allocation5 + $0x698] sm:$0xff]
    %v276 = vld [vmem:[#allocation5 + $0x6a0] sm:$0xff]
    %v277 = vld [vmem:[#allocation5 + $0x6a8] sm:$0xff]
    %v278 = vld [vmem:[#allocation5 + $0x6b0] sm:$0xff]
    %v279 = vld [vmem:[#allocation5 + $0x6b8] sm:$0xff]
    %v280 = vld [vmem:[#allocation5 + $0x6c0] sm:$0xff]
    %v281 = vld [vmem:[#allocation5 + $0x6c8] sm:$0xff]
    %v282 = vld [vmem:[#allocation5 + $0x6d0] sm:$0xff]
    %v283 = vld [vmem:[#allocation5 + $0x6d8] sm:$0xff]
    %v284 = vld [vmem:[#allocation5 + $0x6e0] sm:$0xff]
    %v285 = vld [vmem:[#allocation5 + $0x6e8] sm:$0xff]
    %v286 = vld [vmem:[#allocation5 + $0x6f0] sm:$0xff]
    %v287 = vld [vmem:[#allocation5 + $0x6f8] sm:$0xff]
    %v288 = vld [vmem:[#allocation5 + $0x700] sm:$0xff]
    %v289 = vld [vmem:[#allocation5 + $0x708] sm:$0xff]
    %v290 = vld [vmem:[#allocation5 + $0x710] sm:$0xff]
    %v291 = vld [vmem:[#allocation5 + $0x718] sm:$0xff]
    %v292 = vld [vmem:[#allocation5 + $0x720] sm:$0xff]
    %v293 = vld [vmem:[#allocation5 + $0x728] sm:$0xff]
    %v294 = vld [vmem:[#allocation5 + $0x730] sm:$0xff]
    %v295 = vld [vmem:[#allocation5 + $0x738] sm:$0xff]
    %v296 = vld [vmem:[#allocation5 + $0x740] sm:$0xff]
    %v297 = vld [vmem:[#allocation5 + $0x748] sm:$0xff]
    %v298 = vld [vmem:[#allocation5 + $0x750] sm:$0xff]
    %v299 = vld [vmem:[#allocation5 + $0x758] sm:$0xff]
    %v300 = vld [vmem:[#allocation5 + $0x760] sm:$0xff]
    %v301 = vld [vmem:[#allocation5 + $0x768] sm:$0xff]
    %v302 = vld [vmem:[#allocation5 + $0x770] sm:$0xff]
    %v303 = vld [vmem:[#allocation5 + $0x778] sm:$0xff]
    %v304 = vld [vmem:[#allocation5 + $0x780] sm:$0xff]
    %v305 = vld [vmem:[#allocation5 + $0x788] sm:$0xff]
    %v306 = vld [vmem:[#allocation5 + $0x790] sm:$0xff]
    %v307 = vld [vmem:[#allocation5 + $0x798] sm:$0xff]
    %v308 = vld [vmem:[#allocation5 + $0x7a0] sm:$0xff]
    %v309 = vld [vmem:[#allocation5 + $0x7a8] sm:$0xff]
    %v310 = vld [vmem:[#allocation5 + $0x7b0] sm:$0xff]
    %v311 = vld [vmem:[#allocation5 + $0x7b8] sm:$0xff]
    %v312 = vld [vmem:[#allocation5 + $0x7c0] sm:$0xff]
    %v313 = vld [vmem:[#allocation5 + $0x7c8] sm:$0xff]
    %v314 = vld [vmem:[#allocation5 + $0x7d0] sm:$0xff]
    %v315 = vld [vmem:[#allocation5 + $0x7d8] sm:$0xff]
    %v316 = vld [vmem:[#allocation5 + $0x7e0] sm:$0xff]
    %v317 = vld [vmem:[#allocation5 + $0x7e8] sm:$0xff]
    %v318 = vld [vmem:[#allocation5 + $0x7f0] sm:$0xff]
    %v319 = vld [vmem:[#allocation5 + $0x7f8] sm:$0xff]
    %v320 = vld [vmem:[#allocation5 + $0x800] sm:$0xff]
    %v321 = vld [vmem:[#allocation5 + $0x808] sm:$0xff]
    %v322 = vld [vmem:[#allocation5 + $0x810] sm:$0xff]
    %v323 = vld [vmem:[#allocation5 + $0x818] sm:$0xff]
    %v324 = vld [vmem:[#allocation5 + $0x820] sm:$0xff]
    %v325 = vld [vmem:[#allocation5 + $0x828] sm:$0xff]
    %v326 = vld [vmem:[#allocation5 + $0x830] sm:$0xff]
    %v327 = vld [vmem:[#allocation5 + $0x838] sm:$0xff]
    %v328 = vld [vmem:[#allocation5 + $0x840] sm:$0xff]
    %v329 = vld [vmem:[#allocation5 + $0x848] sm:$0xff]
    %v330 = vld [vmem:[#allocation5 + $0x850] sm:$0xff]
    %v331 = vld [vmem:[#allocation5 + $0x858] sm:$0xff]
    %v332 = vld [vmem:[#allocation5 + $0x860] sm:$0xff]
    %v333 = vld [vmem:[#allocation5 + $0x868] sm:$0xff]
    %v334 = vld [vmem:[#allocation5 + $0x870] sm:$0xff]
    %v335 = vld [vmem:[#allocation5 + $0x878] sm:$0xff]
    %v336 = vld [vmem:[#allocation5 + $0x880] sm:$0xff]
    %v337 = vld [vmem:[#allocation5 + $0x888] sm:$0xff]
    %v338 = vld [vmem:[#allocation5 + $0x890] sm:$0xff]
    %v339 = vld [vmem:[#allocation5 + $0x898] sm:$0xff]
    %v340 = vld [vmem:[#allocation5 + $0x8a0] sm:$0xff]
    %v341 = vld [vmem:[#allocation5 + $0x8a8] sm:$0xff]
    %v342 = vld [vmem:[#allocation5 + $0x8b0] sm:$0xff]
    %v343 = vld [vmem:[#allocation5 + $0x8b8] sm:$0xff]
    %v344 = vld [vmem:[#allocation5 + $0x8c0] sm:$0xff]
    %v345 = vld [vmem:[#allocation5 + $0x8c8] sm:$0xff]
    %v346 = vld [vmem:[#allocation5 + $0x8d0] sm:$0xff]
    %v347 = vld [vmem:[#allocation5 + $0x8d8] sm:$0xff]
    %v348 = vld [vmem:[#allocation5 + $0x8e0] sm:$0xff]
    %v349 = vld [vmem:[#allocation5 + $0x8e8] sm:$0xff]
    %v350 = vld [vmem:[#allocation5 + $0x8f0] sm:$0xff]
    %v351 = vld [vmem:[#allocation5 + $0x8f8] sm:$0xff]
    %v352 = vld [vmem:[#allocation5 + $0x900] sm:$0xff]
    %v353 = vld [vmem:[#allocation5 + $0x908] sm:$0xff]
    %v354 = vld [vmem:[#allocation5 + $0x910] sm:$0xff]
    %v355 = vld [vmem:[#allocation5 + $0x918] sm:$0xff]
    %v356 = vld [vmem:[#allocation5 + $0x920] sm:$0xff]
    %v357 = vld [vmem:[#allocation5 + $0x928] sm:$0xff]
    %v358 = vld [vmem:[#allocation5 + $0x930] sm:$0xff]
    %v359 = vld [vmem:[#allocation5 + $0x938] sm:$0xff]
    %v360 = vld [vmem:[#allocation5 + $0x940] sm:$0xff]
    %v361 = vld [vmem:[#allocation5 + $0x948] sm:$0xff]
    %v362 = vld [vmem:[#allocation5 + $0x950] sm:$0xff]
    %v363 = vld [vmem:[#allocation5 + $0x958] sm:$0xff]
    %v364 = vld [vmem:[#allocation5 + $0x960] sm:$0xff]
    %v365 = vld [vmem:[#allocation5 + $0x968] sm:$0xff]
    %v366 = vld [vmem:[#allocation5 + $0x970] sm:$0xff]
    %v367 = vld [vmem:[#allocation5 + $0x978] sm:$0xff]
    %v368 = vld [vmem:[#allocation5 + $0x980] sm:$0xff]
    %v369 = vld [vmem:[#allocation5 + $0x988] sm:$0xff]
    %v370 = vld [vmem:[#allocation5 + $0x990] sm:$0xff]
    %v371 = vld [vmem:[#allocation5 + $0x998] sm:$0xff]
    %v372 = vld [vmem:[#allocation5 + $0x9a0] sm:$0xff]
    %v373 = vld [vmem:[#allocation5 + $0x9a8] sm:$0xff]
    %v374 = vld [vmem:[#allocation5 + $0x9b0] sm:$0xff]
    %v375 = vld [vmem:[#allocation5 + $0x9b8] sm:$0xff]
    %v376 = vld [vmem:[#allocation5 + $0x9c0] sm:$0xff]
    %v377 = vld [vmem:[#allocation5 + $0x9c8] sm:$0xff]
    %v378 = vld [vmem:[#allocation5 + $0x9d0] sm:$0xff]
    %v379 = vld [vmem:[#allocation5 + $0x9d8] sm:$0xff]
    %v380 = vld [vmem:[#allocation5 + $0x9e0] sm:$0xff]
    %v381 = vld [vmem:[#allocation5 + $0x9e8] sm:$0xff]
    %v382 = vld [vmem:[#allocation5 + $0x9f0] sm:$0xff]
    %v383 = vld [vmem:[#allocation5 + $0x9f8] sm:$0xff]
    %v384 = vld [vmem:[#allocation5 + $0xa00] sm:$0xff]
    %v385 = vld [vmem:[#allocation5 + $0xa08] sm:$0xff]
    %v386 = vld [vmem:[#allocation5 + $0xa10] sm:$0xff]
    %v387 = vld [vmem:[#allocation5 + $0xa18] sm:$0xff]
    %v388 = vld [vmem:[#allocation5 + $0xa20] sm:$0xff]
    %v389 = vld [vmem:[#allocation5 + $0xa28] sm:$0xff]
    %v390 = vld [vmem:[#allocation5 + $0xa30] sm:$0xff]
    %v391 = vld [vmem:[#allocation5 + $0xa38] sm:$0xff]
    %v392 = vld [vmem:[#allocation5 + $0xa40] sm:$0xff]
    %v393 = vld [vmem:[#allocation5 + $0xa48] sm:$0xff]
    %v394 = vld [vmem:[#allocation5 + $0xa50] sm:$0xff]
    %v395 = vld [vmem:[#allocation5 + $0xa58] sm:$0xff]
    %v396 = vld [vmem:[#allocation5 + $0xa60] sm:$0xff]
    %v397 = vld [vmem:[#allocation5 + $0xa68] sm:$0xff]
    %v398 = vld [vmem:[#allocation5 + $0xa70] sm:$0xff]
    %v399 = vld [vmem:[#allocation5 + $0xa78] sm:$0xff]
    %v400 = vld [vmem:[#allocation5 + $0xa80] sm:$0xff]
    %v401 = vld [vmem:[#allocation5 + $0xa88] sm:$0xff]
    %v402 = vld [vmem:[#allocation5 + $0xa90] sm:$0xff]
    %v403 = vld [vmem:[#allocation5 + $0xa98] sm:$0xff]
    %v404 = vld [vmem:[#allocation5 + $0xaa0] sm:$0xff]
    %v405 = vld [vmem:[#allocation5 + $0xaa8] sm:$0xff]
    %v406 = vld [vmem:[#allocation5 + $0xab0] sm:$0xff]
    %v407 = vld [vmem:[#allocation5 + $0xab8] sm:$0xff]
    %v408 = vld [vmem:[#allocation5 + $0xac0] sm:$0xff]
    %v409 = vld [vmem:[#allocation5 + $0xac8] sm:$0xff]
    %v410 = vld [vmem:[#allocation5 + $0xad0] sm:$0xff]
    %v411 = vld [vmem:[#allocation5 + $0xad8] sm:$0xff]
    %v412 = vld [vmem:[#allocation5 + $0xae0] sm:$0xff]
    %v413 = vld [vmem:[#allocation5 + $0xae8] sm:$0xff]
    %v414 = vld [vmem:[#allocation5 + $0xaf0] sm:$0xff]
    %v415 = vld [vmem:[#allocation5 + $0xaf8] sm:$0xff]
    %v416 = vld [vmem:[#allocation5 + $0xb00] sm:$0xff]
    %v417 = vld [vmem:[#allocation5 + $0xb08] sm:$0xff]
    %v418 = vld [vmem:[#allocation5 + $0xb10] sm:$0xff]
    %v419 = vld [vmem:[#allocation5 + $0xb18] sm:$0xff]
    %v420 = vld [vmem:[#allocation5 + $0xb20] sm:$0xff]
    %v421 = vld [vmem:[#allocation5 + $0xb28] sm:$0xff]
    %v422 = vld [vmem:[#allocation5 + $0xb30] sm:$0xff]
    %v423 = vld [vmem:[#allocation5 + $0xb38] sm:$0xff]
    %v424 = vld [vmem:[#allocation5 + $0xb40] sm:$0xff]
    %v425 = vld [vmem:[#allocation5 + $0xb48] sm:$0xff]
    %v426 = vld [vmem:[#allocation5 + $0xb50] sm:$0xff]
    %v427 = vld [vmem:[#allocation5 + $0xb58] sm:$0xff]
    %v428 = vld [vmem:[#allocation5 + $0xb60] sm:$0xff]
    %v429 = vld [vmem:[#allocation5 + $0xb68] sm:$0xff]
    %v430 = vld [vmem:[#allocation5 + $0xb70] sm:$0xff]
    %v431 = vld [vmem:[#allocation5 + $0xb78] sm:$0xff]
    %v432 = vld [vmem:[#allocation5 + $0xb80] sm:$0xff]
    %v433 = vld [vmem:[#allocation5 + $0xb88] sm:$0xff]
    %v434 = vld [vmem:[#allocation5 + $0xb90] sm:$0xff]
    %v435 = vld [vmem:[#allocation5 + $0xb98] sm:$0xff]
    %v436 = vld [vmem:[#allocation5 + $0xba0] sm:$0xff]
    %v437 = vld [vmem:[#allocation5 + $0xba8] sm:$0xff]
    %v438 = vld [vmem:[#allocation5 + $0xbb0] sm:$0xff]
    %v439 = vld [vmem:[#allocation5 + $0xbb8] sm:$0xff]
    %v440 = vld [vmem:[#allocation5 + $0xbc0] sm:$0xff]
    %v441 = vld [vmem:[#allocation5 + $0xbc8] sm:$0xff]
    %v442 = vld [vmem:[#allocation5 + $0xbd0] sm:$0xff]
    %v443 = vld [vmem:[#allocation5 + $0xbd8] sm:$0xff]
    %v444 = vld [vmem:[#allocation5 + $0xbe0] sm:$0xff]
    %v445 = vld [vmem:[#allocation5 + $0xbe8] sm:$0xff]
    %v446 = vld [vmem:[#allocation5 + $0xbf0] sm:$0xff]
    %v447 = vld [vmem:[#allocation5 + $0xbf8] sm:$0xff]
    %v448 = vld [vmem:[#allocation5 + $0xc00] sm:$0xff]
    %v449 = vld [vmem:[#allocation5 + $0xc08] sm:$0xff]
    %v450 = vld [vmem:[#allocation5 + $0xc10] sm:$0xff]
    %v451 = vld [vmem:[#allocation5 + $0xc18] sm:$0xff]
    %v452 = vld [vmem:[#allocation5 + $0xc20] sm:$0xff]
    %v453 = vld [vmem:[#allocation5 + $0xc28] sm:$0xff]
    %v454 = vld [vmem:[#allocation5 + $0xc30] sm:$0xff]
    %v455 = vld [vmem:[#allocation5 + $0xc38] sm:$0xff]
    %v456 = vld [vmem:[#allocation5 + $0xc40] sm:$0xff]
    %v457 = vld [vmem:[#allocation5 + $0xc48] sm:$0xff]
    %v458 = vld [vmem:[#allocation5 + $0xc50] sm:$0xff]
    %v459 = vld [vmem:[#allocation5 + $0xc58] sm:$0xff]
    %v460 = vld [vmem:[#allocation5 + $0xc60] sm:$0xff]
    %v461 = vld [vmem:[#allocation5 + $0xc68] sm:$0xff]
    %v462 = vld [vmem:[#allocation5 + $0xc70] sm:$0xff]
    %v463 = vld [vmem:[#allocation5 + $0xc78] sm:$0xff]
    %v464 = vld [vmem:[#allocation5 + $0xc80] sm:$0xff]
    %v465 = vld [vmem:[#allocation5 + $0xc88] sm:$0xff]
    %v466 = vld [vmem:[#allocation5 + $0xc90] sm:$0xff]
    %v467 = vld [vmem:[#allocation5 + $0xc98] sm:$0xff]
    %v468 = vld [vmem:[#allocation5 + $0xca0] sm:$0xff]
    %v469 = vld [vmem:[#allocation5 + $0xca8] sm:$0xff]
    %v470 = vld [vmem:[#allocation5 + $0xcb0] sm:$0xff]
    %v471 = vld [vmem:[#allocation5 + $0xcb8] sm:$0xff]
    %v472 = vld [vmem:[#allocation5 + $0xcc0] sm:$0xff]
    %v473 = vld [vmem:[#allocation5 + $0xcc8] sm:$0xff]
    %v474 = vld [vmem:[#allocation5 + $0xcd0] sm:$0xff]
    %v475 = vld [vmem:[#allocation5 + $0xcd8] sm:$0xff]
    %v476 = vld [vmem:[#allocation5 + $0xce0] sm:$0xff]
    %v477 = vld [vmem:[#allocation5 + $0xce8] sm:$0xff]
    %v478 = vld [vmem:[#allocation5 + $0xcf0] sm:$0xff]
    %v479 = vld [vmem:[#allocation5 + $0xcf8] sm:$0xff]
    %v480 = vld [vmem:[#allocation5 + $0xd00] sm:$0xff]
    %v481 = vld [vmem:[#allocation5 + $0xd08] sm:$0xff]
    %v482 = vld [vmem:[#allocation5 + $0xd10] sm:$0xff]
    %v483 = vld [vmem:[#allocation5 + $0xd18] sm:$0xff]
    %v484 = vld [vmem:[#allocation5 + $0xd20] sm:$0xff]
    %v485 = vld [vmem:[#allocation5 + $0xd28] sm:$0xff]
    %v486 = vld [vmem:[#allocation5 + $0xd30] sm:$0xff]
    %v487 = vld [vmem:[#allocation5 + $0xd38] sm:$0xff]
    %v488 = vld [vmem:[#allocation5 + $0xd40] sm:$0xff]
    %v489 = vld [vmem:[#allocation5 + $0xd48] sm:$0xff]
    %v490 = vld [vmem:[#allocation5 + $0xd50] sm:$0xff]
    %v491 = vld [vmem:[#allocation5 + $0xd58] sm:$0xff]
    %v492 = vld [vmem:[#allocation5 + $0xd60] sm:$0xff]
    %v493 = vld [vmem:[#allocation5 + $0xd68] sm:$0xff]
    %v494 = vld [vmem:[#allocation5 + $0xd70] sm:$0xff]
    %v495 = vld [vmem:[#allocation5 + $0xd78] sm:$0xff]
    %v496 = vld [vmem:[#allocation5 + $0xd80] sm:$0xff]
    %v497 = vld [vmem:[#allocation5 + $0xd88] sm:$0xff]
    %v498 = vld [vmem:[#allocation5 + $0xd90] sm:$0xff]
    %v499 = vld [vmem:[#allocation5 + $0xd98] sm:$0xff]
    %v500 = vld [vmem:[#allocation5 + $0xda0] sm:$0xff]
    %v501 = vld [vmem:[#allocation5 + $0xda8] sm:$0xff]
    %v502 = vld [vmem:[#allocation5 + $0xdb0] sm:$0xff]
    %v503 = vld [vmem:[#allocation5 + $0xdb8] sm:$0xff]
    %v504 = vld [vmem:[#allocation5 + $0xdc0] sm:$0xff]
    %v505 = vld [vmem:[#allocation5 + $0xdc8] sm:$0xff]
    %v506 = vld [vmem:[#allocation5 + $0xdd0] sm:$0xff]
    %v507 = vld [vmem:[#allocation5 + $0xdd8] sm:$0xff]
    %v508 = vld [vmem:[#allocation5 + $0xde0] sm:$0xff]
    %v509 = vld [vmem:[#allocation5 + $0xde8] sm:$0xff]
    %v510 = vld [vmem:[#allocation5 + $0xdf0] sm:$0xff]
    %v511 = vld [vmem:[#allocation5 + $0xdf8] sm:$0xff]
    %v512 = vld [vmem:[#allocation5 + $0xe00] sm:$0xff]
    %v513 = vld [vmem:[#allocation5 + $0xe08] sm:$0xff]
    %v514 = vld [vmem:[#allocation5 + $0xe10] sm:$0xff]
    %v515 = vld [vmem:[#allocation5 + $0xe18] sm:$0xff]
    %v516 = vld [vmem:[#allocation5 + $0xe20] sm:$0xff]
    %v517 = vld [vmem:[#allocation5 + $0xe28] sm:$0xff]
    %v518 = vld [vmem:[#allocation5 + $0xe30] sm:$0xff]
    %v519 = vld [vmem:[#allocation5 + $0xe38] sm:$0xff]
    %v520 = vld [vmem:[#allocation5 + $0xe40] sm:$0xff]
    %v521 = vld [vmem:[#allocation5 + $0xe48] sm:$0xff]
    %v522 = vld [vmem:[#allocation5 + $0xe50] sm:$0xff]
    %v523 = vld [vmem:[#allocation5 + $0xe58] sm:$0xff]
    %v524 = vld [vmem:[#allocation5 + $0xe60] sm:$0xff]
    %v525 = vld [vmem:[#allocation5 + $0xe68] sm:$0xff]
    %v526 = vld [vmem:[#allocation5 + $0xe70] sm:$0xff]
    %v527 = vld [vmem:[#allocation5 + $0xe78] sm:$0xff]
    %v528 = vld [vmem:[#allocation5 + $0xe80] sm:$0xff]
    %v529 = vld [vmem:[#allocation5 + $0xe88] sm:$0xff]
    %v530 = vld [vmem:[#allocation5 + $0xe90] sm:$0xff]
    %v531 = vld [vmem:[#allocation5 + $0xe98] sm:$0xff]
    %v532 = vld [vmem:[#allocation5 + $0xea0] sm:$0xff]
    %v533 = vld [vmem:[#allocation5 + $0xea8] sm:$0xff]
    %v534 = vld [vmem:[#allocation5 + $0xeb0] sm:$0xff]
    %v535 = vld [vmem:[#allocation5 + $0xeb8] sm:$0xff]
    %v536 = vld [vmem:[#allocation5 + $0xec0] sm:$0xff]
    %v537 = vld [vmem:[#allocation5 + $0xec8] sm:$0xff]
    %v538 = vld [vmem:[#allocation5 + $0xed0] sm:$0xff]
    %v539 = vld [vmem:[#allocation5 + $0xed8] sm:$0xff]
    %v540 = vld [vmem:[#allocation5 + $0xee0] sm:$0xff]
    %v541 = vld [vmem:[#allocation5 + $0xee8] sm:$0xff]
    %v542 = vld [vmem:[#allocation5 + $0xef0] sm:$0xff]
    %v543 = vld [vmem:[#allocation5 + $0xef8] sm:$0xff]
    %v544 = vld [vmem:[#allocation5 + $0xf00] sm:$0xff]
    %v545 = vld [vmem:[#allocation5 + $0xf08] sm:$0xff]
    %v546 = vld [vmem:[#allocation5 + $0xf10] sm:$0xff]
    %v547 = vld [vmem:[#allocation5 + $0xf18] sm:$0xff]
    %v548 = vld [vmem:[#allocation5 + $0xf20] sm:$0xff]
    %v549 = vld [vmem:[#allocation5 + $0xf28] sm:$0xff]
    %v550 = vld [vmem:[#allocation5 + $0xf30] sm:$0xff]
    %v551 = vld [vmem:[#allocation5 + $0xf38] sm:$0xff]
    %v552 = vld [vmem:[#allocation5 + $0xf40] sm:$0xff]
    %v553 = vld [vmem:[#allocation5 + $0xf48] sm:$0xff]
    %v554 = vld [vmem:[#allocation5 + $0xf50] sm:$0xff]
    %v555 = vld [vmem:[#allocation5 + $0xf58] sm:$0xff]
    %v556 = vld [vmem:[#allocation5 + $0xf60] sm:$0xff]
    %v557 = vld [vmem:[#allocation5 + $0xf68] sm:$0xff]
    %v558 = vld [vmem:[#allocation5 + $0xf70] sm:$0xff]
    %v559 = vld [vmem:[#allocation5 + $0xf78] sm:$0xff]
    %v560 = vld [vmem:[#allocation5 + $0xf80] sm:$0xff]
    %v561 = vld [vmem:[#allocation5 + $0xf88] sm:$0xff]
    %v562 = vld [vmem:[#allocation5 + $0xf90] sm:$0xff]
    %v563 = vld [vmem:[#allocation5 + $0xf98] sm:$0xff]
    %v564 = vld [vmem:[#allocation5 + $0xfa0] sm:$0xff]
    %v565 = vld [vmem:[#allocation5 + $0xfa8] sm:$0xff]
    %v566 = vld [vmem:[#allocation5 + $0xfb0] sm:$0xff]
    %v567 = vld [vmem:[#allocation5 + $0xfb8] sm:$0xff]
    %v568 = vld [vmem:[#allocation5 + $0xfc0] sm:$0xff]
    %v569 = vld [vmem:[#allocation5 + $0xfc8] sm:$0xff]
    %v570 = vld [vmem:[#allocation5 + $0xfd0] sm:$0xff]
    %v571 = vld [vmem:[#allocation5 + $0xfd8] sm:$0xff]
    %v572 = vld [vmem:[#allocation5 + $0xfe0] sm:$0xff]
    %v573 = vld [vmem:[#allocation5 + $0xfe8] sm:$0xff]
    %v574 = vld [vmem:[#allocation5 + $0xff0] sm:$0xff]
    %v575 = vld [vmem:[#allocation5 + $0xff8] sm:$0xff]
    %v576 = vld [vmem:[#allocation5 + $0x1000] sm:$0xff]
    %v577 = vld [vmem:[#allocation5 + $0x1008] sm:$0xff]
    %v578 = vld [vmem:[#allocation5 + $0x1010] sm:$0xff]
    %v579 = vld [vmem:[#allocation5 + $0x1018] sm:$0xff]
    %v580 = vld [vmem:[#allocation5 + $0x1020] sm:$0xff]
    %v581 = vld [vmem:[#allocation5 + $0x1028] sm:$0xff]
    %v582 = vld [vmem:[#allocation5 + $0x1030] sm:$0xff]
    %v583 = vld [vmem:[#allocation5 + $0x1038] sm:$0xff]
    %v584 = vld [vmem:[#allocation5 + $0x1040] sm:$0xff]
    %v585 = vld [vmem:[#allocation5 + $0x1048] sm:$0xff]
    %v586 = vld [vmem:[#allocation5 + $0x1050] sm:$0xff]
    %v587 = vld [vmem:[#allocation5 + $0x1058] sm:$0xff]
    %v588 = vld [vmem:[#allocation5 + $0x1060] sm:$0xff]
    %v589 = vld [vmem:[#allocation5 + $0x1068] sm:$0xff]
    %v590 = vld [vmem:[#allocation5 + $0x1070] sm:$0xff]
    %v591 = vld [vmem:[#allocation5 + $0x1078] sm:$0xff]
    %v592 = vld [vmem:[#allocation5 + $0x1080] sm:$0xff]
    %v593 = vld [vmem:[#allocation5 + $0x1088] sm:$0xff]
    %v594 = vld [vmem:[#allocation5 + $0x1090] sm:$0xff]
    %v595 = vld [vmem:[#allocation5 + $0x1098] sm:$0xff]
    %v596 = vld [vmem:[#allocation5 + $0x10a0] sm:$0xff]
    %v597 = vld [vmem:[#allocation5 + $0x10a8] sm:$0xff]
    %v598 = vld [vmem:[#allocation5 + $0x10b0] sm:$0xff]
    %v599 = vld [vmem:[#allocation5 + $0x10b8] sm:$0xff]
    %v600 = vld [vmem:[#allocation5 + $0x10c0] sm:$0xff]
    %v601 = vld [vmem:[#allocation5 + $0x10c8] sm:$0xff]
    %v602 = vld [vmem:[#allocation5 + $0x10d0] sm:$0xff]
    %v603 = vld [vmem:[#allocation5 + $0x10d8] sm:$0xff]
    %v604 = vld [vmem:[#allocation5 + $0x10e0] sm:$0xff]
    %v605 = vld [vmem:[#allocation5 + $0x10e8] sm:$0xff]
    %v606 = vld [vmem:[#allocation5 + $0x10f0] sm:$0xff]
    %v607 = vld [vmem:[#allocation5 + $0x10f8] sm:$0xff]
    %v608 = vld [vmem:[#allocation5 + $0x1100] sm:$0xff]
    %v609 = vld [vmem:[#allocation5 + $0x1108] sm:$0xff]
    %v610 = vld [vmem:[#allocation5 + $0x1110] sm:$0xff]
    %v611 = vld [vmem:[#allocation5 + $0x1118] sm:$0xff]
    %v612 = vld [vmem:[#allocation5 + $0x1120] sm:$0xff]
    %v613 = vld [vmem:[#allocation5 + $0x1128] sm:$0xff]
    %v614 = vld [vmem:[#allocation5 + $0x1130] sm:$0xff]
    %v615 = vld [vmem:[#allocation5 + $0x1138] sm:$0xff]
    %v616 = vld [vmem:[#allocation5 + $0x1140] sm:$0xff]
    %v617 = vld [vmem:[#allocation5 + $0x1148] sm:$0xff]
    %v618 = vld [vmem:[#allocation5 + $0x1150] sm:$0xff]
    %v619 = vld [vmem:[#allocation5 + $0x1158] sm:$0xff]
    %v620 = vld [vmem:[#allocation5 + $0x1160] sm:$0xff]
    %v621 = vld [vmem:[#allocation5 + $0x1168] sm:$0xff]
    %v622 = vld [vmem:[#allocation5 + $0x1170] sm:$0xff]
    %v623 = vld [vmem:[#allocation5 + $0x1178] sm:$0xff]
    %v624 = vld [vmem:[#allocation5 + $0x1180] sm:$0xff]
    %v625 = vld [vmem:[#allocation5 + $0x1188] sm:$0xff]
    %v626 = vld [vmem:[#allocation5 + $0x1190] sm:$0xff]
    %v627 = vld [vmem:[#allocation5 + $0x1198] sm:$0xff]
    %v628 = vld [vmem:[#allocation5 + $0x11a0] sm:$0xff]
    %v629 = vld [vmem:[#allocation5 + $0x11a8] sm:$0xff]
    %v630 = vld [vmem:[#allocation5 + $0x11b0] sm:$0xff]
    %v631 = vld [vmem:[#allocation5 + $0x11b8] sm:$0xff]
    %v632 = vld [vmem:[#allocation5 + $0x11c0] sm:$0xff]
    %v633 = vld [vmem:[#allocation5 + $0x11c8] sm:$0xff]
    %v634 = vld [vmem:[#allocation5 + $0x11d0] sm:$0xff]
    %v635 = vld [vmem:[#allocation5 + $0x11d8] sm:$0xff]
    %v636 = vld [vmem:[#allocation5 + $0x11e0] sm:$0xff]
    %v637 = vld [vmem:[#allocation5 + $0x11e8] sm:$0xff]
    %v638 = vld [vmem:[#allocation5 + $0x11f0] sm:$0xff]
    %v639 = vld [vmem:[#allocation5 + $0x11f8] sm:$0xff]
    %v640 = vld [vmem:[#allocation7] sm:$0x3f]
    %v642 = vperm.slane %v640, 0
    %v643 = vperm.slane %v640, 1
    %v644 = vperm.slane %v640, 2
    %v645 = vperm.slane %v640, 3
    %v646 = vperm.slane %v640, 4
    %v647 = vperm.slane %v640, 5
    %654 = vmatpush.msra.mxu0 %v154
    %655 = vmatpush.msra.mxu0 %v148
    %656 = vmatpush.msra.mxu0 %v142
    %657 = vmatpush.msra.mxu0 %v136
    %658 = vmatpush.msra.mxu0 %v130
    %659 = vmatpush.msra.mxu0 %v124
    %660 = vmatpush.msra.mxu0 %v118
    %661 = vmatpush.msra.mxu0 %v112
    %662 = vmatpush.msra.mxu0 %v106
    %663 = vmatpush.msra.mxu0 %v100
    %664 = vmatpush.msra.mxu0 %v94
    %665 = vmatpush.msra.mxu0 %v88
    %666 = vmatpush.msra.mxu0 %v82
    %667 = vmatpush.msra.mxu0 %v76
    %668 = vmatpush.msra.mxu0 %v70
    %669 = vmatpush.msra.mxu0 %v64
    %670 = vmatmul.f32.gmra.mxu0 %v58
    %v671 = vpop.f32.mrf.mxu0
    %v672 = vadd.f32 %v642, %v671
    %673 = vdwg.mxu0
    %674 = vmatpush.msra.mxu0 %v250
    %675 = vmatpush.msra.mxu0 %v244
    %676 = vmatpush.msra.mxu0 %v238
    %677 = vmatpush.msra.mxu0 %v232
    %678 = vmatpush.msra.mxu0 %v226
    %679 = vmatpush.msra.mxu0 %v220
    %680 = vmatpush.msra.mxu0 %v214
    %681 = vmatpush.msra.mxu0 %v208
    %682 = vmatpush.msra.mxu0 %v202
    %683 = vmatpush.msra.mxu0 %v196
    %684 = vmatpush.msra.mxu0 %v190
    %685 = vmatpush.msra.mxu0 %v184
    %686 = vmatpush.msra.mxu0 %v178
    %687 = vmatpush.msra.mxu0 %v172
    %688 = vmatpush.msra.mxu0 %v166
    %689 = vmatpush.msra.mxu0 %v160
    %690 = vmatmul.f32.gmra.mxu0 %v59
    %v691 = vpop.f32.mrf.mxu0
    %v692 = vadd.f32 %v672, %v691
    %693 = vdwg.mxu0
    %694 = vmatpush.msra.mxu0 %v346
    %695 = vmatpush.msra.mxu0 %v340
    %696 = vmatpush.msra.mxu0 %v334
    %697 = vmatpush.msra.mxu0 %v328
    %698 = vmatpush.msra.mxu0 %v322
    %699 = vmatpush.msra.mxu0 %v316
    %700 = vmatpush.msra.mxu0 %v310
    %701 = vmatpush.msra.mxu0 %v304
    %702 = vmatpush.msra.mxu0 %v298
    %703 = vmatpush.msra.mxu0 %v292
    %704 = vmatpush.msra.mxu0 %v286
    %705 = vmatpush.msra.mxu0 %v280
    %706 = vmatpush.msra.mxu0 %v274
    %707 = vmatpush.msra.mxu0 %v268
    %708 = vmatpush.msra.mxu0 %v262
    %709 = vmatpush.msra.mxu0 %v256
    %710 = vmatmul.f32.gmra.mxu0 %v60
    %v711 = vpop.f32.mrf.mxu0
    %v712 = vadd.f32 %v692, %v711
    %713 = vdwg.mxu0
    %714 = vmatpush.msra.mxu0 %v442
    %715 = vmatpush.msra.mxu0 %v436
    %716 = vmatpush.msra.mxu0 %v430
    %717 = vmatpush.msra.mxu0 %v424
    %718 = vmatpush.msra.mxu0 %v418
    %719 = vmatpush.msra.mxu0 %v412
    %720 = vmatpush.msra.mxu0 %v406
    %721 = vmatpush.msra.mxu0 %v400
    %722 = vmatpush.msra.mxu0 %v394
    %723 = vmatpush.msra.mxu0 %v388
    %724 = vmatpush.msra.mxu0 %v382
    %725 = vmatpush.msra.mxu0 %v376
    %726 = vmatpush.msra.mxu0 %v370
    %727 = vmatpush.msra.mxu0 %v364
    %728 = vmatpush.msra.mxu0 %v358
    %729 = vmatpush.msra.mxu0 %v352
    %730 = vmatmul.f32.gmra.mxu0 %v61
    %v731 = vpop.f32.mrf.mxu0
    %v732 = vadd.f32 %v712, %v731
    %733 = vdwg.mxu0
    %734 = vmatpush.msra.mxu0 %v538
    %735 = vmatpush.msra.mxu0 %v532
    %736 = vmatpush.msra.mxu0 %v526
    %737 = vmatpush.msra.mxu0 %v520
    %738 = vmatpush.msra.mxu0 %v514
    %739 = vmatpush.msra.mxu0 %v508
    %740 = vmatpush.msra.mxu0 %v502
    %741 = vmatpush.msra.mxu0 %v496
    %742 = vmatpush.msra.mxu0 %v490
    %743 = vmatpush.msra.mxu0 %v484
    %744 = vmatpush.msra.mxu0 %v478
    %745 = vmatpush.msra.mxu0 %v472
    %746 = vmatpush.msra.mxu0 %v466
    %747 = vmatpush.msra.mxu0 %v460
    %748 = vmatpush.msra.mxu0 %v454
    %749 = vmatpush.msra.mxu0 %v448
    %750 = vmatmul.f32.gmra.mxu0 %v62
    %v751 = vpop.f32.mrf.mxu0
    %v752 = vadd.f32 %v732, %v751
    %753 = vdwg.mxu0
    %754 = vmatpush.msra.mxu0 %v634
    %755 = vmatpush.msra.mxu0 %v628
    %756 = vmatpush.msra.mxu0 %v622
    %757 = vmatpush.msra.mxu0 %v616
    %758 = vmatpush.msra.mxu0 %v610
    %759 = vmatpush.msra.mxu0 %v604
    %760 = vmatpush.msra.mxu0 %v598
    %761 = vmatpush.msra.mxu0 %v592
    %762 = vmatpush.msra.mxu0 %v586
    %763 = vmatpush.msra.mxu0 %v580
    %764 = vmatpush.msra.mxu0 %v574
    %765 = vmatpush.msra.mxu0 %v568
    %766 = vmatpush.msra.mxu0 %v562
    %767 = vmatpush.msra.mxu0 %v556
    %768 = vmatpush.msra.mxu0 %v550
    %769 = vmatpush.msra.mxu0 %v544
    %770 = vmatmul.f32.gmra.mxu0 %v63
    %v771 = vpop.f32.mrf.mxu0
    %v772 = vadd.f32 %v752, %v771
    %773 = vdwg.mxu0
    %774 = vmatpush.msra.mxu0 %v155
    %775 = vmatpush.msra.mxu0 %v149
    %776 = vmatpush.msra.mxu0 %v143
    %777 = vmatpush.msra.mxu0 %v137
    %778 = vmatpush.msra.mxu0 %v131
    %779 = vmatpush.msra.mxu0 %v125
    %780 = vmatpush.msra.mxu0 %v119
    %781 = vmatpush.msra.mxu0 %v113
    %782 = vmatpush.msra.mxu0 %v107
    %783 = vmatpush.msra.mxu0 %v101
    %784 = vmatpush.msra.mxu0 %v95
    %785 = vmatpush.msra.mxu0 %v89
    %786 = vmatpush.msra.mxu0 %v83
    %787 = vmatpush.msra.mxu0 %v77
    %788 = vmatpush.msra.mxu0 %v71
    %789 = vmatpush.msra.mxu0 %v65
    %790 = vmatmul.f32.gmra.mxu0 %v58
    %v791 = vpop.f32.mrf.mxu0
    %v792 = vadd.f32 %v643, %v791
    %793 = vdwg.mxu0
    %794 = vmatpush.msra.mxu0 %v251
    %795 = vmatpush.msra.mxu0 %v245
    %796 = vmatpush.msra.mxu0 %v239
    %797 = vmatpush.msra.mxu0 %v233
    %798 = vmatpush.msra.mxu0 %v227
    %799 = vmatpush.msra.mxu0 %v221
    %800 = vmatpush.msra.mxu0 %v215
    %801 = vmatpush.msra.mxu0 %v209
    %802 = vmatpush.msra.mxu0 %v203
    %803 = vmatpush.msra.mxu0 %v197
    %804 = vmatpush.msra.mxu0 %v191
    %805 = vmatpush.msra.mxu0 %v185
    %806 = vmatpush.msra.mxu0 %v179
    %807 = vmatpush.msra.mxu0 %v173
    %808 = vmatpush.msra.mxu0 %v167
    %809 = vmatpush.msra.mxu0 %v161
    %810 = vmatmul.f32.gmra.mxu0 %v59
    %v811 = vpop.f32.mrf.mxu0
    %v812 = vadd.f32 %v792, %v811
    %813 = vdwg.mxu0
    %814 = vmatpush.msra.mxu0 %v347
    %815 = vmatpush.msra.mxu0 %v341
    %816 = vmatpush.msra.mxu0 %v335
    %817 = vmatpush.msra.mxu0 %v329
    %818 = vmatpush.msra.mxu0 %v323
    %819 = vmatpush.msra.mxu0 %v317
    %820 = vmatpush.msra.mxu0 %v311
    %821 = vmatpush.msra.mxu0 %v305
    %822 = vmatpush.msra.mxu0 %v299
    %823 = vmatpush.msra.mxu0 %v293
    %824 = vmatpush.msra.mxu0 %v287
    %825 = vmatpush.msra.mxu0 %v281
    %826 = vmatpush.msra.mxu0 %v275
    %827 = vmatpush.msra.mxu0 %v269
    %828 = vmatpush.msra.mxu0 %v263
    %829 = vmatpush.msra.mxu0 %v257
    %830 = vmatmul.f32.gmra.mxu0 %v60
    %v831 = vpop.f32.mrf.mxu0
    %v832 = vadd.f32 %v812, %v831
    %833 = vdwg.mxu0
    %834 = vmatpush.msra.mxu0 %v443
    %835 = vmatpush.msra.mxu0 %v437
    %836 = vmatpush.msra.mxu0 %v431
    %837 = vmatpush.msra.mxu0 %v425
    %838 = vmatpush.msra.mxu0 %v419
    %839 = vmatpush.msra.mxu0 %v413
    %840 = vmatpush.msra.mxu0 %v407
    %841 = vmatpush.msra.mxu0 %v401
    %842 = vmatpush.msra.mxu0 %v395
    %843 = vmatpush.msra.mxu0 %v389
    %844 = vmatpush.msra.mxu0 %v383
    %845 = vmatpush.msra.mxu0 %v377
    %846 = vmatpush.msra.mxu0 %v371
    %847 = vmatpush.msra.mxu0 %v365
    %848 = vmatpush.msra.mxu0 %v359
    %849 = vmatpush.msra.mxu0 %v353
    %850 = vmatmul.f32.gmra.mxu0 %v61
    %v851 = vpop.f32.mrf.mxu0
    %v852 = vadd.f32 %v832, %v851
    %853 = vdwg.mxu0
    %854 = vmatpush.msra.mxu0 %v539
    %855 = vmatpush.msra.mxu0 %v533
    %856 = vmatpush.msra.mxu0 %v527
    %857 = vmatpush.msra.mxu0 %v521
    %858 = vmatpush.msra.mxu0 %v515
    %859 = vmatpush.msra.mxu0 %v509
    %860 = vmatpush.msra.mxu0 %v503
    %861 = vmatpush.msra.mxu0 %v497
    %862 = vmatpush.msra.mxu0 %v491
    %863 = vmatpush.msra.mxu0 %v485
    %864 = vmatpush.msra.mxu0 %v479
    %865 = vmatpush.msra.mxu0 %v473
    %866 = vmatpush.msra.mxu0 %v467
    %867 = vmatpush.msra.mxu0 %v461
    %868 = vmatpush.msra.mxu0 %v455
    %869 = vmatpush.msra.mxu0 %v449
    %870 = vmatmul.f32.gmra.mxu0 %v62
    %v871 = vpop.f32.mrf.mxu0
    %v872 = vadd.f32 %v852, %v871
    %873 = vdwg.mxu0
    %874 = vmatpush.msra.mxu0 %v635
    %875 = vmatpush.msra.mxu0 %v629
    %876 = vmatpush.msra.mxu0 %v623
    %877 = vmatpush.msra.mxu0 %v617
    %878 = vmatpush.msra.mxu0 %v611
    %879 = vmatpush.msra.mxu0 %v605
    %880 = vmatpush.msra.mxu0 %v599
    %881 = vmatpush.msra.mxu0 %v593
    %882 = vmatpush.msra.mxu0 %v587
    %883 = vmatpush.msra.mxu0 %v581
    %884 = vmatpush.msra.mxu0 %v575
    %885 = vmatpush.msra.mxu0 %v569
    %886 = vmatpush.msra.mxu0 %v563
    %887 = vmatpush.msra.mxu0 %v557
    %888 = vmatpush.msra.mxu0 %v551
    %889 = vmatpush.msra.mxu0 %v545
    %890 = vmatmul.f32.gmra.mxu0 %v63
    %v891 = vpop.f32.mrf.mxu0
    %v892 = vadd.f32 %v872, %v891
    %893 = vdwg.mxu0
    %894 = vmatpush.msra.mxu0 %v156
    %895 = vmatpush.msra.mxu0 %v150
    %896 = vmatpush.msra.mxu0 %v144
    %897 = vmatpush.msra.mxu0 %v138
    %898 = vmatpush.msra.mxu0 %v132
    %899 = vmatpush.msra.mxu0 %v126
    %900 = vmatpush.msra.mxu0 %v120
    %901 = vmatpush.msra.mxu0 %v114
    %902 = vmatpush.msra.mxu0 %v108
    %903 = vmatpush.msra.mxu0 %v102
    %904 = vmatpush.msra.mxu0 %v96
    %905 = vmatpush.msra.mxu0 %v90
    %906 = vmatpush.msra.mxu0 %v84
    %907 = vmatpush.msra.mxu0 %v78
    %908 = vmatpush.msra.mxu0 %v72
    %909 = vmatpush.msra.mxu0 %v66
    %910 = vmatmul.f32.gmra.mxu0 %v58
    %v911 = vpop.f32.mrf.mxu0
    %v912 = vadd.f32 %v644, %v911
    %913 = vdwg.mxu0
    %914 = vmatpush.msra.mxu0 %v252
    %915 = vmatpush.msra.mxu0 %v246
    %916 = vmatpush.msra.mxu0 %v240
    %917 = vmatpush.msra.mxu0 %v234
    %918 = vmatpush.msra.mxu0 %v228
    %919 = vmatpush.msra.mxu0 %v222
    %920 = vmatpush.msra.mxu0 %v216
    %921 = vmatpush.msra.mxu0 %v210
    %922 = vmatpush.msra.mxu0 %v204
    %923 = vmatpush.msra.mxu0 %v198
    %924 = vmatpush.msra.mxu0 %v192
    %925 = vmatpush.msra.mxu0 %v186
    %926 = vmatpush.msra.mxu0 %v180
    %927 = vmatpush.msra.mxu0 %v174
    %928 = vmatpush.msra.mxu0 %v168
    %929 = vmatpush.msra.mxu0 %v162
    %930 = vmatmul.f32.gmra.mxu0 %v59
    %v931 = vpop.f32.mrf.mxu0
    %v932 = vadd.f32 %v912, %v931
    %933 = vdwg.mxu0
    %934 = vmatpush.msra.mxu0 %v348
    %935 = vmatpush.msra.mxu0 %v342
    %936 = vmatpush.msra.mxu0 %v336
    %937 = vmatpush.msra.mxu0 %v330
    %938 = vmatpush.msra.mxu0 %v324
    %939 = vmatpush.msra.mxu0 %v318
    %940 = vmatpush.msra.mxu0 %v312
    %941 = vmatpush.msra.mxu0 %v306
    %942 = vmatpush.msra.mxu0 %v300
    %943 = vmatpush.msra.mxu0 %v294
    %944 = vmatpush.msra.mxu0 %v288
    %945 = vmatpush.msra.mxu0 %v282
    %946 = vmatpush.msra.mxu0 %v276
    %947 = vmatpush.msra.mxu0 %v270
    %948 = vmatpush.msra.mxu0 %v264
    %949 = vmatpush.msra.mxu0 %v258
    %950 = vmatmul.f32.gmra.mxu0 %v60
    %v951 = vpop.f32.mrf.mxu0
    %v952 = vadd.f32 %v932, %v951
    %953 = vdwg.mxu0
    %954 = vmatpush.msra.mxu0 %v444
    %955 = vmatpush.msra.mxu0 %v438
    %956 = vmatpush.msra.mxu0 %v432
    %957 = vmatpush.msra.mxu0 %v426
    %958 = vmatpush.msra.mxu0 %v420
    %959 = vmatpush.msra.mxu0 %v414
    %960 = vmatpush.msra.mxu0 %v408
    %961 = vmatpush.msra.mxu0 %v402
    %962 = vmatpush.msra.mxu0 %v396
    %963 = vmatpush.msra.mxu0 %v390
    %964 = vmatpush.msra.mxu0 %v384
    %965 = vmatpush.msra.mxu0 %v378
    %966 = vmatpush.msra.mxu0 %v372
    %967 = vmatpush.msra.mxu0 %v366
    %968 = vmatpush.msra.mxu0 %v360
    %969 = vmatpush.msra.mxu0 %v354
    %970 = vmatmul.f32.gmra.mxu0 %v61
    %v971 = vpop.f32.mrf.mxu0
    %v972 = vadd.f32 %v952, %v971
    %973 = vdwg.mxu0
    %974 = vmatpush.msra.mxu0 %v540
    %975 = vmatpush.msra.mxu0 %v534
    %976 = vmatpush.msra.mxu0 %v528
    %977 = vmatpush.msra.mxu0 %v522
    %978 = vmatpush.msra.mxu0 %v516
    %979 = vmatpush.msra.mxu0 %v510
    %980 = vmatpush.msra.mxu0 %v504
    %981 = vmatpush.msra.mxu0 %v498
    %982 = vmatpush.msra.mxu0 %v492
    %983 = vmatpush.msra.mxu0 %v486
    %984 = vmatpush.msra.mxu0 %v480
    %985 = vmatpush.msra.mxu0 %v474
    %986 = vmatpush.msra.mxu0 %v468
    %987 = vmatpush.msra.mxu0 %v462
    %988 = vmatpush.msra.mxu0 %v456
    %989 = vmatpush.msra.mxu0 %v450
    %990 = vmatmul.f32.gmra.mxu0 %v62
    %v991 = vpop.f32.mrf.mxu0
    %v992 = vadd.f32 %v972, %v991
    %993 = vdwg.mxu0
    %994 = vmatpush.msra.mxu0 %v636
    %995 = vmatpush.msra.mxu0 %v630
    %996 = vmatpush.msra.mxu0 %v624
    %997 = vmatpush.msra.mxu0 %v618
    %998 = vmatpush.msra.mxu0 %v612
    %999 = vmatpush.msra.mxu0 %v606
    %1000 = vmatpush.msra.mxu0 %v600
    %1001 = vmatpush.msra.mxu0 %v594
    %1002 = vmatpush.msra.mxu0 %v588
    %1003 = vmatpush.msra.mxu0 %v582
    %1004 = vmatpush.msra.mxu0 %v576
    %1005 = vmatpush.msra.mxu0 %v570
    %1006 = vmatpush.msra.mxu0 %v564
    %1007 = vmatpush.msra.mxu0 %v558
    %1008 = vmatpush.msra.mxu0 %v552
    %1009 = vmatpush.msra.mxu0 %v546
    %1010 = vmatmul.f32.gmra.mxu0 %v63
    %v1011 = vpop.f32.mrf.mxu0
    %v1012 = vadd.f32 %v992, %v1011
    %1013 = vdwg.mxu0
    %1014 = vmatpush.msra.mxu0 %v157
    %1015 = vmatpush.msra.mxu0 %v151
    %1016 = vmatpush.msra.mxu0 %v145
    %1017 = vmatpush.msra.mxu0 %v139
    %1018 = vmatpush.msra.mxu0 %v133
    %1019 = vmatpush.msra.mxu0 %v127
    %1020 = vmatpush.msra.mxu0 %v121
    %1021 = vmatpush.msra.mxu0 %v115
    %1022 = vmatpush.msra.mxu0 %v109
    %1023 = vmatpush.msra.mxu0 %v103
    %1024 = vmatpush.msra.mxu0 %v97
    %1025 = vmatpush.msra.mxu0 %v91
    %1026 = vmatpush.msra.mxu0 %v85
    %1027 = vmatpush.msra.mxu0 %v79
    %1028 = vmatpush.msra.mxu0 %v73
    %1029 = vmatpush.msra.mxu0 %v67
    %1030 = vmatmul.f32.gmra.mxu0 %v58
    %v1031 = vpop.f32.mrf.mxu0
    %v1032 = vadd.f32 %v645, %v1031
    %1033 = vdwg.mxu0
    %1034 = vmatpush.msra.mxu0 %v253
    %1035 = vmatpush.msra.mxu0 %v247
    %1036 = vmatpush.msra.mxu0 %v241
    %1037 = vmatpush.msra.mxu0 %v235
    %1038 = vmatpush.msra.mxu0 %v229
    %1039 = vmatpush.msra.mxu0 %v223
    %1040 = vmatpush.msra.mxu0 %v217
    %1041 = vmatpush.msra.mxu0 %v211
    %1042 = vmatpush.msra.mxu0 %v205
    %1043 = vmatpush.msra.mxu0 %v199
    %1044 = vmatpush.msra.mxu0 %v193
    %1045 = vmatpush.msra.mxu0 %v187
    %1046 = vmatpush.msra.mxu0 %v181
    %1047 = vmatpush.msra.mxu0 %v175
    %1048 = vmatpush.msra.mxu0 %v169
    %1049 = vmatpush.msra.mxu0 %v163
    %1050 = vmatmul.f32.gmra.mxu0 %v59
    %v1051 = vpop.f32.mrf.mxu0
    %v1052 = vadd.f32 %v1032, %v1051
    %1053 = vdwg.mxu0
    %1054 = vmatpush.msra.mxu0 %v349
    %1055 = vmatpush.msra.mxu0 %v343
    %1056 = vmatpush.msra.mxu0 %v337
    %1057 = vmatpush.msra.mxu0 %v331
    %1058 = vmatpush.msra.mxu0 %v325
    %1059 = vmatpush.msra.mxu0 %v319
    %1060 = vmatpush.msra.mxu0 %v313
    %1061 = vmatpush.msra.mxu0 %v307
    %1062 = vmatpush.msra.mxu0 %v301
    %1063 = vmatpush.msra.mxu0 %v295
    %1064 = vmatpush.msra.mxu0 %v289
    %1065 = vmatpush.msra.mxu0 %v283
    %1066 = vmatpush.msra.mxu0 %v277
    %1067 = vmatpush.msra.mxu0 %v271
    %1068 = vmatpush.msra.mxu0 %v265
    %1069 = vmatpush.msra.mxu0 %v259
    %1070 = vmatmul.f32.gmra.mxu0 %v60
    %v1071 = vpop.f32.mrf.mxu0
    %v1072 = vadd.f32 %v1052, %v1071
    %1073 = vdwg.mxu0
    %1074 = vmatpush.msra.mxu0 %v445
    %1075 = vmatpush.msra.mxu0 %v439
    %1076 = vmatpush.msra.mxu0 %v433
    %1077 = vmatpush.msra.mxu0 %v427
    %1078 = vmatpush.msra.mxu0 %v421
    %1079 = vmatpush.msra.mxu0 %v415
    %1080 = vmatpush.msra.mxu0 %v409
    %1081 = vmatpush.msra.mxu0 %v403
    %1082 = vmatpush.msra.mxu0 %v397
    %1083 = vmatpush.msra.mxu0 %v391
    %1084 = vmatpush.msra.mxu0 %v385
    %1085 = vmatpush.msra.mxu0 %v379
    %1086 = vmatpush.msra.mxu0 %v373
    %1087 = vmatpush.msra.mxu0 %v367
    %1088 = vmatpush.msra.mxu0 %v361
    %1089 = vmatpush.msra.mxu0 %v355
    %1090 = vmatmul.f32.gmra.mxu0 %v61
    %v1091 = vpop.f32.mrf.mxu0
    %v1092 = vadd.f32 %v1072, %v1091
    %1093 = vdwg.mxu0
    %1094 = vmatpush.msra.mxu0 %v541
    %1095 = vmatpush.msra.mxu0 %v535
    %1096 = vmatpush.msra.mxu0 %v529
    %1097 = vmatpush.msra.mxu0 %v523
    %1098 = vmatpush.msra.mxu0 %v517
    %1099 = vmatpush.msra.mxu0 %v511
    %1100 = vmatpush.msra.mxu0 %v505
    %1101 = vmatpush.msra.mxu0 %v499
    %1102 = vmatpush.msra.mxu0 %v493
    %1103 = vmatpush.msra.mxu0 %v487
    %1104 = vmatpush.msra.mxu0 %v481
    %1105 = vmatpush.msra.mxu0 %v475
    %1106 = vmatpush.msra.mxu0 %v469
    %1107 = vmatpush.msra.mxu0 %v463
    %1108 = vmatpush.msra.mxu0 %v457
    %1109 = vmatpush.msra.mxu0 %v451
    %1110 = vmatmul.f32.gmra.mxu0 %v62
    %v1111 = vpop.f32.mrf.mxu0
    %v1112 = vadd.f32 %v1092, %v1111
    %1113 = vdwg.mxu0
    %1114 = vmatpush.msra.mxu0 %v637
    %1115 = vmatpush.msra.mxu0 %v631
    %1116 = vmatpush.msra.mxu0 %v625
    %1117 = vmatpush.msra.mxu0 %v619
    %1118 = vmatpush.msra.mxu0 %v613
    %1119 = vmatpush.msra.mxu0 %v607
    %1120 = vmatpush.msra.mxu0 %v601
    %1121 = vmatpush.msra.mxu0 %v595
    %1122 = vmatpush.msra.mxu0 %v589
    %1123 = vmatpush.msra.mxu0 %v583
    %1124 = vmatpush.msra.mxu0 %v577
    %1125 = vmatpush.msra.mxu0 %v571
    %1126 = vmatpush.msra.mxu0 %v565
    %1127 = vmatpush.msra.mxu0 %v559
    %1128 = vmatpush.msra.mxu0 %v553
    %1129 = vmatpush.msra.mxu0 %v547
    %1130 = vmatmul.f32.gmra.mxu0 %v63
    %v1131 = vpop.f32.mrf.mxu0
    %v1132 = vadd.f32 %v1112, %v1131
    %1133 = vdwg.mxu0
    %1134 = vmatpush.msra.mxu0 %v158
    %1135 = vmatpush.msra.mxu0 %v152
    %1136 = vmatpush.msra.mxu0 %v146
    %1137 = vmatpush.msra.mxu0 %v140
    %1138 = vmatpush.msra.mxu0 %v134
    %1139 = vmatpush.msra.mxu0 %v128
    %1140 = vmatpush.msra.mxu0 %v122
    %1141 = vmatpush.msra.mxu0 %v116
    %1142 = vmatpush.msra.mxu0 %v110
    %1143 = vmatpush.msra.mxu0 %v104
    %1144 = vmatpush.msra.mxu0 %v98
    %1145 = vmatpush.msra.mxu0 %v92
    %1146 = vmatpush.msra.mxu0 %v86
    %1147 = vmatpush.msra.mxu0 %v80
    %1148 = vmatpush.msra.mxu0 %v74
    %1149 = vmatpush.msra.mxu0 %v68
    %1150 = vmatmul.f32.gmra.mxu0 %v58
    %v1151 = vpop.f32.mrf.mxu0
    %v1152 = vadd.f32 %v646, %v1151
    %1153 = vdwg.mxu0
    %1154 = vmatpush.msra.mxu0 %v254
    %1155 = vmatpush.msra.mxu0 %v248
    %1156 = vmatpush.msra.mxu0 %v242
    %1157 = vmatpush.msra.mxu0 %v236
    %1158 = vmatpush.msra.mxu0 %v230
    %1159 = vmatpush.msra.mxu0 %v224
    %1160 = vmatpush.msra.mxu0 %v218
    %1161 = vmatpush.msra.mxu0 %v212
    %1162 = vmatpush.msra.mxu0 %v206
    %1163 = vmatpush.msra.mxu0 %v200
    %1164 = vmatpush.msra.mxu0 %v194
    %1165 = vmatpush.msra.mxu0 %v188
    %1166 = vmatpush.msra.mxu0 %v182
    %1167 = vmatpush.msra.mxu0 %v176
    %1168 = vmatpush.msra.mxu0 %v170
    %1169 = vmatpush.msra.mxu0 %v164
    %1170 = vmatmul.f32.gmra.mxu0 %v59
    %v1171 = vpop.f32.mrf.mxu0
    %v1172 = vadd.f32 %v1152, %v1171
    %1173 = vdwg.mxu0
    %1174 = vmatpush.msra.mxu0 %v350
    %1175 = vmatpush.msra.mxu0 %v344
    %1176 = vmatpush.msra.mxu0 %v338
    %1177 = vmatpush.msra.mxu0 %v332
    %1178 = vmatpush.msra.mxu0 %v326
    %1179 = vmatpush.msra.mxu0 %v320
    %1180 = vmatpush.msra.mxu0 %v314
    %1181 = vmatpush.msra.mxu0 %v308
    %1182 = vmatpush.msra.mxu0 %v302
    %1183 = vmatpush.msra.mxu0 %v296
    %1184 = vmatpush.msra.mxu0 %v290
    %1185 = vmatpush.msra.mxu0 %v284
    %1186 = vmatpush.msra.mxu0 %v278
    %1187 = vmatpush.msra.mxu0 %v272
    %1188 = vmatpush.msra.mxu0 %v266
    %1189 = vmatpush.msra.mxu0 %v260
    %1190 = vmatmul.f32.gmra.mxu0 %v60
    %v1191 = vpop.f32.mrf.mxu0
    %v1192 = vadd.f32 %v1172, %v1191
    %1193 = vdwg.mxu0
    %1194 = vmatpush.msra.mxu0 %v446
    %1195 = vmatpush.msra.mxu0 %v440
    %1196 = vmatpush.msra.mxu0 %v434
    %1197 = vmatpush.msra.mxu0 %v428
    %1198 = vmatpush.msra.mxu0 %v422
    %1199 = vmatpush.msra.mxu0 %v416
    %1200 = vmatpush.msra.mxu0 %v410
    %1201 = vmatpush.msra.mxu0 %v404
    %1202 = vmatpush.msra.mxu0 %v398
    %1203 = vmatpush.msra.mxu0 %v392
    %1204 = vmatpush.msra.mxu0 %v386
    %1205 = vmatpush.msra.mxu0 %v380
    %1206 = vmatpush.msra.mxu0 %v374
    %1207 = vmatpush.msra.mxu0 %v368
    %1208 = vmatpush.msra.mxu0 %v362
    %1209 = vmatpush.msra.mxu0 %v356
    %1210 = vmatmul.f32.gmra.mxu0 %v61
    %v1211 = vpop.f32.mrf.mxu0
    %v1212 = vadd.f32 %v1192, %v1211
    %1213 = vdwg.mxu0
    %1214 = vmatpush.msra.mxu0 %v542
    %1215 = vmatpush.msra.mxu0 %v536
    %1216 = vmatpush.msra.mxu0 %v530
    %1217 = vmatpush.msra.mxu0 %v524
    %1218 = vmatpush.msra.mxu0 %v518
    %1219 = vmatpush.msra.mxu0 %v512
    %1220 = vmatpush.msra.mxu0 %v506
    %1221 = vmatpush.msra.mxu0 %v500
    %1222 = vmatpush.msra.mxu0 %v494
    %1223 = vmatpush.msra.mxu0 %v488
    %1224 = vmatpush.msra.mxu0 %v482
    %1225 = vmatpush.msra.mxu0 %v476
    %1226 = vmatpush.msra.mxu0 %v470
    %1227 = vmatpush.msra.mxu0 %v464
    %1228 = vmatpush.msra.mxu0 %v458
    %1229 = vmatpush.msra.mxu0 %v452
    %1230 = vmatmul.f32.gmra.mxu0 %v62
    %v1231 = vpop.f32.mrf.mxu0
    %v1232 = vadd.f32 %v1212, %v1231
    %1233 = vdwg.mxu0
    %1234 = vmatpush.msra.mxu0 %v638
    %1235 = vmatpush.msra.mxu0 %v632
    %1236 = vmatpush.msra.mxu0 %v626
    %1237 = vmatpush.msra.mxu0 %v620
    %1238 = vmatpush.msra.mxu0 %v614
    %1239 = vmatpush.msra.mxu0 %v608
    %1240 = vmatpush.msra.mxu0 %v602
    %1241 = vmatpush.msra.mxu0 %v596
    %1242 = vmatpush.msra.mxu0 %v590
    %1243 = vmatpush.msra.mxu0 %v584
    %1244 = vmatpush.msra.mxu0 %v578
    %1245 = vmatpush.msra.mxu0 %v572
    %1246 = vmatpush.msra.mxu0 %v566
    %1247 = vmatpush.msra.mxu0 %v560
    %1248 = vmatpush.msra.mxu0 %v554
    %1249 = vmatpush.msra.mxu0 %v548
    %1250 = vmatmul.f32.gmra.mxu0 %v63
    %v1251 = vpop.f32.mrf.mxu0
    %v1252 = vadd.f32 %v1232, %v1251
    %1253 = vdwg.mxu0
    %1254 = vmatpush.msra.mxu0 %v159
    %1255 = vmatpush.msra.mxu0 %v153
    %1256 = vmatpush.msra.mxu0 %v147
    %1257 = vmatpush.msra.mxu0 %v141
    %1258 = vmatpush.msra.mxu0 %v135
    %1259 = vmatpush.msra.mxu0 %v129
    %1260 = vmatpush.msra.mxu0 %v123
    %1261 = vmatpush.msra.mxu0 %v117
    %1262 = vmatpush.msra.mxu0 %v111
    %1263 = vmatpush.msra.mxu0 %v105
    %1264 = vmatpush.msra.mxu0 %v99
    %1265 = vmatpush.msra.mxu0 %v93
    %1266 = vmatpush.msra.mxu0 %v87
    %1267 = vmatpush.msra.mxu0 %v81
    %1268 = vmatpush.msra.mxu0 %v75
    %1269 = vmatpush.msra.mxu0 %v69
    %1270 = vmatmul.f32.gmra.mxu0 %v58
    %v1271 = vpop.f32.mrf.mxu0
    %v1272 = vadd.f32 %v647, %v1271
    %1273 = vdwg.mxu0
    %1274 = vmatpush.msra.mxu0 %v255
    %1275 = vmatpush.msra.mxu0 %v249
    %1276 = vmatpush.msra.mxu0 %v243
    %1277 = vmatpush.msra.mxu0 %v237
    %1278 = vmatpush.msra.mxu0 %v231
    %1279 = vmatpush.msra.mxu0 %v225
    %1280 = vmatpush.msra.mxu0 %v219
    %1281 = vmatpush.msra.mxu0 %v213
    %1282 = vmatpush.msra.mxu0 %v207
    %1283 = vmatpush.msra.mxu0 %v201
    %1284 = vmatpush.msra.mxu0 %v195
    %1285 = vmatpush.msra.mxu0 %v189
    %1286 = vmatpush.msra.mxu0 %v183
    %1287 = vmatpush.msra.mxu0 %v177
    %1288 = vmatpush.msra.mxu0 %v171
    %1289 = vmatpush.msra.mxu0 %v165
    %1290 = vmatmul.f32.gmra.mxu0 %v59
    %v1291 = vpop.f32.mrf.mxu0
    %v1292 = vadd.f32 %v1272, %v1291
    %1293 = vdwg.mxu0
    %1294 = vmatpush.msra.mxu0 %v351
    %1295 = vmatpush.msra.mxu0 %v345
    %1296 = vmatpush.msra.mxu0 %v339
    %1297 = vmatpush.msra.mxu0 %v333
    %1298 = vmatpush.msra.mxu0 %v327
    %1299 = vmatpush.msra.mxu0 %v321
    %1300 = vmatpush.msra.mxu0 %v315
    %1301 = vmatpush.msra.mxu0 %v309
    %1302 = vmatpush.msra.mxu0 %v303
    %1303 = vmatpush.msra.mxu0 %v297
    %1304 = vmatpush.msra.mxu0 %v291
    %1305 = vmatpush.msra.mxu0 %v285
    %1306 = vmatpush.msra.mxu0 %v279
    %1307 = vmatpush.msra.mxu0 %v273
    %1308 = vmatpush.msra.mxu0 %v267
    %1309 = vmatpush.msra.mxu0 %v261
    %1310 = vmatmul.f32.gmra.mxu0 %v60
    %v1311 = vpop.f32.mrf.mxu0
    %v1312 = vadd.f32 %v1292, %v1311
    %1313 = vdwg.mxu0
    %1314 = vmatpush.msra.mxu0 %v447
    %1315 = vmatpush.msra.mxu0 %v441
    %1316 = vmatpush.msra.mxu0 %v435
    %1317 = vmatpush.msra.mxu0 %v429
    %1318 = vmatpush.msra.mxu0 %v423
    %1319 = vmatpush.msra.mxu0 %v417
    %1320 = vmatpush.msra.mxu0 %v411
    %1321 = vmatpush.msra.mxu0 %v405
    %1322 = vmatpush.msra.mxu0 %v399
    %1323 = vmatpush.msra.mxu0 %v393
    %1324 = vmatpush.msra.mxu0 %v387
    %1325 = vmatpush.msra.mxu0 %v381
    %1326 = vmatpush.msra.mxu0 %v375
    %1327 = vmatpush.msra.mxu0 %v369
    %1328 = vmatpush.msra.mxu0 %v363
    %1329 = vmatpush.msra.mxu0 %v357
    %1330 = vmatmul.f32.gmra.mxu0 %v61
    %v1331 = vpop.f32.mrf.mxu0
    %v1332 = vadd.f32 %v1312, %v1331
    %1333 = vdwg.mxu0
    %1334 = vmatpush.msra.mxu0 %v543
    %1335 = vmatpush.msra.mxu0 %v537
    %1336 = vmatpush.msra.mxu0 %v531
    %1337 = vmatpush.msra.mxu0 %v525
    %1338 = vmatpush.msra.mxu0 %v519
    %1339 = vmatpush.msra.mxu0 %v513
    %1340 = vmatpush.msra.mxu0 %v507
    %1341 = vmatpush.msra.mxu0 %v501
    %1342 = vmatpush.msra.mxu0 %v495
    %1343 = vmatpush.msra.mxu0 %v489
    %1344 = vmatpush.msra.mxu0 %v483
    %1345 = vmatpush.msra.mxu0 %v477
    %1346 = vmatpush.msra.mxu0 %v471
    %1347 = vmatpush.msra.mxu0 %v465
    %1348 = vmatpush.msra.mxu0 %v459
    %1349 = vmatpush.msra.mxu0 %v453
    %1350 = vmatmul.f32.gmra.mxu0 %v62
    %v1351 = vpop.f32.mrf.mxu0
    %v1352 = vadd.f32 %v1332, %v1351
    %1353 = vdwg.mxu0
    %1354 = vmatpush.msra.mxu0 %v639
    %1355 = vmatpush.msra.mxu0 %v633
    %1356 = vmatpush.msra.mxu0 %v627
    %1357 = vmatpush.msra.mxu0 %v621
    %1358 = vmatpush.msra.mxu0 %v615
    %1359 = vmatpush.msra.mxu0 %v609
    %1360 = vmatpush.msra.mxu0 %v603
    %1361 = vmatpush.msra.mxu0 %v597
    %1362 = vmatpush.msra.mxu0 %v591
    %1363 = vmatpush.msra.mxu0 %v585
    %1364 = vmatpush.msra.mxu0 %v579
    %1365 = vmatpush.msra.mxu0 %v573
    %1366 = vmatpush.msra.mxu0 %v567
    %1367 = vmatpush.msra.mxu0 %v561
    %1368 = vmatpush.msra.mxu0 %v555
    %1369 = vmatpush.msra.mxu0 %v549
    %1370 = vmatmul.f32.gmra.mxu0 %v63
    %v1371 = vpop.f32.mrf.mxu0
    %v1372 = vadd.f32 %v1352, %v1371
    %1373 = vdwg.mxu0
    %1374 = vst [vmem:[#allocation8] sm:$0xff] %v772
    %1375 = vst [vmem:[#allocation8 + $0x8] sm:$0xff] %v892
    %1376 = vst [vmem:[#allocation8 + $0x10] sm:$0xff] %v1012
    %1377 = vst [vmem:[#allocation8 + $0x18] sm:$0xff] %v1132
    %1378 = vst [vmem:[#allocation8 + $0x20] sm:$0xff] %v1252
    %1379 = vst [vmem:[#allocation8 + $0x28] sm:$0xff] %v1372
    // Predicated region
    $region26: #{tpu_custom_call.1} parent=1 // pred_check
      _
    $region27: #{tpu_custom_call.1} parent=1 // pred_check_branch
      %1381 = sbr.rel (0) target = $region29
    $region28: #{tpu_custom_call.1} parent=1 // pred_region
      %1383 = vsyncadd [#allocation4], 0
      %s1385 = sshll.u32 [#allocation8], 4
      %s1386 = int_to_ptr.vmem [resolvable:$true] %s1385
      %s1387 = sshll.u32 %s3, 4
      %s1388 = int_to_ptr.hbm [resolvable:$true] %s1387
      %1390 = dma.vmem_to_hbm [thread:$0]  %s1386, 768, %s1388, [#allocation4]
    $region29: #{tpu_custom_call.1} parent=1 // pred_fallthru
      _
    // Predicated region
    $region30: #{tpu_custom_call.1} parent=1 // pred_check
      _
    $region31: #{tpu_custom_call.1} parent=1 // pred_check_branch
      %1392 = sbr.rel (0) target = $region33
    $region32: #{tpu_custom_call.1} parent=1 // pred_region
      %1394 = dma.done [#allocation4], 768
    $region33: #{tpu_custom_call.1} parent=1 // pred_fallthru
      _
    %1395 = vsyncpa [#allocation3], 1
    %1396 = vsyncpa [#allocation6], 1
    %1397 = vsyncpa [#allocation4], 1

</llo_original>
